<compile_context>
chip_gen: v6e
topology: v6e:2x2x1
jax: 0.10.0
libtpu: 0.0.40
codegen_flags: <defaults>
</compile_context>

<pallas_src>
import functools

import jax
import jax.numpy as jnp
from jax.experimental import pallas as pl
from jax.experimental.pallas import tpu as pltpu

EPS = 1e-5
MXU_DTYPE = jnp.bfloat16            # MXU inputs; accumulation stays float32.
VMEM_LIMIT = 64 * 1024 * 1024       # explicit per-pass VMEM budget.


def _pick_tile(n, target):
    """Largest divisor of n that is <= target (preferring multiples of 8)."""
    if n <= target:
        return n
    divisors = [t for t in range(min(n, target), 0, -1) if n % t == 0]
    for t in divisors:
        if t % 8 == 0:
            return t
    return divisors[0]


# ---------------------------------------------------------------------------
# Pass 1: fused Q|K|V projection (one wide MXU matmul), q pre-scaled, bf16 out.
# ---------------------------------------------------------------------------
def _qkv_kernel(x_ref, wqkv_ref, q_ref, k_ref, v_ref, *, d_model, scale):
    x = x_ref[...].astype(MXU_DTYPE)                              # (1, TL, D)
    qkv = jnp.einsum('bld,de->ble', x, wqkv_ref[...],
                     preferred_element_type=jnp.float32)          # (1, TL, 3D)
    D = d_model
    q_ref[...] = (qkv[:, :, 0:D] * scale).astype(MXU_DTYPE)       # scale once
    k_ref[...] = qkv[:, :, D:2 * D].astype(MXU_DTYPE)
    v_ref[...] = qkv[:, :, 2 * D:3 * D].astype(MXU_DTYPE)


# ---------------------------------------------------------------------------
# Pass 2: attention (Tq query tile, full K/V resident) + W_h + residual
#         + per-block BatchNorm1 partial sums.
# ---------------------------------------------------------------------------
def _attn_kernel(q_ref, k_ref, v_ref, x_ref, wh_ref, bh_ref,
                 y1_ref, s1_ref, sq1_ref, ctx_ref, *, num_heads):
    _, TQ, D = q_ref.shape
    dk = D // num_heads
    q = q_ref[...]                                      # (1, TQ, D) bf16
    k = k_ref[...]                                      # (1, L,  D) bf16
    v = v_ref[...]                                      # (1, L,  D) bf16

    # TODO(synk): heads are statically unrolled; a fori_loop with dynamic lane
    # slices (pl.ds) would bound live ranges but dynamic lane-dim slicing is
    # fragile when dk is not a multiple of 128.
    for h in range(num_heads):
        lo = h * dk
        qh = q[:, :, lo:lo + dk]
        kh = k[:, :, lo:lo + dk]
        vh = v[:, :, lo:lo + dk]
        s = jnp.einsum('bld,bmd->blm', qh, kh,
                       preferred_element_type=jnp.float32)        # (1, TQ, L)
        s = s - jnp.max(s, axis=-1, keepdims=True)                # stable
        e = jnp.exp(s)
        p = e / jnp.sum(e, axis=-1, keepdims=True)                # exact f32
        oh = jnp.einsum('blm,bmd->bld', p.astype(MXU_DTYPE), vh,
                        preferred_element_type=jnp.float32)       # (1, TQ, dk)
        ctx_ref[:, :, lo:lo + dk] = oh                  # gather heads in VMEM

    # One K=D output projection instead of H small K=dk matmuls.
    attn = jnp.einsum('bld,de->ble', ctx_ref[...].astype(MXU_DTYPE),
                      wh_ref[...], preferred_element_type=jnp.float32)
    y1 = x_ref[...] + (attn + bh_ref[...])              # residual (dropout=id)
    y1_ref[...] = y1
    # Single-pass BN partials (f32).  TODO(synk): use shifted/compensated sums
    # if |mean| >> std at very large B*L.
    s1_ref[...] = jnp.sum(y1, axis=1, keepdims=True)
    sq1_ref[...] = jnp.sum(y1 * y1, axis=1, keepdims=True)


# ---------------------------------------------------------------------------
# Pass 3: BatchNorm1 (global stats) + 1x1-conv FFN + residual + BN2 partials.
# ---------------------------------------------------------------------------
def _bn1_ffn_kernel(y1_ref, sum1_ref, sq1_ref, g1_ref, be1_ref,
                    w1_ref, b1_ref, w2_ref, b2_ref,
                    y2_ref, s2_ref, sq2_ref, *, inv_n):
    y1 = y1_ref[...]                                     # (1, TL, D) f32
    mu = sum1_ref[...] * inv_n                           # (1, D)
    var = jnp.maximum(sq1_ref[...] * inv_n - mu * mu, 0.0)
    out1 = g1_ref[...] * (y1 - mu) / jnp.sqrt(var + EPS) + be1_ref[...]

    # Position-wise CNN: 1x1 conv -> ReLU -> 1x1 conv (dropouts = identity).
    h1 = jnp.einsum('bld,dh->blh', out1.astype(MXU_DTYPE), w1_ref[...],
                    preferred_element_type=jnp.float32) + b1_ref[...]
    h1 = jnp.maximum(h1, 0.0)
    h2 = jnp.einsum('blh,hd->bld', h1.astype(MXU_DTYPE), w2_ref[...],
                    preferred_element_type=jnp.float32) + b2_ref[...]

    y2 = out1 + h2                                       # residual
    y2_ref[...] = y2
    s2_ref[...] = jnp.sum(y2, axis=1, keepdims=True)
    sq2_ref[...] = jnp.sum(y2 * y2, axis=1, keepdims=True)


# ---------------------------------------------------------------------------
# Pass 4: BatchNorm2 normalization (y2 aliased in-place to the output).
# ---------------------------------------------------------------------------
def _bn2_kernel(y2_ref, sum2_ref, sq2_ref, g2_ref, be2_ref, o_ref, *, inv_n):
    y2 = y2_ref[...]                                     # (1, TL, D) f32
    mu = sum2_ref[...] * inv_n
    var = jnp.maximum(sq2_ref[...] * inv_n - mu * mu, 0.0)
    o_ref[...] = g2_ref[...] * (y2 - mu) / jnp.sqrt(var + EPS) + be2_ref[...]


# ---------------------------------------------------------------------------
# Wrapper.
# ---------------------------------------------------------------------------
def tf_encoder_layer(x_ncl, params, num_heads):
    """x_ncl: (B, d_model, L) PyTorch Conv1d layout.  Returns same layout."""
    wq, wk, wv, wh, bh, w1, b1, w2, b2, g1, be1, g2, be2 = params
    B, D, L = x_ncl.shape
    H = num_heads
    assert D % H == 0
    Hd = w1.shape[1]
    inv_n = 1.0 / float(B * L)
    scale = 1.0 / float(D // H) ** 0.5

    TL = _pick_tile(L, 512)          # token tile for projection / FFN / BN
    TQ = _pick_tile(L, 256)          # query tile for attention
    nT = L // TL
    nQ = L // TQ

    # Kernels operate channels-last (B, L, D); convert once at the boundary.
    x = jnp.transpose(x_ncl, (0, 2, 1)).astype(jnp.float32)

    # Host-side weight prep (done once at load time in a real model).
    # TODO(synk): pad D/dk/Hd to multiples of 128 host-side for lane-dense
    # stores at production sizes.
    wqkv = jnp.concatenate([wq, wk, wv], axis=1).astype(MXU_DTYPE)   # (D, 3D)
    whb = wh.astype(MXU_DTYPE)                                       # (D, D)
    w1b = w1.astype(MXU_DTYPE)
    w2b = w2.astype(MXU_DTYPE)
    as_f32 = lambda a: jnp.asarray(a, jnp.float32)
    bh_, b1_, b2_ = as_f32(bh), as_f32(b1), as_f32(b2)
    g1_, be1_, g2_, be2_ = as_f32(g1), as_f32(be1), as_f32(g2), as_f32(be2)

    def cparams():
        return pltpu.CompilerParams(
            dimension_semantics=("parallel", "parallel"),
            vmem_limit_bytes=VMEM_LIMIT)

    # Resident (constant-index) weight specs.
    # TODO(synk): pipeline_mode=pl.Buffered(1) would drop the unused second
    # pipeline buffer on these once that path is fully supported.
    def res(shape):
        return pl.BlockSpec(shape, lambda b, t: (0,) * len(shape))

    tokL = pl.BlockSpec((1, TL, D), lambda b, t: (b, t, 0))
    tokQ = pl.BlockSpec((1, TQ, D), lambda b, t: (b, t, 0))
    full_kv = pl.BlockSpec((1, L, D), lambda b, t: (b, 0, 0))   # resident per b
    statQ = pl.BlockSpec((1, 1, D), lambda b, t: (b * nQ + t, 0, 0))
    statT = pl.BlockSpec((1, 1, D), lambda b, t: (b * nT + t, 0, 0))

    # --- pass 1: fused QKV projection ---------------------------------------
    qkv_pass = pl.pallas_call(
        functools.partial(_qkv_kernel, d_model=D, scale=scale),
        grid=(B, nT),
        in_specs=[tokL, res((D, 3 * D))],
        out_specs=(tokL, tokL, tokL),
        out_shape=(jax.ShapeDtypeStruct((B, L, D), MXU_DTYPE),
                   jax.ShapeDtypeStruct((B, L, D), MXU_DTYPE),
                   jax.ShapeDtypeStruct((B, L, D), MXU_DTYPE)),
        compiler_params=cparams(),
        cost_estimate=pl.CostEstimate(
            flops=int(6 * B * L * D * D),
            transcendentals=0,
            bytes_accessed=int(4 * B * L * D + 6 * B * L * D + 6 * D * D)),
    )
    q, k, v = qkv_pass(x, wqkv)

    # --- pass 2: attention + residual + BN1 partial stats --------------------
    attn_pass = pl.pallas_call(
        functools.partial(_attn_kernel, num_heads=H),
        grid=(B, nQ),
        in_specs=[tokQ, full_kv, full_kv, tokQ, res((D, D)), res((1, D))],
        out_specs=(tokQ, statQ, statQ),
        out_shape=(jax.ShapeDtypeStruct((B, L, D), jnp.float32),
                   jax.ShapeDtypeStruct((B * nQ, 1, D), jnp.float32),
                   jax.ShapeDtypeStruct((B * nQ, 1, D), jnp.float32)),
        scratch_shapes=[pltpu.VMEM((1, TQ, D), jnp.float32)],
        compiler_params=cparams(),
        cost_estimate=pl.CostEstimate(
            flops=int(4 * B * L * L * D + 2 * B * L * D * D),
            transcendentals=int(B * H * L * L),
            bytes_accessed=int(10 * B * L * D + 2 * D * D + 4 * D)),
    )
    y1, s1, q1 = attn_pass(q, k, v, x, whb, bh_)

    # Tiny cross-block reduction of per-channel partials (wrapper side).
    sum1 = jnp.sum(s1, axis=0)       # (1, D)
    sqr1 = jnp.sum(q1, axis=0)       # (1, D)

    # --- pass 3: BN1 + FFN + residual + BN2 partial stats --------------------
    bn1_ffn_pass = pl.pallas_call(
        functools.partial(_bn1_ffn_kernel, inv_n=inv_n),
        grid=(B, nT),
        in_specs=[tokL, res((1, D)), res((1, D)), res((1, D)), res((1, D)),
                  res((D, Hd)), res((1, Hd)), res((Hd, D)), res((1, D))],
        out_specs=(tokL, statT, statT),
        out_shape=(jax.ShapeDtypeStruct((B, L, D), jnp.float32),
                   jax.ShapeDtypeStruct((B * nT, 1, D), jnp.float32),
                   jax.ShapeDtypeStruct((B * nT, 1, D), jnp.float32)),
        compiler_params=cparams(),
        cost_estimate=pl.CostEstimate(
            flops=int(4 * B * L * D * Hd),
            transcendentals=0,
            bytes_accessed=int(8 * B * L * D + 4 * D * Hd + 4 * (6 * D + Hd))),
    )
    y2, s2, q2 = bn1_ffn_pass(y1, sum1, sqr1, g1_, be1_, w1b, b1_, w2b, b2_)

    sum2 = jnp.sum(s2, axis=0)
    sqr2 = jnp.sum(q2, axis=0)

    # --- pass 4: BN2 normalization (in-place via aliasing) -------------------
    bn2_pass = pl.pallas_call(
        functools.partial(_bn2_kernel, inv_n=inv_n),
        grid=(B, nT),
        in_specs=[tokL, res((1, D)), res((1, D)), res((1, D)), res((1, D))],
        out_specs=tokL,
        out_shape=jax.ShapeDtypeStruct((B, L, D), jnp.float32),
        input_output_aliases={0: 0},
        compiler_params=cparams(),
        cost_estimate=pl.CostEstimate(
            flops=int(4 * B * L * D),
            transcendentals=0,
            bytes_accessed=int(8 * B * L * D + 16 * D)),
    )
    out = bn2_pass(y2, sum2, sqr2, g2_, be2_)
    return jnp.transpose(out, (0, 2, 1))                 # back to (B, d_model, L)


# ---------------------------------------------------------------------------
# Parameters and pure-JAX reference.
# ---------------------------------------------------------------------------
def make_params(key, d_model, num_heads, conv_hidden):
    """Deterministic params. Conv1d(out,in,1) weights stored as (in, out) mats."""
    ks = jax.random.split(key, 6)

    def xavier(k, fan_in, fan_out):
        bound = (6.0 / (fan_in + fan_out)) ** 0.5
        return jax.random.uniform(k, (fan_in, fan_out), jnp.float32, -bound, bound)

    wq = xavier(ks[0], d_model, d_model)
    wk = xavier(ks[1], d_model, d_model)
    wv = xavier(ks[2], d_model, d_model)
    wh = xavier(ks[3], d_model, d_model)
    bh = jnp.zeros((1, d_model), jnp.float32)
    w1 = xavier(ks[4], d_model, conv_hidden)
    b1 = jnp.zeros((1, conv_hidden), jnp.float32)
    w2 = xavier(ks[5], conv_hidden, d_model)
    b2 = jnp.zeros((1, d_model), jnp.float32)
    # NOTE: TFEncoderLayer._init_weights sets BatchNorm gamma=0, which makes the
    # whole forward identically zero; we use standard BN init (gamma=1, beta=0)
    # so the kernel exercises meaningful compute.  Shapes match the module.
    g1 = jnp.ones((1, d_model), jnp.float32)
    be1 = jnp.zeros((1, d_model), jnp.float32)
    g2 = jnp.ones((1, d_model), jnp.float32)
    be2 = jnp.zeros((1, d_model), jnp.float32)
    return (wq, wk, wv, wh, bh, w1, b1, w2, b2, g1, be1, g2, be2)


def reference(x_ncl, params, num_heads, mxu_dtype=jnp.float32):
    """Pure-JAX reference mirroring the PyTorch forward (inference).

    mxu_dtype=float32 reproduces the module exactly; mxu_dtype=bfloat16 applies
    the same matmul-input casts as the kernel (float32 accumulation everywhere).
    """
    wq, wk, wv, wh, bh, w1, b1, w2, b2, g1, be1, g2, be2 = params
    x = jnp.transpose(x_ncl, (0, 2, 1)).astype(jnp.float32)   # (B, L, D)
    B, L, D = x.shape
    dk = D // num_heads

    def mm(a, b):
        return jnp.einsum('...ld,de->...le', a.astype(mxu_dtype),
                          b.astype(mxu_dtype),
                          preferred_element_type=jnp.float32)

    def split(t):   # (B, L, D) -> (B, H, L, dk); head h = channels [h*dk:(h+1)*dk]
        return jnp.transpose(t.reshape(B, L, num_heads, dk), (0, 2, 1, 3))

    q = split(mm(x, wq) * (1.0 / dk ** 0.5))
    k = split(mm(x, wk))
    v = split(mm(x, wv))
    s = jnp.einsum('bhld,bhmd->bhlm', q.astype(mxu_dtype), k.astype(mxu_dtype),
                   preferred_element_type=jnp.float32)
    a = jax.nn.softmax(s, axis=-1)
    o = jnp.einsum('bhlm,bhmd->bhld', a.astype(mxu_dtype), v.astype(mxu_dtype),
                   preferred_element_type=jnp.float32)
    o = jnp.transpose(o, (0, 2, 1, 3)).reshape(B, L, D)
    attn = mm(o, wh) + bh

    def bn(y, g, b):
        mu = jnp.mean(y, axis=(0, 1), keepdims=True)
        var = jnp.mean((y - mu) ** 2, axis=(0, 1), keepdims=True)
        return g * (y - mu) / jnp.sqrt(var + EPS) + b

    out1 = bn(x + attn, g1, be1)
    h1 = jnp.maximum(mm(out1, w1) + b1, 0.0)
    h2 = mm(h1, w2) + b2
    out2 = bn(out1 + h2, g2, be2)
    return jnp.transpose(out2, (0, 2, 1))


if __name__ == "__main__":
    B, D, L = 2, 32, 16             # batch, d_model, seq_len
    NUM_HEADS, CONV_HIDDEN = 4, 64

    key = jax.random.PRNGKey(0)
    kx, kp = jax.random.split(key)
    x = jax.random.normal(kx, (B, D, L), jnp.float32)   # PyTorch (B, d_model, L)
    params = make_params(kp, D, NUM_HEADS, CONV_HIDDEN)

    fwd = jax.jit(tf_encoder_layer, static_argnums=2)
    out = jax.block_until_ready(fwd(x, params, NUM_HEADS))
    assert out.shape == (B, D, L)

    # Tight check vs. a reference that applies the same bf16-MXU casts as the
    # kernel (remaining differences are only f32 accumulation order).
    ref_bf16 = reference(x, params, NUM_HEADS, mxu_dtype=MXU_DTYPE)
    err_bf16 = float(jnp.max(jnp.abs(out - ref_bf16)))
    assert err_bf16 < 5e-3, (
        "bf16-matched reference mismatch, max abs diff %e" % err_bf16)

    # Looser sanity check vs. the exact float32 module semantics (the gap is
    # purely bf16 MXU-input rounding, amplified slightly by BatchNorm).
    ref_f32 = reference(x, params, NUM_HEADS, mxu_dtype=jnp.float32)
    err_f32 = float(jnp.max(jnp.abs(out - ref_f32)))
    assert err_f32 < 1e-1, (
        "f32 reference mismatch, max abs diff %e" % err_f32)

    print("KERNEL_OK")
</pallas_src>

<mosaic_0001>
module attributes {stable_mosaic.version = 11 : i64} {
  func.func @_qkv_kernel(%arg0: i32, %arg1: i32, %arg2: memref<1x16x32xf32, #tpu.memory_space<vmem>>, %arg3: memref<32x96xbf16, #tpu.memory_space<vmem>>, %arg4: memref<1x16x32xbf16, #tpu.memory_space<vmem>>, %arg5: memref<1x16x32xbf16, #tpu.memory_space<vmem>>, %arg6: memref<1x16x32xbf16, #tpu.memory_space<vmem>>) attributes {dimension_semantics = [#tpu.dimension_semantics<parallel>, #tpu.dimension_semantics<parallel>], iteration_bounds = array<i64: 2, 1>, scalar_prefetch = 0 : i64, scratch_operands = 0 : i64, tpu.core_type = #tpu.core_type<tc>, window_params = [{transform_indices = @transform_0, window_bounds = array<i64: 1, 16, 32>}, {pipeline_mode = #tpu.pipeline_mode<synchronous>, transform_indices = @transform_1, window_bounds = array<i64: 32, 96>}, {transform_indices = @transform_2, window_bounds = array<i64: 1, 16, 32>}, {transform_indices = @transform_3, window_bounds = array<i64: 1, 16, 32>}, {transform_indices = @transform_4, window_bounds = array<i64: 1, 16, 32>}]} {
    %c0 = arith.constant 0 : index
    %c0_0 = arith.constant 0 : index
    %c0_1 = arith.constant 0 : index
    %0 = vector.load %arg2[%c0, %c0_0, %c0_1] : memref<1x16x32xf32, #tpu.memory_space<vmem>>, vector<1x16x32xf32>
    %1 = arith.truncf %0 : vector<1x16x32xf32> to vector<1x16x32xbf16>
    %c0_2 = arith.constant 0 : index
    %c0_3 = arith.constant 0 : index
    %2 = vector.load %arg3[%c0_2, %c0_3] : memref<32x96xbf16, #tpu.memory_space<vmem>>, vector<32x96xbf16>
    "tpu.trace_start"() <{level = 10 : i32, message = "bld,de->ble"}> : () -> ()
    %cst = arith.constant dense<0.000000e+00> : vector<1x16x96xf32>
    %3 = tpu.matmul %1, %2, %cst {dimension_numbers = #tpu.dot_dimension_numbers<[2], [0], [0, 1], [1], [0, 0, 0, 1, 1, 1], [], []>} : vector<1x16x32xbf16>, vector<32x96xbf16>, vector<1x16x96xf32> -> vector<1x16x96xf32>
    "tpu.trace_stop"() : () -> ()
    %4 = vector.extract_strided_slice %3 {offsets = [0, 0, 0], sizes = [1, 16, 32], strides = [1, 1, 1]} : vector<1x16x96xf32> to vector<1x16x32xf32>
    %cst_4 = arith.constant 0.353553385 : f32
    %5 = vector.broadcast %cst_4 : f32 to vector<1x16x32xf32>
    %6 = arith.mulf %4, %5 : vector<1x16x32xf32>
    %7 = arith.truncf %6 : vector<1x16x32xf32> to vector<1x16x32xbf16>
    %c0_5 = arith.constant 0 : index
    %c0_6 = arith.constant 0 : index
    %c0_7 = arith.constant 0 : index
    %8 = vector.load %arg4[%c0_5, %c0_6, %c0_7] : memref<1x16x32xbf16, #tpu.memory_space<vmem>>, vector<1x16x32xbf16>
    tpu.vector_store %arg4[%c0_5, %c0_6, %c0_7], %7 {strides = array<i32>} : memref<1x16x32xbf16, #tpu.memory_space<vmem>>, vector<1x16x32xbf16>,
    %9 = vector.extract_strided_slice %3 {offsets = [0, 0, 32], sizes = [1, 16, 32], strides = [1, 1, 1]} : vector<1x16x96xf32> to vector<1x16x32xf32>
    %10 = arith.truncf %9 : vector<1x16x32xf32> to vector<1x16x32xbf16>
    %c0_8 = arith.constant 0 : index
    %c0_9 = arith.constant 0 : index
    %c0_10 = arith.constant 0 : index
    %11 = vector.load %arg5[%c0_8, %c0_9, %c0_10] : memref<1x16x32xbf16, #tpu.memory_space<vmem>>, vector<1x16x32xbf16>
    tpu.vector_store %arg5[%c0_8, %c0_9, %c0_10], %10 {strides = array<i32>} : memref<1x16x32xbf16, #tpu.memory_space<vmem>>, vector<1x16x32xbf16>,
    %12 = vector.extract_strided_slice %3 {offsets = [0, 0, 64], sizes = [1, 16, 32], strides = [1, 1, 1]} : vector<1x16x96xf32> to vector<1x16x32xf32>
    %13 = arith.truncf %12 : vector<1x16x32xf32> to vector<1x16x32xbf16>
    %c0_11 = arith.constant 0 : index
    %c0_12 = arith.constant 0 : index
    %c0_13 = arith.constant 0 : index
    %14 = vector.load %arg6[%c0_11, %c0_12, %c0_13] : memref<1x16x32xbf16, #tpu.memory_space<vmem>>, vector<1x16x32xbf16>
    tpu.vector_store %arg6[%c0_11, %c0_12, %c0_13], %13 {strides = array<i32>} : memref<1x16x32xbf16, #tpu.memory_space<vmem>>, vector<1x16x32xbf16>,
    return
  }
  func.func @transform_0(%arg0: i32, %arg1: i32) -> (i32, i32, i32) {
    %c0_i32 = arith.constant 0 : i32
    %c0_i32_0 = arith.constant 0 : i32
    return %arg0, %arg1, %c0_i32 : i32, i32, i32
  }
  func.func @transform_1(%arg0: i32, %arg1: i32) -> (i32, i32) {
    %c0_i32 = arith.constant 0 : i32
    %c0_i32_0 = arith.constant 0 : i32
    %c0_i32_1 = arith.constant 0 : i32
    return %c0_i32, %c0_i32_0 : i32, i32
  }
  func.func @transform_2(%arg0: i32, %arg1: i32) -> (i32, i32, i32) {
    %c0_i32 = arith.constant 0 : i32
    %c0_i32_0 = arith.constant 0 : i32
    return %arg0, %arg1, %c0_i32 : i32, i32, i32
  }
  func.func @transform_3(%arg0: i32, %arg1: i32) -> (i32, i32, i32) {
    %c0_i32 = arith.constant 0 : i32
    %c0_i32_0 = arith.constant 0 : i32
    return %arg0, %arg1, %c0_i32 : i32, i32, i32
  }
  func.func @transform_4(%arg0: i32, %arg1: i32) -> (i32, i32, i32) {
    %c0_i32 = arith.constant 0 : i32
    %c0_i32_0 = arith.constant 0 : i32
    return %arg0, %arg1, %c0_i32 : i32, i32, i32
  }
}

module attributes {stable_mosaic.version = 11 : i64} {
  func.func @_attn_kernel(%arg0: i32, %arg1: i32, %arg2: memref<1x16x32xbf16, #tpu.memory_space<vmem>>, %arg3: memref<1x16x32xbf16, #tpu.memory_space<vmem>>, %arg4: memref<1x16x32xbf16, #tpu.memory_space<vmem>>, %arg5: memref<1x16x32xf32, #tpu.memory_space<vmem>>, %arg6: memref<32x32xbf16, #tpu.memory_space<vmem>>, %arg7: memref<1x32xf32, #tpu.memory_space<vmem>>, %arg8: memref<1x16x32xf32, #tpu.memory_space<vmem>>, %arg9: memref<1x1x32xf32, #tpu.memory_space<vmem>>, %arg10: memref<1x1x32xf32, #tpu.memory_space<vmem>>, %arg11: memref<1x16x32xf32, #tpu.memory_space<vmem>>) attributes {dimension_semantics = [#tpu.dimension_semantics<parallel>, #tpu.dimension_semantics<parallel>], iteration_bounds = array<i64: 2, 1>, scalar_prefetch = 0 : i64, scratch_operands = 1 : i64, tpu.core_type = #tpu.core_type<tc>, window_params = [{transform_indices = @transform_0, window_bounds = array<i64: 1, 16, 32>}, {transform_indices = @transform_1, window_bounds = array<i64: 1, 16, 32>}, {transform_indices = @transform_2, window_bounds = array<i64: 1, 16, 32>}, {transform_indices = @transform_3, window_bounds = array<i64: 1, 16, 32>}, {pipeline_mode = #tpu.pipeline_mode<synchronous>, transform_indices = @transform_4, window_bounds = array<i64: 32, 32>}, {pipeline_mode = #tpu.pipeline_mode<synchronous>, transform_indices = @transform_5, window_bounds = array<i64: 1, 32>}, {transform_indices = @transform_6, window_bounds = array<i64: 1, 16, 32>}, {transform_indices = @transform_7, window_bounds = array<i64: 1, 1, 32>}, {transform_indices = @transform_8, window_bounds = array<i64: 1, 1, 32>}]} {
    %c0 = arith.constant 0 : index
    %c0_0 = arith.constant 0 : index
    %c0_1 = arith.constant 0 : index
    %0 = vector.load %arg2[%c0, %c0_0, %c0_1] : memref<1x16x32xbf16, #tpu.memory_space<vmem>>, vector<1x16x32xbf16>
    %c0_2 = arith.constant 0 : index
    %c0_3 = arith.constant 0 : index
    %c0_4 = arith.constant 0 : index
    %1 = vector.load %arg3[%c0_2, %c0_3, %c0_4] : memref<1x16x32xbf16, #tpu.memory_space<vmem>>, vector<1x16x32xbf16>
    %c0_5 = arith.constant 0 : index
    %c0_6 = arith.constant 0 : index
    %c0_7 = arith.constant 0 : index
    %2 = vector.load %arg4[%c0_5, %c0_6, %c0_7] : memref<1x16x32xbf16, #tpu.memory_space<vmem>>, vector<1x16x32xbf16>
    %3 = vector.extract_strided_slice %0 {offsets = [0, 0, 0], sizes = [1, 16, 8], strides = [1, 1, 1]} : vector<1x16x32xbf16> to vector<1x16x8xbf16>
    %4 = vector.extract_strided_slice %1 {offsets = [0, 0, 0], sizes = [1, 16, 8], strides = [1, 1, 1]} : vector<1x16x32xbf16> to vector<1x16x8xbf16>
    %5 = vector.extract_strided_slice %2 {offsets = [0, 0, 0], sizes = [1, 16, 8], strides = [1, 1, 1]} : vector<1x16x32xbf16> to vector<1x16x8xbf16>
    "tpu.trace_start"() <{level = 10 : i32, message = "bld,bmd->blm"}> : () -> ()
    %cst = arith.constant dense<0.000000e+00> : vector<1x16x16xf32>
    %6 = tpu.matmul %3, %4, %cst {dimension_numbers = #tpu.dot_dimension_numbers<[2], [2], [1], [1], [0, 0, 0, 1, 1, 1], [0], [0]>} : vector<1x16x8xbf16>, vector<1x16x8xbf16>, vector<1x16x16xf32> -> vector<1x16x16xf32>
    "tpu.trace_stop"() : () -> ()
    %cst_8 = arith.constant dense<0xFF800000> : vector<1x16xf32>
    %7 = vector.multi_reduction <maximumf>, %6, %cst_8 [2] : vector<1x16x16xf32> to vector<1x16xf32>
    %8 = vector.shape_cast %7 : vector<1x16xf32> to vector<1x16x1xf32>
    %9 = vector.broadcast %8 : vector<1x16x1xf32> to vector<1x16x16xf32>
    %10 = arith.subf %6, %9 : vector<1x16x16xf32>
    %11 = math.exp %10 : vector<1x16x16xf32>
    %cst_9 = arith.constant dense<0.000000e+00> : vector<1x16xf32>
    %12 = vector.multi_reduction <add>, %11, %cst_9 [2] : vector<1x16x16xf32> to vector<1x16xf32>
    %13 = vector.shape_cast %12 : vector<1x16xf32> to vector<1x16x1xf32>
    %14 = vector.broadcast %13 : vector<1x16x1xf32> to vector<1x16x16xf32>
    %15 = arith.divf %11, %14 : vector<1x16x16xf32>
    %16 = arith.truncf %15 : vector<1x16x16xf32> to vector<1x16x16xbf16>
    "tpu.trace_start"() <{level = 10 : i32, message = "blm,bmd->bld"}> : () -> ()
    %cst_10 = arith.constant dense<0.000000e+00> : vector<1x16x8xf32>
    %17 = tpu.matmul %16, %5, %cst_10 {dimension_numbers = #tpu.dot_dimension_numbers<[2], [1], [1], [2], [0, 0, 0, 1, 1, 2], [0], [0]>} : vector<1x16x16xbf16>, vector<1x16x8xbf16>, vector<1x16x8xf32> -> vector<1x16x8xf32>
    "tpu.trace_stop"() : () -> ()
    %c0_11 = arith.constant 0 : index
    %c0_12 = arith.constant 0 : index
    %c0_13 = arith.constant 0 : index
    %18 = vector.load %arg11[%c0_11, %c0_12, %c0_13] : memref<1x16x32xf32, #tpu.memory_space<vmem>>, vector<1x16x8xf32>
    tpu.vector_store %arg11[%c0_11, %c0_12, %c0_13], %17 {strides = array<i32>} : memref<1x16x32xf32, #tpu.memory_space<vmem>>, vector<1x16x8xf32>,
    %19 = vector.extract_strided_slice %0 {offsets = [0, 0, 8], sizes = [1, 16, 8], strides = [1, 1, 1]} : vector<1x16x32xbf16> to vector<1x16x8xbf16>
    %20 = vector.extract_strided_slice %1 {offsets = [0, 0, 8], sizes = [1, 16, 8], strides = [1, 1, 1]} : vector<1x16x32xbf16> to vector<1x16x8xbf16>
    %21 = vector.extract_strided_slice %2 {offsets = [0, 0, 8], sizes = [1, 16, 8], strides = [1, 1, 1]} : vector<1x16x32xbf16> to vector<1x16x8xbf16>
    "tpu.trace_start"() <{level = 10 : i32, message = "bld,bmd->blm"}> : () -> ()
    %cst_14 = arith.constant dense<0.000000e+00> : vector<1x16x16xf32>
    %22 = tpu.matmul %19, %20, %cst_14 {dimension_numbers = #tpu.dot_dimension_numbers<[2], [2], [1], [1], [0, 0, 0, 1, 1, 1], [0], [0]>} : vector<1x16x8xbf16>, vector<1x16x8xbf16>, vector<1x16x16xf32> -> vector<1x16x16xf32>
    "tpu.trace_stop"() : () -> ()
    %cst_15 = arith.constant dense<0xFF800000> : vector<1x16xf32>
    %23 = vector.multi_reduction <maximumf>, %22, %cst_15 [2] : vector<1x16x16xf32> to vector<1x16xf32>
    %24 = vector.shape_cast %23 : vector<1x16xf32> to vector<1x16x1xf32>
    %25 = vector.broadcast %24 : vector<1x16x1xf32> to vector<1x16x16xf32>
    %26 = arith.subf %22, %25 : vector<1x16x16xf32>
    %27 = math.exp %26 : vector<1x16x16xf32>
    %cst_16 = arith.constant dense<0.000000e+00> : vector<1x16xf32>
    %28 = vector.multi_reduction <add>, %27, %cst_16 [2] : vector<1x16x16xf32> to vector<1x16xf32>
    %29 = vector.shape_cast %28 : vector<1x16xf32> to vector<1x16x1xf32>
    %30 = vector.broadcast %29 : vector<1x16x1xf32> to vector<1x16x16xf32>
    %31 = arith.divf %27, %30 : vector<1x16x16xf32>
    %32 = arith.truncf %31 : vector<1x16x16xf32> to vector<1x16x16xbf16>
    "tpu.trace_start"() <{level = 10 : i32, message = "blm,bmd->bld"}> : () -> ()
    %cst_17 = arith.constant dense<0.000000e+00> : vector<1x16x8xf32>
    %33 = tpu.matmul %32, %21, %cst_17 {dimension_numbers = #tpu.dot_dimension_numbers<[2], [1], [1], [2], [0, 0, 0, 1, 1, 2], [0], [0]>} : vector<1x16x16xbf16>, vector<1x16x8xbf16>, vector<1x16x8xf32> -> vector<1x16x8xf32>
    "tpu.trace_stop"() : () -> ()
    %c0_18 = arith.constant 0 : index
    %c0_19 = arith.constant 0 : index
    %c8 = arith.constant 8 : index
    %34 = vector.load %arg11[%c0_18, %c0_19, %c8] : memref<1x16x32xf32, #tpu.memory_space<vmem>>, vector<1x16x8xf32>
    tpu.vector_store %arg11[%c0_18, %c0_19, %c8], %33 {strides = array<i32>} : memref<1x16x32xf32, #tpu.memory_space<vmem>>, vector<1x16x8xf32>,
    %35 = vector.extract_strided_slice %0 {offsets = [0, 0, 16], sizes = [1, 16, 8], strides = [1, 1, 1]} : vector<1x16x32xbf16> to vector<1x16x8xbf16>
    %36 = vector.extract_strided_slice %1 {offsets = [0, 0, 16], sizes = [1, 16, 8], strides = [1, 1, 1]} : vector<1x16x32xbf16> to vector<1x16x8xbf16>
    %37 = vector.extract_strided_slice %2 {offsets = [0, 0, 16], sizes = [1, 16, 8], strides = [1, 1, 1]} : vector<1x16x32xbf16> to vector<1x16x8xbf16>
    "tpu.trace_start"() <{level = 10 : i32, message = "bld,bmd->blm"}> : () -> ()
    %cst_20 = arith.constant dense<0.000000e+00> : vector<1x16x16xf32>
    %38 = tpu.matmul %35, %36, %cst_20 {dimension_numbers = #tpu.dot_dimension_numbers<[2], [2], [1], [1], [0, 0, 0, 1, 1, 1], [0], [0]>} : vector<1x16x8xbf16>, vector<1x16x8xbf16>, vector<1x16x16xf32> -> vector<1x16x16xf32>
    "tpu.trace_stop"() : () -> ()
    %cst_21 = arith.constant dense<0xFF800000> : vector<1x16xf32>
    %39 = vector.multi_reduction <maximumf>, %38, %cst_21 [2] : vector<1x16x16xf32> to vector<1x16xf32>
    %40 = vector.shape_cast %39 : vector<1x16xf32> to vector<1x16x1xf32>
    %41 = vector.broadcast %40 : vector<1x16x1xf32> to vector<1x16x16xf32>
    %42 = arith.subf %38, %41 : vector<1x16x16xf32>
    %43 = math.exp %42 : vector<1x16x16xf32>
    %cst_22 = arith.constant dense<0.000000e+00> : vector<1x16xf32>
    %44 = vector.multi_reduction <add>, %43, %cst_22 [2] : vector<1x16x16xf32> to vector<1x16xf32>
    %45 = vector.shape_cast %44 : vector<1x16xf32> to vector<1x16x1xf32>
    %46 = vector.broadcast %45 : vector<1x16x1xf32> to vector<1x16x16xf32>
    %47 = arith.divf %43, %46 : vector<1x16x16xf32>
    %48 = arith.truncf %47 : vector<1x16x16xf32> to vector<1x16x16xbf16>
    "tpu.trace_start"() <{level = 10 : i32, message = "blm,bmd->bld"}> : () -> ()
    %cst_23 = arith.constant dense<0.000000e+00> : vector<1x16x8xf32>
    %49 = tpu.matmul %48, %37, %cst_23 {dimension_numbers = #tpu.dot_dimension_numbers<[2], [1], [1], [2], [0, 0, 0, 1, 1, 2], [0], [0]>} : vector<1x16x16xbf16>, vector<1x16x8xbf16>, vector<1x16x8xf32> -> vector<1x16x8xf32>
    "tpu.trace_stop"() : () -> ()
    %c0_24 = arith.constant 0 : index
    %c0_25 = arith.constant 0 : index
    %c16 = arith.constant 16 : index
    %50 = vector.load %arg11[%c0_24, %c0_25, %c16] : memref<1x16x32xf32, #tpu.memory_space<vmem>>, vector<1x16x8xf32>
    tpu.vector_store %arg11[%c0_24, %c0_25, %c16], %49 {strides = array<i32>} : memref<1x16x32xf32, #tpu.memory_space<vmem>>, vector<1x16x8xf32>,
    %51 = vector.extract_strided_slice %0 {offsets = [0, 0, 24], sizes = [1, 16, 8], strides = [1, 1, 1]} : vector<1x16x32xbf16> to vector<1x16x8xbf16>
    %52 = vector.extract_strided_slice %1 {offsets = [0, 0, 24], sizes = [1, 16, 8], strides = [1, 1, 1]} : vector<1x16x32xbf16> to vector<1x16x8xbf16>
    %53 = vector.extract_strided_slice %2 {offsets = [0, 0, 24], sizes = [1, 16, 8], strides = [1, 1, 1]} : vector<1x16x32xbf16> to vector<1x16x8xbf16>
    "tpu.trace_start"() <{level = 10 : i32, message = "bld,bmd->blm"}> : () -> ()
    %cst_26 = arith.constant dense<0.000000e+00> : vector<1x16x16xf32>
    %54 = tpu.matmul %51, %52, %cst_26 {dimension_numbers = #tpu.dot_dimension_numbers<[2], [2], [1], [1], [0, 0, 0, 1, 1, 1], [0], [0]>} : vector<1x16x8xbf16>, vector<1x16x8xbf16>, vector<1x16x16xf32> -> vector<1x16x16xf32>
    "tpu.trace_stop"() : () -> ()
    %cst_27 = arith.constant dense<0xFF800000> : vector<1x16xf32>
    %55 = vector.multi_reduction <maximumf>, %54, %cst_27 [2] : vector<1x16x16xf32> to vector<1x16xf32>
    %56 = vector.shape_cast %55 : vector<1x16xf32> to vector<1x16x1xf32>
    %57 = vector.broadcast %56 : vector<1x16x1xf32> to vector<1x16x16xf32>
    %58 = arith.subf %54, %57 : vector<1x16x16xf32>
    %59 = math.exp %58 : vector<1x16x16xf32>
    %cst_28 = arith.constant dense<0.000000e+00> : vector<1x16xf32>
    %60 = vector.multi_reduction <add>, %59, %cst_28 [2] : vector<1x16x16xf32> to vector<1x16xf32>
    %61 = vector.shape_cast %60 : vector<1x16xf32> to vector<1x16x1xf32>
    %62 = vector.broadcast %61 : vector<1x16x1xf32> to vector<1x16x16xf32>
    %63 = arith.divf %59, %62 : vector<1x16x16xf32>
    %64 = arith.truncf %63 : vector<1x16x16xf32> to vector<1x16x16xbf16>
    "tpu.trace_start"() <{level = 10 : i32, message = "blm,bmd->bld"}> : () -> ()
    %cst_29 = arith.constant dense<0.000000e+00> : vector<1x16x8xf32>
    %65 = tpu.matmul %64, %53, %cst_29 {dimension_numbers = #tpu.dot_dimension_numbers<[2], [1], [1], [2], [0, 0, 0, 1, 1, 2], [0], [0]>} : vector<1x16x16xbf16>, vector<1x16x8xbf16>, vector<1x16x8xf32> -> vector<1x16x8xf32>
    "tpu.trace_stop"() : () -> ()
    %c0_30 = arith.constant 0 : index
    %c0_31 = arith.constant 0 : index
    %c24 = arith.constant 24 : index
    %66 = vector.load %arg11[%c0_30, %c0_31, %c24] : memref<1x16x32xf32, #tpu.memory_space<vmem>>, vector<1x16x8xf32>
    tpu.vector_store %arg11[%c0_30, %c0_31, %c24], %65 {strides = array<i32>} : memref<1x16x32xf32, #tpu.memory_space<vmem>>, vector<1x16x8xf32>,
    %c0_32 = arith.constant 0 : index
    %c0_33 = arith.constant 0 : index
    %c0_34 = arith.constant 0 : index
    %67 = vector.load %arg11[%c0_32, %c0_33, %c0_34] : memref<1x16x32xf32, #tpu.memory_space<vmem>>, vector<1x16x32xf32>
    %68 = arith.truncf %67 : vector<1x16x32xf32> to vector<1x16x32xbf16>
    %c0_35 = arith.constant 0 : index
    %c0_36 = arith.constant 0 : index
    %69 = vector.load %arg6[%c0_35, %c0_36] : memref<32x32xbf16, #tpu.memory_space<vmem>>, vector<32x32xbf16>
    "tpu.trace_start"() <{level = 10 : i32, message = "bld,de->ble"}> : () -> ()
    %cst_37 = arith.constant dense<0.000000e+00> : vector<1x16x32xf32>
    %70 = tpu.matmul %68, %69, %cst_37 {dimension_numbers = #tpu.dot_dimension_numbers<[2], [0], [0, 1], [1], [0, 0, 0, 1, 1, 1], [], []>} : vector<1x16x32xbf16>, vector<32x32xbf16>, vector<1x16x32xf32> -> vector<1x16x32xf32>
    "tpu.trace_stop"() : () -> ()
    %c0_38 = arith.constant 0 : index
    %c0_39 = arith.constant 0 : index
    %c0_40 = arith.constant 0 : index
    %71 = vector.load %arg5[%c0_38, %c0_39, %c0_40] : memref<1x16x32xf32, #tpu.memory_space<vmem>>, vector<1x16x32xf32>
    %c0_41 = arith.constant 0 : index
    %c0_42 = arith.constant 0 : index
    %72 = vector.load %arg7[%c0_41, %c0_42] : memref<1x32xf32, #tpu.memory_space<vmem>>, vector<1x32xf32>
    %73 = vector.shape_cast %72 : vector<1x32xf32> to vector<1x1x32xf32>
    %74 = vector.broadcast %73 : vector<1x1x32xf32> to vector<1x16x32xf32>
    %75 = arith.addf %70, %74 : vector<1x16x32xf32>
    %76 = arith.addf %71, %75 : vector<1x16x32xf32>
    %c0_43 = arith.constant 0 : index
    %c0_44 = arith.constant 0 : index
    %c0_45 = arith.constant 0 : index
    %77 = vector.load %arg8[%c0_43, %c0_44, %c0_45] : memref<1x16x32xf32, #tpu.memory_space<vmem>>, vector<1x16x32xf32>
    tpu.vector_store %arg8[%c0_43, %c0_44, %c0_45], %76 {strides = array<i32>} : memref<1x16x32xf32, #tpu.memory_space<vmem>>, vector<1x16x32xf32>,
    %cst_46 = arith.constant dense<0.000000e+00> : vector<1x32xf32>
    %78 = vector.multi_reduction <add>, %76, %cst_46 [1] : vector<1x16x32xf32> to vector<1x32xf32>
    %79 = vector.shape_cast %78 : vector<1x32xf32> to vector<1x1x32xf32>
    %c0_47 = arith.constant 0 : index
    %c0_48 = arith.constant 0 : index
    %c0_49 = arith.constant 0 : index
    %80 = vector.load %arg9[%c0_47, %c0_48, %c0_49] : memref<1x1x32xf32, #tpu.memory_space<vmem>>, vector<1x1x32xf32>
    tpu.vector_store %arg9[%c0_47, %c0_48, %c0_49], %79 {strides = array<i32>} : memref<1x1x32xf32, #tpu.memory_space<vmem>>, vector<1x1x32xf32>,
    %81 = arith.mulf %76, %76 : vector<1x16x32xf32>
    %cst_50 = arith.constant dense<0.000000e+00> : vector<1x32xf32>
    %82 = vector.multi_reduction <add>, %81, %cst_50 [1] : vector<1x16x32xf32> to vector<1x32xf32>
    %83 = vector.shape_cast %82 : vector<1x32xf32> to vector<1x1x32xf32>
    %c0_51 = arith.constant 0 : index
    %c0_52 = arith.constant 0 : index
    %c0_53 = arith.constant 0 : index
    %84 = vector.load %arg10[%c0_51, %c0_52, %c0_53] : memref<1x1x32xf32, #tpu.memory_space<vmem>>, vector<1x1x32xf32>
    tpu.vector_store %arg10[%c0_51, %c0_52, %c0_53], %83 {strides = array<i32>} : memref<1x1x32xf32, #tpu.memory_space<vmem>>, vector<1x1x32xf32>,
    return
  }
  func.func @transform_0(%arg0: i32, %arg1: i32) -> (i32, i32, i32) {
    %c0_i32 = arith.constant 0 : i32
    %c0_i32_0 = arith.constant 0 : i32
    return %arg0, %arg1, %c0_i32 : i32, i32, i32
  }
  func.func @transform_1(%arg0: i32, %arg1: i32) -> (i32, i32, i32) {
    %c0_i32 = arith.constant 0 : i32
    %c0_i32_0 = arith.constant 0 : i32
    %c0_i32_1 = arith.constant 0 : i32
    return %arg0, %c0_i32, %c0_i32_0 : i32, i32, i32
  }
  func.func @transform_2(%arg0: i32, %arg1: i32) -> (i32, i32, i32) {
    %c0_i32 = arith.constant 0 : i32
    %c0_i32_0 = arith.constant 0 : i32
    %c0_i32_1 = arith.constant 0 : i32
    return %arg0, %c0_i32, %c0_i32_0 : i32, i32, i32
  }
  func.func @transform_3(%arg0: i32, %arg1: i32) -> (i32, i32, i32) {
    %c0_i32 = arith.constant 0 : i32
    %c0_i32_0 = arith.constant 0 : i32
    return %arg0, %arg1, %c0_i32 : i32, i32, i32
  }
  func.func @transform_4(%arg0: i32, %arg1: i32) -> (i32, i32) {
    %c0_i32 = arith.constant 0 : i32
    %c0_i32_0 = arith.constant 0 : i32
    %c0_i32_1 = arith.constant 0 : i32
    return %c0_i32, %c0_i32_0 : i32, i32
  }
  func.func @transform_5(%arg0: i32, %arg1: i32) -> (i32, i32) {
    %c0_i32 = arith.constant 0 : i32
    %c0_i32_0 = arith.constant 0 : i32
    %c0_i32_1 = arith.constant 0 : i32
    return %c0_i32, %c0_i32_0 : i32, i32
  }
  func.func @transform_6(%arg0: i32, %arg1: i32) -> (i32, i32, i32) {
    %c0_i32 = arith.constant 0 : i32
    %c0_i32_0 = arith.constant 0 : i32
    return %arg0, %arg1, %c0_i32 : i32, i32, i32
  }
  func.func @transform_7(%arg0: i32, %arg1: i32) -> (i32, i32, i32) {
    %c1_i32 = arith.constant 1 : i32
    %0 = arith.muli %arg0, %c1_i32 : i32
    %1 = arith.addi %0, %arg1 : i32
    %c0_i32 = arith.constant 0 : i32
    %c0_i32_0 = arith.constant 0 : i32
    %c0_i32_1 = arith.constant 0 : i32
    return %1, %c0_i32, %c0_i32_0 : i32, i32, i32
  }
  func.func @transform_8(%arg0: i32, %arg1: i32) -> (i32, i32, i32) {
    %c1_i32 = arith.constant 1 : i32
    %0 = arith.muli %arg0, %c1_i32 : i32
    %1 = arith.addi %0, %arg1 : i32
    %c0_i32 = arith.constant 0 : i32
    %c0_i32_0 = arith.constant 0 : i32
    %c0_i32_1 = arith.constant 0 : i32
    return %1, %c0_i32, %c0_i32_0 : i32, i32, i32
  }
}

module attributes {stable_mosaic.version = 11 : i64} {
  func.func @_bn2_kernel(%arg0: i32, %arg1: i32, %arg2: memref<1x16x32xf32, #tpu.memory_space<vmem>>, %arg3: memref<1x32xf32, #tpu.memory_space<vmem>>, %arg4: memref<1x32xf32, #tpu.memory_space<vmem>>, %arg5: memref<1x32xf32, #tpu.memory_space<vmem>>, %arg6: memref<1x32xf32, #tpu.memory_space<vmem>>, %arg7: memref<1x16x32xf32, #tpu.memory_space<vmem>>) attributes {dimension_semantics = [#tpu.dimension_semantics<parallel>, #tpu.dimension_semantics<parallel>], iteration_bounds = array<i64: 2, 1>, scalar_prefetch = 0 : i64, scratch_operands = 0 : i64, tpu.core_type = #tpu.core_type<tc>, window_params = [{transform_indices = @transform_0, window_bounds = array<i64: 1, 16, 32>}, {pipeline_mode = #tpu.pipeline_mode<synchronous>, transform_indices = @transform_1, window_bounds = array<i64: 1, 32>}, {pipeline_mode = #tpu.pipeline_mode<synchronous>, transform_indices = @transform_2, window_bounds = array<i64: 1, 32>}, {pipeline_mode = #tpu.pipeline_mode<synchronous>, transform_indices = @transform_3, window_bounds = array<i64: 1, 32>}, {pipeline_mode = #tpu.pipeline_mode<synchronous>, transform_indices = @transform_4, window_bounds = array<i64: 1, 32>}, {transform_indices = @transform_5, window_bounds = array<i64: 1, 16, 32>}]} {
    %c0 = arith.constant 0 : index
    %c0_0 = arith.constant 0 : index
    %c0_1 = arith.constant 0 : index
    %0 = vector.load %arg2[%c0, %c0_0, %c0_1] : memref<1x16x32xf32, #tpu.memory_space<vmem>>, vector<1x16x32xf32>
    %c0_2 = arith.constant 0 : index
    %c0_3 = arith.constant 0 : index
    %1 = vector.load %arg3[%c0_2, %c0_3] : memref<1x32xf32, #tpu.memory_space<vmem>>, vector<1x32xf32>
    %cst = arith.constant 3.125000e-02 : f32
    %2 = vector.broadcast %cst : f32 to vector<1x32xf32>
    %3 = arith.mulf %1, %2 : vector<1x32xf32>
    %c0_4 = arith.constant 0 : index
    %c0_5 = arith.constant 0 : index
    %4 = vector.load %arg4[%c0_4, %c0_5] : memref<1x32xf32, #tpu.memory_space<vmem>>, vector<1x32xf32>
    %cst_6 = arith.constant 3.125000e-02 : f32
    %5 = vector.broadcast %cst_6 : f32 to vector<1x32xf32>
    %6 = arith.mulf %4, %5 : vector<1x32xf32>
    %7 = arith.mulf %3, %3 : vector<1x32xf32>
    %8 = arith.subf %6, %7 : vector<1x32xf32>
    %cst_7 = arith.constant 0.000000e+00 : f32
    %9 = vector.broadcast %cst_7 : f32 to vector<1x32xf32>
    %10 = arith.maximumf %8, %9 : vector<1x32xf32>
    %c0_8 = arith.constant 0 : index
    %c0_9 = arith.constant 0 : index
    %11 = vector.load %arg5[%c0_8, %c0_9] : memref<1x32xf32, #tpu.memory_space<vmem>>, vector<1x32xf32>
    %12 = vector.shape_cast %3 : vector<1x32xf32> to vector<1x1x32xf32>
    %13 = vector.broadcast %12 : vector<1x1x32xf32> to vector<1x16x32xf32>
    %14 = arith.subf %0, %13 : vector<1x16x32xf32>
    %15 = vector.shape_cast %11 : vector<1x32xf32> to vector<1x1x32xf32>
    %16 = vector.broadcast %15 : vector<1x1x32xf32> to vector<1x16x32xf32>
    %17 = arith.mulf %16, %14 : vector<1x16x32xf32>
    %cst_10 = arith.constant 9.99999974E-6 : f32
    %18 = vector.broadcast %cst_10 : f32 to vector<1x32xf32>
    %19 = arith.addf %10, %18 : vector<1x32xf32>
    %20 = math.sqrt %19 : vector<1x32xf32>
    %21 = vector.shape_cast %20 : vector<1x32xf32> to vector<1x1x32xf32>
    %22 = vector.broadcast %21 : vector<1x1x32xf32> to vector<1x16x32xf32>
    %23 = arith.divf %17, %22 : vector<1x16x32xf32>
    %c0_11 = arith.constant 0 : index
    %c0_12 = arith.constant 0 : index
    %24 = vector.load %arg6[%c0_11, %c0_12] : memref<1x32xf32, #tpu.memory_space<vmem>>, vector<1x32xf32>
    %25 = vector.shape_cast %24 : vector<1x32xf32> to vector<1x1x32xf32>
    %26 = vector.broadcast %25 : vector<1x1x32xf32> to vector<1x16x32xf32>
    %27 = arith.addf %23, %26 : vector<1x16x32xf32>
    %c0_13 = arith.constant 0 : index
    %c0_14 = arith.constant 0 : index
    %c0_15 = arith.constant 0 : index
    %28 = vector.load %arg7[%c0_13, %c0_14, %c0_15] : memref<1x16x32xf32, #tpu.memory_space<vmem>>, vector<1x16x32xf32>
    tpu.vector_store %arg7[%c0_13, %c0_14, %c0_15], %27 {strides = array<i32>} : memref<1x16x32xf32, #tpu.memory_space<vmem>>, vector<1x16x32xf32>,
    return
  }
  func.func @transform_0(%arg0: i32, %arg1: i32) -> (i32, i32, i32) {
    %c0_i32 = arith.constant 0 : i32
    %c0_i32_0 = arith.constant 0 : i32
    return %arg0, %arg1, %c0_i32 : i32, i32, i32
  }
  func.func @transform_1(%arg0: i32, %arg1: i32) -> (i32, i32) {
    %c0_i32 = arith.constant 0 : i32
    %c0_i32_0 = arith.constant 0 : i32
    %c0_i32_1 = arith.constant 0 : i32
    return %c0_i32, %c0_i32_0 : i32, i32
  }
  func.func @transform_2(%arg0: i32, %arg1: i32) -> (i32, i32) {
    %c0_i32 = arith.constant 0 : i32
    %c0_i32_0 = arith.constant 0 : i32
    %c0_i32_1 = arith.constant 0 : i32
    return %c0_i32, %c0_i32_0 : i32, i32
  }
  func.func @transform_3(%arg0: i32, %arg1: i32) -> (i32, i32) {
    %c0_i32 = arith.constant 0 : i32
    %c0_i32_0 = arith.constant 0 : i32
    %c0_i32_1 = arith.constant 0 : i32
    return %c0_i32, %c0_i32_0 : i32, i32
  }
  func.func @transform_4(%arg0: i32, %arg1: i32) -> (i32, i32) {
    %c0_i32 = arith.constant 0 : i32
    %c0_i32_0 = arith.constant 0 : i32
    %c0_i32_1 = arith.constant 0 : i32
    return %c0_i32, %c0_i32_0 : i32, i32
  }
  func.func @transform_5(%arg0: i32, %arg1: i32) -> (i32, i32, i32) {
    %c0_i32 = arith.constant 0 : i32
    %c0_i32_0 = arith.constant 0 : i32
    return %arg0, %arg1, %c0_i32 : i32, i32, i32
  }
}

module attributes {stable_mosaic.version = 11 : i64} {
  func.func @_bn1_ffn_kernel(%arg0: i32, %arg1: i32, %arg2: memref<1x16x32xf32, #tpu.memory_space<vmem>>, %arg3: memref<1x32xf32, #tpu.memory_space<vmem>>, %arg4: memref<1x32xf32, #tpu.memory_space<vmem>>, %arg5: memref<1x32xf32, #tpu.memory_space<vmem>>, %arg6: memref<1x32xf32, #tpu.memory_space<vmem>>, %arg7: memref<32x64xbf16, #tpu.memory_space<vmem>>, %arg8: memref<1x64xf32, #tpu.memory_space<vmem>>, %arg9: memref<64x32xbf16, #tpu.memory_space<vmem>>, %arg10: memref<1x32xf32, #tpu.memory_space<vmem>>, %arg11: memref<1x16x32xf32, #tpu.memory_space<vmem>>, %arg12: memref<1x1x32xf32, #tpu.memory_space<vmem>>, %arg13: memref<1x1x32xf32, #tpu.memory_space<vmem>>) attributes {dimension_semantics = [#tpu.dimension_semantics<parallel>, #tpu.dimension_semantics<parallel>], iteration_bounds = array<i64: 2, 1>, scalar_prefetch = 0 : i64, scratch_operands = 0 : i64, tpu.core_type = #tpu.core_type<tc>, window_params = [{transform_indices = @transform_0, window_bounds = array<i64: 1, 16, 32>}, {pipeline_mode = #tpu.pipeline_mode<synchronous>, transform_indices = @transform_1, window_bounds = array<i64: 1, 32>}, {pipeline_mode = #tpu.pipeline_mode<synchronous>, transform_indices = @transform_2, window_bounds = array<i64: 1, 32>}, {pipeline_mode = #tpu.pipeline_mode<synchronous>, transform_indices = @transform_3, window_bounds = array<i64: 1, 32>}, {pipeline_mode = #tpu.pipeline_mode<synchronous>, transform_indices = @transform_4, window_bounds = array<i64: 1, 32>}, {pipeline_mode = #tpu.pipeline_mode<synchronous>, transform_indices = @transform_5, window_bounds = array<i64: 32, 64>}, {pipeline_mode = #tpu.pipeline_mode<synchronous>, transform_indices = @transform_6, window_bounds = array<i64: 1, 64>}, {pipeline_mode = #tpu.pipeline_mode<synchronous>, transform_indices = @transform_7, window_bounds = array<i64: 64, 32>}, {pipeline_mode = #tpu.pipeline_mode<synchronous>, transform_indices = @transform_8, window_bounds = array<i64: 1, 32>}, {transform_indices = @transform_9, window_bounds = array<i64: 1, 16, 32>}, {transform_indices = @transform_10, window_bounds = array<i64: 1, 1, 32>}, {transform_indices = @transform_11, window_bounds = array<i64: 1, 1, 32>}]} {
    %c0 = arith.constant 0 : index
    %c0_0 = arith.constant 0 : index
    %c0_1 = arith.constant 0 : index
    %0 = vector.load %arg2[%c0, %c0_0, %c0_1] : memref<1x16x32xf32, #tpu.memory_space<vmem>>, vector<1x16x32xf32>
    %c0_2 = arith.constant 0 : index
    %c0_3 = arith.constant 0 : index
    %1 = vector.load %arg3[%c0_2, %c0_3] : memref<1x32xf32, #tpu.memory_space<vmem>>, vector<1x32xf32>
    %cst = arith.constant 3.125000e-02 : f32
    %2 = vector.broadcast %cst : f32 to vector<1x32xf32>
    %3 = arith.mulf %1, %2 : vector<1x32xf32>
    %c0_4 = arith.constant 0 : index
    %c0_5 = arith.constant 0 : index
    %4 = vector.load %arg4[%c0_4, %c0_5] : memref<1x32xf32, #tpu.memory_space<vmem>>, vector<1x32xf32>
    %cst_6 = arith.constant 3.125000e-02 : f32
    %5 = vector.broadcast %cst_6 : f32 to vector<1x32xf32>
    %6 = arith.mulf %4, %5 : vector<1x32xf32>
    %7 = arith.mulf %3, %3 : vector<1x32xf32>
    %8 = arith.subf %6, %7 : vector<1x32xf32>
    %cst_7 = arith.constant 0.000000e+00 : f32
    %9 = vector.broadcast %cst_7 : f32 to vector<1x32xf32>
    %10 = arith.maximumf %8, %9 : vector<1x32xf32>
    %c0_8 = arith.constant 0 : index
    %c0_9 = arith.constant 0 : index
    %11 = vector.load %arg5[%c0_8, %c0_9] : memref<1x32xf32, #tpu.memory_space<vmem>>, vector<1x32xf32>
    %12 = vector.shape_cast %3 : vector<1x32xf32> to vector<1x1x32xf32>
    %13 = vector.broadcast %12 : vector<1x1x32xf32> to vector<1x16x32xf32>
    %14 = arith.subf %0, %13 : vector<1x16x32xf32>
    %15 = vector.shape_cast %11 : vector<1x32xf32> to vector<1x1x32xf32>
    %16 = vector.broadcast %15 : vector<1x1x32xf32> to vector<1x16x32xf32>
    %17 = arith.mulf %16, %14 : vector<1x16x32xf32>
    %cst_10 = arith.constant 9.99999974E-6 : f32
    %18 = vector.broadcast %cst_10 : f32 to vector<1x32xf32>
    %19 = arith.addf %10, %18 : vector<1x32xf32>
    %20 = math.sqrt %19 : vector<1x32xf32>
    %21 = vector.shape_cast %20 : vector<1x32xf32> to vector<1x1x32xf32>
    %22 = vector.broadcast %21 : vector<1x1x32xf32> to vector<1x16x32xf32>
    %23 = arith.divf %17, %22 : vector<1x16x32xf32>
    %c0_11 = arith.constant 0 : index
    %c0_12 = arith.constant 0 : index
    %24 = vector.load %arg6[%c0_11, %c0_12] : memref<1x32xf32, #tpu.memory_space<vmem>>, vector<1x32xf32>
    %25 = vector.shape_cast %24 : vector<1x32xf32> to vector<1x1x32xf32>
    %26 = vector.broadcast %25 : vector<1x1x32xf32> to vector<1x16x32xf32>
    %27 = arith.addf %23, %26 : vector<1x16x32xf32>
    %28 = arith.truncf %27 : vector<1x16x32xf32> to vector<1x16x32xbf16>
    %c0_13 = arith.constant 0 : index
    %c0_14 = arith.constant 0 : index
    %29 = vector.load %arg7[%c0_13, %c0_14] : memref<32x64xbf16, #tpu.memory_space<vmem>>, vector<32x64xbf16>
    "tpu.trace_start"() <{level = 10 : i32, message = "bld,dh->blh"}> : () -> ()
    %cst_15 = arith.constant dense<0.000000e+00> : vector<1x16x64xf32>
    %30 = tpu.matmul %28, %29, %cst_15 {dimension_numbers = #tpu.dot_dimension_numbers<[2], [0], [0, 1], [1], [0, 0, 0, 1, 1, 1], [], []>} : vector<1x16x32xbf16>, vector<32x64xbf16>, vector<1x16x64xf32> -> vector<1x16x64xf32>
    "tpu.trace_stop"() : () -> ()
    %c0_16 = arith.constant 0 : index
    %c0_17 = arith.constant 0 : index
    %31 = vector.load %arg8[%c0_16, %c0_17] : memref<1x64xf32, #tpu.memory_space<vmem>>, vector<1x64xf32>
    %32 = vector.shape_cast %31 : vector<1x64xf32> to vector<1x1x64xf32>
    %33 = vector.broadcast %32 : vector<1x1x64xf32> to vector<1x16x64xf32>
    %34 = arith.addf %30, %33 : vector<1x16x64xf32>
    %cst_18 = arith.constant 0.000000e+00 : f32
    %35 = vector.broadcast %cst_18 : f32 to vector<1x16x64xf32>
    %36 = arith.maximumf %34, %35 : vector<1x16x64xf32>
    %37 = arith.truncf %36 : vector<1x16x64xf32> to vector<1x16x64xbf16>
    %c0_19 = arith.constant 0 : index
    %c0_20 = arith.constant 0 : index
    %38 = vector.load %arg9[%c0_19, %c0_20] : memref<64x32xbf16, #tpu.memory_space<vmem>>, vector<64x32xbf16>
    "tpu.trace_start"() <{level = 10 : i32, message = "blh,hd->bld"}> : () -> ()
    %cst_21 = arith.constant dense<0.000000e+00> : vector<1x16x32xf32>
    %39 = tpu.matmul %37, %38, %cst_21 {dimension_numbers = #tpu.dot_dimension_numbers<[2], [0], [0, 1], [1], [0, 0, 0, 1, 1, 1], [], []>} : vector<1x16x64xbf16>, vector<64x32xbf16>, vector<1x16x32xf32> -> vector<1x16x32xf32>
    "tpu.trace_stop"() : () -> ()
    %c0_22 = arith.constant 0 : index
    %c0_23 = arith.constant 0 : index
    %40 = vector.load %arg10[%c0_22, %c0_23] : memref<1x32xf32, #tpu.memory_space<vmem>>, vector<1x32xf32>
    %41 = vector.shape_cast %40 : vector<1x32xf32> to vector<1x1x32xf32>
    %42 = vector.broadcast %41 : vector<1x1x32xf32> to vector<1x16x32xf32>
    %43 = arith.addf %39, %42 : vector<1x16x32xf32>
    %44 = arith.addf %27, %43 : vector<1x16x32xf32>
    %c0_24 = arith.constant 0 : index
    %c0_25 = arith.constant 0 : index
    %c0_26 = arith.constant 0 : index
    %45 = vector.load %arg11[%c0_24, %c0_25, %c0_26] : memref<1x16x32xf32, #tpu.memory_space<vmem>>, vector<1x16x32xf32>
    tpu.vector_store %arg11[%c0_24, %c0_25, %c0_26], %44 {strides = array<i32>} : memref<1x16x32xf32, #tpu.memory_space<vmem>>, vector<1x16x32xf32>,
    %cst_27 = arith.constant dense<0.000000e+00> : vector<1x32xf32>
    %46 = vector.multi_reduction <add>, %44, %cst_27 [1] : vector<1x16x32xf32> to vector<1x32xf32>
    %47 = vector.shape_cast %46 : vector<1x32xf32> to vector<1x1x32xf32>
    %c0_28 = arith.constant 0 : index
    %c0_29 = arith.constant 0 : index
    %c0_30 = arith.constant 0 : index
    %48 = vector.load %arg12[%c0_28, %c0_29, %c0_30] : memref<1x1x32xf32, #tpu.memory_space<vmem>>, vector<1x1x32xf32>
    tpu.vector_store %arg12[%c0_28, %c0_29, %c0_30], %47 {strides = array<i32>} : memref<1x1x32xf32, #tpu.memory_space<vmem>>, vector<1x1x32xf32>,
    %49 = arith.mulf %44, %44 : vector<1x16x32xf32>
    %cst_31 = arith.constant dense<0.000000e+00> : vector<1x32xf32>
    %50 = vector.multi_reduction <add>, %49, %cst_31 [1] : vector<1x16x32xf32> to vector<1x32xf32>
    %51 = vector.shape_cast %50 : vector<1x32xf32> to vector<1x1x32xf32>
    %c0_32 = arith.constant 0 : index
    %c0_33 = arith.constant 0 : index
    %c0_34 = arith.constant 0 : index
    %52 = vector.load %arg13[%c0_32, %c0_33, %c0_34] : memref<1x1x32xf32, #tpu.memory_space<vmem>>, vector<1x1x32xf32>
    tpu.vector_store %arg13[%c0_32, %c0_33, %c0_34], %51 {strides = array<i32>} : memref<1x1x32xf32, #tpu.memory_space<vmem>>, vector<1x1x32xf32>,
    return
  }
  func.func @transform_0(%arg0: i32, %arg1: i32) -> (i32, i32, i32) {
    %c0_i32 = arith.constant 0 : i32
    %c0_i32_0 = arith.constant 0 : i32
    return %arg0, %arg1, %c0_i32 : i32, i32, i32
  }
  func.func @transform_1(%arg0: i32, %arg1: i32) -> (i32, i32) {
    %c0_i32 = arith.constant 0 : i32
    %c0_i32_0 = arith.constant 0 : i32
    %c0_i32_1 = arith.constant 0 : i32
    return %c0_i32, %c0_i32_0 : i32, i32
  }
  func.func @transform_2(%arg0: i32, %arg1: i32) -> (i32, i32) {
    %c0_i32 = arith.constant 0 : i32
    %c0_i32_0 = arith.constant 0 : i32
    %c0_i32_1 = arith.constant 0 : i32
    return %c0_i32, %c0_i32_0 : i32, i32
  }
  func.func @transform_3(%arg0: i32, %arg1: i32) -> (i32, i32) {
    %c0_i32 = arith.constant 0 : i32
    %c0_i32_0 = arith.constant 0 : i32
    %c0_i32_1 = arith.constant 0 : i32
    return %c0_i32, %c0_i32_0 : i32, i32
  }
  func.func @transform_4(%arg0: i32, %arg1: i32) -> (i32, i32) {
    %c0_i32 = arith.constant 0 : i32
    %c0_i32_0 = arith.constant 0 : i32
    %c0_i32_1 = arith.constant 0 : i32
    return %c0_i32, %c0_i32_0 : i32, i32
  }
  func.func @transform_5(%arg0: i32, %arg1: i32) -> (i32, i32) {
    %c0_i32 = arith.constant 0 : i32
    %c0_i32_0 = arith.constant 0 : i32
    %c0_i32_1 = arith.constant 0 : i32
    return %c0_i32, %c0_i32_0 : i32, i32
  }
  func.func @transform_6(%arg0: i32, %arg1: i32) -> (i32, i32) {
    %c0_i32 = arith.constant 0 : i32
    %c0_i32_0 = arith.constant 0 : i32
    %c0_i32_1 = arith.constant 0 : i32
    return %c0_i32, %c0_i32_0 : i32, i32
  }
  func.func @transform_7(%arg0: i32, %arg1: i32) -> (i32, i32) {
    %c0_i32 = arith.constant 0 : i32
    %c0_i32_0 = arith.constant 0 : i32
    %c0_i32_1 = arith.constant 0 : i32
    return %c0_i32, %c0_i32_0 : i32, i32
  }
  func.func @transform_8(%arg0: i32, %arg1: i32) -> (i32, i32) {
    %c0_i32 = arith.constant 0 : i32
    %c0_i32_0 = arith.constant 0 : i32
    %c0_i32_1 = arith.constant 0 : i32
    return %c0_i32, %c0_i32_0 : i32, i32
  }
  func.func @transform_9(%arg0: i32, %arg1: i32) -> (i32, i32, i32) {
    %c0_i32 = arith.constant 0 : i32
    %c0_i32_0 = arith.constant 0 : i32
    return %arg0, %arg1, %c0_i32 : i32, i32, i32
  }
  func.func @transform_10(%arg0: i32, %arg1: i32) -> (i32, i32, i32) {
    %c1_i32 = arith.constant 1 : i32
    %0 = arith.muli %arg0, %c1_i32 : i32
    %1 = arith.addi %0, %arg1 : i32
    %c0_i32 = arith.constant 0 : i32
    %c0_i32_0 = arith.constant 0 : i32
    %c0_i32_1 = arith.constant 0 : i32
    return %1, %c0_i32, %c0_i32_0 : i32, i32, i32
  }
  func.func @transform_11(%arg0: i32, %arg1: i32) -> (i32, i32, i32) {
    %c1_i32 = arith.constant 1 : i32
    %0 = arith.muli %arg0, %c1_i32 : i32
    %1 = arith.addi %0, %arg1 : i32
    %c0_i32 = arith.constant 0 : i32
    %c0_i32_0 = arith.constant 0 : i32
    %c0_i32_1 = arith.constant 0 : i32
    return %1, %c0_i32, %c0_i32_0 : i32, i32, i32
  }
}

</mosaic_0001>

<llo_original>
// kernel: tf_encoder_layer.4
$region0: #{tf_encoder_layer.4}
  #allocation0 [shape = 'u32[]', space=smem, size = 0x4, offset = 0x4, fixed_abs, tag = 'smem constant byte address 0x4 - core index']
  #allocation1 [shape = 'u32[144,128]{1,0:T(1,128)}', space=vmem, size = 0x12000, scoped, tag = 'internal scratch']
  %s0 = inlined_call_operand.vmem [shape: f32[2,16,32], index: 0, kind: input, shape index: {}]
  %s1 = inlined_call_operand.vmem [shape: bf16[32,96], index: 1, kind: input, shape index: {}]
  %s2 = inlined_call_operand.vmem [shape: bf16[2,16,32], index: 2, kind: output, shape index: {0}]
  %s3 = inlined_call_operand.vmem [shape: bf16[2,16,32], index: 3, kind: output, shape index: {1}]
  %s4 = inlined_call_operand.vmem [shape: bf16[2,16,32], index: 4, kind: output, shape index: {2}]
  %5 = xla_tuple %s2, %s3, %s4
  %s6 = sld [smem:[#allocation0]]
  $region57: #{tf_encoder_layer.4} parent=0
    _
  %s8 = ssub.s32 1, %s6
  %s9 = scalar_select 0, %s8, %s6
  loop: start=0, step=1, limit=4
  $region2: #{tf_encoder_layer.4} parent=0 // loop_pre_header
    _
  $region3: #{tf_encoder_layer.4} parent=0 // loop_header
    %s11 = sphi 0, %s15
    %p12 = scmp.ge.s32.totalorder %s11, 4
    %s18 = sphi 0, %s30
    %s19 = sphi 0, %s26
    %s20 = sphi 0, %s18
    %s21 = sphi 0, %s19
    %s22 = sphi 0, %s20
    %s23 = sphi 0, %s21
    %s35 = sphi 0, %s37
    %s38 = sphi 0, %s35
    %s39 = sphi 0, %s38
    %s55 = sphi 0, %s39
    %s59 = sphi 0, %s59
    %s61 = sphi 0, %s59
    %s62 = sphi 0, %s61
    %s76 = sphi 0, %s62
    %s84 = sphi 0, %s86
    %s87 = sphi 0, %s84
    %s88 = sphi 0, %s87
    %s104 = sphi 0, %s88
    %s112 = sphi 0, %s114
    %s115 = sphi 0, %s112
    %s116 = sphi 0, %s115
    %s132 = sphi 0, %s116
    %s140 = sphi 0, %s142
    %s143 = sphi 0, %s140
    %s144 = sphi 0, %s143
    %s160 = sphi 0, %s144
  $region4: #{tf_encoder_layer.4} parent=0 // loop_header_branch
    %14 = sbr.rel (%p12) target = $region8
  $region5: #{tf_encoder_layer.4} parent=0 // loop_body
    %s16 = ssub.s32 %s11, 1
    %s17 = ssub.s32 %s11, 2
    %s24 = sadd.s32 1, %s19
    %p25 = scmp.ge.s32.totalorder %s24, 1
    %s26 = scalar_select %p25, 0, %s24
    %s27 = sadd.s32 1, %s18
    %s28 = scalar_select %p25, %s27, %s18
    %p29 = scmp.ge.s32.totalorder %s28, 2
    %s30 = scalar_select %p29, 0, %s28
    %s31 = ssub.s32 %s18, %s30
    %s32 = ssub.s32 %s19, %s26
    %s33 = sor.u32 %s31, %s32
    %p34 = scmp.eq.s32.totalorder %s33, 0
    %s36 = sadd.s32 %s35, 1
    %s37 = scalar_select %p34, %s35, %s36
    %p40 = pneg %p34
    %p41 = scmp.eq.s32.totalorder %s11, 1
    %p42 = por %p40, %p41
    %p43 = scmp.ne.s32.totalorder %s35, %s38
    %p44 = scmp.eq.s32.totalorder %s11, 0
    %p45 = por %p43, %p44
    %p46 = scmp.ne.s32.totalorder %s35, %s38
    %p47 = scmp.eq.s32.totalorder %s16, 1
    %p48 = por %p46, %p47
    %p49 = scmp.ne.s32.totalorder %s38, %s39
    %p50 = scmp.eq.s32.totalorder %s16, 0
    %p51 = por %p49, %p50
    %p52 = scmp.ne.s32.totalorder %s38, %s39
    %p53 = scmp.eq.s32.totalorder %s17, 1
    %p54 = por %p52, %p53
    %p56 = scmp.ne.s32.totalorder %s39, %s55
    %p57 = scmp.eq.s32.totalorder %s17, 0
    %p58 = por %p56, %p57
    %s60 = sadd.s32 %s59, 1
    %p63 = scmp.eq.s32.totalorder %s11, 1
    %p64 = scmp.ne.s32.totalorder %s59, %s61
    %p65 = scmp.eq.s32.totalorder %s11, 0
    %p66 = por %p64, %p65
    %p67 = scmp.ne.s32.totalorder %s59, %s61
    %p68 = scmp.eq.s32.totalorder %s16, 1
    %p69 = por %p67, %p68
    %p70 = scmp.ne.s32.totalorder %s61, %s62
    %p71 = scmp.eq.s32.totalorder %s16, 0
    %p72 = por %p70, %p71
    %p73 = scmp.ne.s32.totalorder %s61, %s62
    %p74 = scmp.eq.s32.totalorder %s17, 1
    %p75 = por %p73, %p74
    %p77 = scmp.ne.s32.totalorder %s62, %s76
    %p78 = scmp.eq.s32.totalorder %s17, 0
    %p79 = por %p77, %p78
    %s80 = ssub.s32 %s18, %s30
    %s81 = ssub.s32 %s19, %s26
    %s82 = sor.u32 %s80, %s81
    %p83 = scmp.eq.s32.totalorder %s82, 0
    %s85 = sadd.s32 %s84, 1
    %s86 = scalar_select %p83, %s84, %s85
    %p89 = pneg %p83
    %p90 = scmp.eq.s32.totalorder %s11, 1
    %p91 = por %p89, %p90
    %p92 = scmp.ne.s32.totalorder %s84, %s87
    %p93 = scmp.eq.s32.totalorder %s11, 0
    %p94 = por %p92, %p93
    %p95 = scmp.ne.s32.totalorder %s84, %s87
    %p96 = scmp.eq.s32.totalorder %s16, 1
    %p97 = por %p95, %p96
    %p98 = scmp.ne.s32.totalorder %s87, %s88
    %p99 = scmp.eq.s32.totalorder %s16, 0
    %p100 = por %p98, %p99
    %p101 = scmp.ne.s32.totalorder %s87, %s88
    %p102 = scmp.eq.s32.totalorder %s17, 1
    %p103 = por %p101, %p102
    %p105 = scmp.ne.s32.totalorder %s88, %s104
    %p106 = scmp.eq.s32.totalorder %s17, 0
    %p107 = por %p105, %p106
    %s108 = ssub.s32 %s18, %s30
    %s109 = ssub.s32 %s19, %s26
    %s110 = sor.u32 %s108, %s109
    %p111 = scmp.eq.s32.totalorder %s110, 0
    %s113 = sadd.s32 %s112, 1
    %s114 = scalar_select %p111, %s112, %s113
    %p117 = pneg %p111
    %p118 = scmp.eq.s32.totalorder %s11, 1
    %p119 = por %p117, %p118
    %p120 = scmp.ne.s32.totalorder %s112, %s115
    %p121 = scmp.eq.s32.totalorder %s11, 0
    %p122 = por %p120, %p121
    %p123 = scmp.ne.s32.totalorder %s112, %s115
    %p124 = scmp.eq.s32.totalorder %s16, 1
    %p125 = por %p123, %p124
    %p126 = scmp.ne.s32.totalorder %s115, %s116
    %p127 = scmp.eq.s32.totalorder %s16, 0
    %p128 = por %p126, %p127
    %p129 = scmp.ne.s32.totalorder %s115, %s116
    %p130 = scmp.eq.s32.totalorder %s17, 1
    %p131 = por %p129, %p130
    %p133 = scmp.ne.s32.totalorder %s116, %s132
    %p134 = scmp.eq.s32.totalorder %s17, 0
    %p135 = por %p133, %p134
    %s136 = ssub.s32 %s18, %s30
    %s137 = ssub.s32 %s19, %s26
    %s138 = sor.u32 %s136, %s137
    %p139 = scmp.eq.s32.totalorder %s138, 0
    %s141 = sadd.s32 %s140, 1
    %s142 = scalar_select %p139, %s140, %s141
    %p145 = pneg %p139
    %p146 = scmp.eq.s32.totalorder %s11, 1
    %p147 = por %p145, %p146
    %p148 = scmp.ne.s32.totalorder %s140, %s143
    %p149 = scmp.eq.s32.totalorder %s11, 0
    %p150 = por %p148, %p149
    %p151 = scmp.ne.s32.totalorder %s140, %s143
    %p152 = scmp.eq.s32.totalorder %s16, 1
    %p153 = por %p151, %p152
    %p154 = scmp.ne.s32.totalorder %s143, %s144
    %p155 = scmp.eq.s32.totalorder %s16, 0
    %p156 = por %p154, %p155
    %p157 = scmp.ne.s32.totalorder %s143, %s144
    %p158 = scmp.eq.s32.totalorder %s17, 1
    %p159 = por %p157, %p158
    %p161 = scmp.ne.s32.totalorder %s144, %s160
    %p162 = scmp.eq.s32.totalorder %s17, 0
    %p163 = por %p161, %p162
    %p164 = scmp.le.s32.totalorder 1, %s11
    %p165 = scmp.lt.s32.totalorder %s11, 3
    %p166 = pnand %p164, %p165
    %p167 = pneg %p166
    // Predicated region
    $region9: #{tf_encoder_layer.4} parent=5 // pred_check
      _
    $region10: #{tf_encoder_layer.4} parent=5 // pred_check_branch
      %169 = sbr.rel (%p166) target = $region12
    $region11: #{tf_encoder_layer.4} parent=5 // pred_region
      %s170 = ssub.s32 %s11, 1
      // Predicated region
      $region13: #{tf_encoder_layer.4} parent=11 // pred_check
        %p171 = pneg %p72
      $region14: #{tf_encoder_layer.4} parent=11 // pred_check_branch
        %173 = sbr.rel (%p171) target = $region16
      $region15: #{tf_encoder_layer.4} parent=11 // pred_region
        _
      $region16: #{tf_encoder_layer.4} parent=11 // pred_fallthru
        _
    $region12: #{tf_encoder_layer.4} parent=5 // pred_fallthru
      _
    %p174 = scmp.lt.s32.totalorder %s11, 2
    // Predicated region
    $region17: #{tf_encoder_layer.4} parent=5 // pred_check
      %p175 = pneg %p174
    $region18: #{tf_encoder_layer.4} parent=5 // pred_check_branch
      %177 = sbr.rel (%p175) target = $region20
    $region19: #{tf_encoder_layer.4} parent=5 // pred_region
      // Predicated region
      $region21: #{tf_encoder_layer.4} parent=19 // pred_check
        %p178 = pneg %p45
      $region22: #{tf_encoder_layer.4} parent=19 // pred_check_branch
        %180 = sbr.rel (%p178) target = $region24
      $region23: #{tf_encoder_layer.4} parent=19 // pred_region
        %s181 = smul.u32 2, %s19
        %p182 = scmp.lt.s32.totalorder %s18, 1
        %s183 = scalar_select %p182, %s18, 1
        %p184 = scmp.lt.s32.totalorder %s181, 1
        %s185 = scalar_select %p184, %s181, 1
        %s186 = smul.addr %s183, 2
        %s187 = sadd.s32 %s185, %s186
        %s188 = smul.addr %s187, 8
        %s189 = scalar_lea.vmem %s0, %s188
        %s190 = smul.u32 2, %s19
      $region24: #{tf_encoder_layer.4} parent=19 // pred_fallthru
        _
    $region20: #{tf_encoder_layer.4} parent=5 // pred_fallthru
      _
    %p191 = scmp.le.s32.totalorder 1, %s11
    %p192 = scmp.lt.s32.totalorder %s11, 3
    %p193 = pnand %p191, %p192
    %p194 = pneg %p193
    // Predicated region
    $region25: #{tf_encoder_layer.4} parent=5 // pred_check
      _
    $region26: #{tf_encoder_layer.4} parent=5 // pred_check_branch
      %196 = sbr.rel (%p193) target = $region28
    $region27: #{tf_encoder_layer.4} parent=5 // pred_region
      %s197 = ssub.s32 %s11, 1
      %s198 = smul.u32 2, %s21
      %p199 = scmp.lt.s32.totalorder %s20, 1
      %s200 = scalar_select %p199, %s20, 1
      %p201 = scmp.lt.s32.totalorder %s198, 1
      %s202 = scalar_select %p201, %s198, 1
      %s203 = smul.addr %s200, 2
      %s204 = sadd.s32 %s202, %s203
      %s205 = smul.addr %s204, 8
      %s206 = scalar_lea.vmem %s0, %s205
      %p207 = pneg %p51
      %p208 = pneg %p48
      %p209 = pneg %p72
      %p210 = pneg %p69
      %p211 = pneg %p100
      %p212 = pneg %p97
      %s213 = smul.u32 2, %s21
      %p214 = scmp.lt.s32.totalorder %s20, 1
      %s215 = scalar_select %p214, %s20, 1
      %p216 = scmp.lt.s32.totalorder %s213, 1
      %s217 = scalar_select %p216, %s213, 1
      %s218 = smul.addr %s215, 2
      %s219 = sadd.s32 %s217, %s218
      %s220 = smul.addr %s219, 4
      %s221 = scalar_lea.vmem %s2, %s220
      %p222 = pneg %p128
      %p223 = pneg %p125
      %s224 = smul.u32 2, %s21
      %p225 = scmp.lt.s32.totalorder %s20, 1
      %s226 = scalar_select %p225, %s20, 1
      %p227 = scmp.lt.s32.totalorder %s224, 1
      %s228 = scalar_select %p227, %s224, 1
      %s229 = smul.addr %s226, 2
      %s230 = sadd.s32 %s228, %s229
      %s231 = smul.addr %s230, 4
      %s232 = scalar_lea.vmem %s3, %s231
      %p233 = pneg %p156
      %p234 = pneg %p153
      %s235 = smul.u32 2, %s21
      %p236 = scmp.lt.s32.totalorder %s20, 1
      %s237 = scalar_select %p236, %s20, 1
      %p238 = scmp.lt.s32.totalorder %s235, 1
      %s239 = scalar_select %p238, %s235, 1
      %s240 = smul.addr %s237, 2
      %s241 = sadd.s32 %s239, %s240
      %s242 = smul.addr %s241, 4
      %s243 = scalar_lea.vmem %s4, %s242
      %s244 = smul.u32 2, %s21
      %p245 = scmp.lt.s32.totalorder %s20, 1
      %s246 = scalar_select %p245, %s20, 1
      %p247 = scmp.lt.s32.totalorder %s244, 1
      %s248 = scalar_select %p247, %s244, 1
      %s249 = smul.addr %s246, 2
      %s250 = sadd.s32 %s248, %s249
      %s251 = smul.addr %s250, 8
      %s252 = scalar_lea.vmem %s0, %s251
      %s253 = smul.u32 2, %s21
      %s254 = smul.u32 2, %s21
      %p255 = scmp.lt.s32.totalorder %s20, 1
      %s256 = scalar_select %p255, %s20, 1
      %p257 = scmp.lt.s32.totalorder %s254, 1
      %s258 = scalar_select %p257, %s254, 1
      %s259 = smul.addr %s256, 2
      %s260 = sadd.s32 %s258, %s259
      %s261 = smul.addr %s260, 4
      %s262 = scalar_lea.vmem %s2, %s261
      %s263 = smul.u32 2, %s21
      %s264 = smul.u32 2, %s21
      %p265 = scmp.lt.s32.totalorder %s20, 1
      %s266 = scalar_select %p265, %s20, 1
      %p267 = scmp.lt.s32.totalorder %s264, 1
      %s268 = scalar_select %p267, %s264, 1
      %s269 = smul.addr %s266, 2
      %s270 = sadd.s32 %s268, %s269
      %s271 = smul.addr %s270, 4
      %s272 = scalar_lea.vmem %s3, %s271
      %s273 = smul.u32 2, %s21
      %s274 = smul.u32 2, %s21
      %p275 = scmp.lt.s32.totalorder %s20, 1
      %s276 = scalar_select %p275, %s20, 1
      %p277 = scmp.lt.s32.totalorder %s274, 1
      %s278 = scalar_select %p277, %s274, 1
      %s279 = smul.addr %s276, 2
      %s280 = sadd.s32 %s278, %s279
      %s281 = smul.addr %s280, 4
      %s282 = scalar_lea.vmem %s4, %s281
      %s283 = smul.u32 2, %s21
      %v285 = vld [vmem:[%s252] sm:$0xff]
      %v286 = vld [vmem:[%s252 + $0x8] sm:$0xff]
      %v287 = vpack.c.bf16 %v286, %v285
      %v288 = vld [vmem:[%s1] sm:$0xf]
      %v289 = vld [vmem:[%s1 + $0x4] sm:$0xf]
      %v290 = vld [vmem:[%s1 + $0x8] sm:$0xf]
      %v291 = vld [vmem:[%s1 + $0xc] sm:$0xf]
      %v296 = vunpack.c.l.b16 %v288
      %v297 = vunpack.c.l.b16 %v289
      %v298 = vunpack.c.l.b16 %v290
      %v299 = vunpack.c.l.b16 %v291
      %v300 = vpack.c.b16 %v297, %v296
      %v301 = vpack.c.b16 %v299, %v298
      %vm304 = vcmask 261120
      %v306 = vsel %vm304, %v287, 0
      %308 = vmatprep.subr.bf16.mxu0 0
      %309 = vmatpush1.bf16.msra.mxu0 0
      %310 = vmatprep.subr.bf16.mxu0 0
      %311 = vmatpush1.bf16.msra.mxu0 0
      %312 = vmatprep.subr.bf16.mxu0 0
      %313 = vmatpush1.bf16.msra.mxu0 0
      %314 = vmatprep.subr.bf16.mxu0 0
      %315 = vmatpush1.bf16.msra.mxu0 0
      %316 = vmatprep.subr.bf16.mxu0 0
      %317 = vmatpush1.bf16.msra.mxu0 0
      %318 = vmatprep.subr.bf16.mxu0 0
      %319 = vmatpush1.bf16.msra.mxu0 0
      %320 = vmatprep.subr.bf16.mxu0 0
      %321 = vmatpush1.bf16.msra.mxu0 %v301
      %322 = vmatprep.subr.bf16.mxu0 0
      %323 = vmatpush1.bf16.msra.mxu0 %v300
      %324 = vmatprep.subr.bf16.mxu0 0
      %325 = vmatpush2.bf16.msra.mxu0 0
      %326 = vmatprep.subr.bf16.mxu0 0
      %327 = vmatpush2.bf16.msra.mxu0 0
      %328 = vmatprep.subr.bf16.mxu0 0
      %329 = vmatpush2.bf16.msra.mxu0 0
      %330 = vmatprep.subr.bf16.mxu0 0
      %331 = vmatpush2.bf16.msra.mxu0 0
      %332 = vmatprep.subr.bf16.mxu0 0
      %333 = vmatpush2.bf16.msra.mxu0 0
      %334 = vmatprep.subr.bf16.mxu0 0
      %335 = vmatpush2.bf16.msra.mxu0 0
      %336 = vmatprep.subr.bf16.mxu0 0
      %337 = vmatpush2.bf16.msra.mxu0 0
      %338 = vmatprep.subr.bf16.mxu0 0
      %339 = vmatpush2.bf16.msra.mxu0 0
      %340 = vmatprep.mubr.bf16.mxu0 0
      %341 = vmatmul.mubr.bf16.gmra.mxu0 %v306
      %v342 = vpop.f32.mrf.mxu0
      %v343 = vadd.f32 0.0, %v342
      %v344 = vpop.f32.mrf.mxu0
      %v345 = vpop.f32.mrf.mxu0
      %v346 = vadd.f32 0.0, %v345
      %v347 = vpop.f32.mrf.mxu0
      %348 = vdwg.mxu0
      %v349 = vmul.f32 %v343, 0.35355338
      %v350 = vmul.f32 %v346, 0.35355338
      %v351 = vpack.c.bf16 %v350, %v349
      %v353 = vunpack.c.l.b16 %v351
      %v354 = vunpack.c.h.b16 %v351
      %v355 = vpack.c.b16 %v353, %v353
      %v356 = vpack.c.b16 %v354, %v354
      %vm359 = vcmask 257024
      %360 = vst.msk [vmem:[%s262] sm:$0xf] %vm359, %v355
      %361 = vst.msk [vmem:[%s262 + $0x4] sm:$0xf] %vm359, %v356
      %v362 = vpack.c.bf16 %v346, %v343
      %v364 = vunpack.c.l.b16 %v362
      %v365 = vunpack.c.h.b16 %v362
      %v366 = vpack.c.b16 %v364, %v364
      %v367 = vpack.c.b16 %v365, %v365
      %368 = vrot.lane.b32.xlu0 %v366, 96
      %v369 = vpop.permute.xlu0 %368
      %370 = vrot.lane.b32.xlu0 %v367, 96
      %v371 = vpop.permute.xlu0 %370
      %374 = vst.msk [vmem:[%s272] sm:$0xf] %vm359, %v369
      %375 = vst.msk [vmem:[%s272 + $0x4] sm:$0xf] %vm359, %v371
      %376 = vrot.lane.b32.xlu0 %v366, 64
      %v377 = vpop.permute.xlu0 %376
      %378 = vrot.lane.b32.xlu0 %v367, 64
      %v379 = vpop.permute.xlu0 %378
      %382 = vst.msk [vmem:[%s282] sm:$0xf] %vm359, %v377
      %383 = vst.msk [vmem:[%s282 + $0x4] sm:$0xf] %vm359, %v379
      %s384 = smul.u32 2, %s21
      %p385 = scmp.lt.s32.totalorder %s20, 1
      %s386 = scalar_select %p385, %s20, 1
      %p387 = scmp.lt.s32.totalorder %s384, 1
      %s388 = scalar_select %p387, %s384, 1
      %s389 = smul.addr %s386, 2
      %s390 = sadd.s32 %s388, %s389
      %s391 = smul.addr %s390, 4
      %s392 = scalar_lea.vmem %s2, %s391
      %s393 = smul.u32 2, %s21
      %p394 = scmp.lt.s32.totalorder %s20, 1
      %s395 = scalar_select %p394, %s20, 1
      %p396 = scmp.lt.s32.totalorder %s393, 1
      %s397 = scalar_select %p396, %s393, 1
      %s398 = smul.addr %s395, 2
      %s399 = sadd.s32 %s397, %s398
      %s400 = smul.addr %s399, 4
      %s401 = scalar_lea.vmem %s3, %s400
      %s402 = smul.u32 2, %s21
      %p403 = scmp.lt.s32.totalorder %s20, 1
      %s404 = scalar_select %p403, %s20, 1
      %p405 = scmp.lt.s32.totalorder %s402, 1
      %s406 = scalar_select %p405, %s402, 1
      %s407 = smul.addr %s404, 2
      %s408 = sadd.s32 %s406, %s407
      %s409 = smul.addr %s408, 4
      %s410 = scalar_lea.vmem %s4, %s409
      // Predicated region
      $region29: #{tf_encoder_layer.4} parent=27 // pred_check
        %p411 = pneg %p97
      $region30: #{tf_encoder_layer.4} parent=27 // pred_check_branch
        %413 = sbr.rel (%p411) target = $region32
      $region31: #{tf_encoder_layer.4} parent=27 // pred_region
        %s414 = smul.u32 2, %s21
      $region32: #{tf_encoder_layer.4} parent=27 // pred_fallthru
        _
      // Predicated region
      $region33: #{tf_encoder_layer.4} parent=27 // pred_check
        %p415 = pneg %p125
      $region34: #{tf_encoder_layer.4} parent=27 // pred_check_branch
        %417 = sbr.rel (%p415) target = $region36
      $region35: #{tf_encoder_layer.4} parent=27 // pred_region
        %s418 = smul.u32 2, %s21
      $region36: #{tf_encoder_layer.4} parent=27 // pred_fallthru
        _
      // Predicated region
      $region37: #{tf_encoder_layer.4} parent=27 // pred_check
        %p419 = pneg %p153
      $region38: #{tf_encoder_layer.4} parent=27 // pred_check_branch
        %421 = sbr.rel (%p419) target = $region40
      $region39: #{tf_encoder_layer.4} parent=27 // pred_region
        %s422 = smul.u32 2, %s21
      $region40: #{tf_encoder_layer.4} parent=27 // pred_fallthru
        _
    $region28: #{tf_encoder_layer.4} parent=5 // pred_fallthru
      _
    %p423 = scmp.le.s32.totalorder 2, %s11
    // Predicated region
    $region41: #{tf_encoder_layer.4} parent=5 // pred_check
      %p424 = pneg %p423
    $region42: #{tf_encoder_layer.4} parent=5 // pred_check_branch
      %426 = sbr.rel (%p424) target = $region44
    $region43: #{tf_encoder_layer.4} parent=5 // pred_region
      %s427 = ssub.s32 %s11, 2
      // Predicated region
      $region45: #{tf_encoder_layer.4} parent=43 // pred_check
        %p428 = pneg %p103
      $region46: #{tf_encoder_layer.4} parent=43 // pred_check_branch
        %430 = sbr.rel (%p428) target = $region48
      $region47: #{tf_encoder_layer.4} parent=43 // pred_region
        %s431 = smul.u32 2, %s23
        %p432 = scmp.lt.s32.totalorder %s22, 1
        %s433 = scalar_select %p432, %s22, 1
        %p434 = scmp.lt.s32.totalorder %s431, 1
        %s435 = scalar_select %p434, %s431, 1
        %s436 = smul.addr %s433, 2
        %s437 = sadd.s32 %s435, %s436
        %s438 = smul.addr %s437, 4
        %s439 = scalar_lea.vmem %s2, %s438
      $region48: #{tf_encoder_layer.4} parent=43 // pred_fallthru
        _
      // Predicated region
      $region49: #{tf_encoder_layer.4} parent=43 // pred_check
        %p440 = pneg %p131
      $region50: #{tf_encoder_layer.4} parent=43 // pred_check_branch
        %442 = sbr.rel (%p440) target = $region52
      $region51: #{tf_encoder_layer.4} parent=43 // pred_region
        %s443 = smul.u32 2, %s23
        %p444 = scmp.lt.s32.totalorder %s22, 1
        %s445 = scalar_select %p444, %s22, 1
        %p446 = scmp.lt.s32.totalorder %s443, 1
        %s447 = scalar_select %p446, %s443, 1
        %s448 = smul.addr %s445, 2
        %s449 = sadd.s32 %s447, %s448
        %s450 = smul.addr %s449, 4
        %s451 = scalar_lea.vmem %s3, %s450
      $region52: #{tf_encoder_layer.4} parent=43 // pred_fallthru
        _
      // Predicated region
      $region53: #{tf_encoder_layer.4} parent=43 // pred_check
        %p452 = pneg %p159
      $region54: #{tf_encoder_layer.4} parent=43 // pred_check_branch
        %454 = sbr.rel (%p452) target = $region56
      $region55: #{tf_encoder_layer.4} parent=43 // pred_region
        %s455 = smul.u32 2, %s23
        %p456 = scmp.lt.s32.totalorder %s22, 1
        %s457 = scalar_select %p456, %s22, 1
        %p458 = scmp.lt.s32.totalorder %s455, 1
        %s459 = scalar_select %p458, %s455, 1
        %s460 = smul.addr %s457, 2
        %s461 = sadd.s32 %s459, %s460
        %s462 = smul.addr %s461, 4
        %s463 = scalar_lea.vmem %s4, %s462
      $region56: #{tf_encoder_layer.4} parent=43 // pred_fallthru
        _
    $region44: #{tf_encoder_layer.4} parent=5 // pred_fallthru
      _
  $region6: #{tf_encoder_layer.4} parent=0 // loop_footer
    %s15 = sadd.s32 1, %s11
  $region7: #{tf_encoder_layer.4} parent=0 // loop_footer_branch
    %10 = sbr.rel target = $region3
  $region8: #{tf_encoder_layer.4} parent=0 // loop_exit
    _

// kernel: tf_encoder_layer.7
$region0: #{tf_encoder_layer.7}
  #allocation0 [shape = 'u32[]', space=smem, size = 0x4, offset = 0x4, fixed_abs, tag = 'smem constant byte address 0x4 - core index']
  #allocation1 [shape = 'u32[144,128]{1,0:T(1,128)}', space=vmem, size = 0x12000, scoped, tag = 'internal scratch']
  %s0 = inlined_call_operand.vmem [shape: f32[2,16,32], index: 0, kind: input, shape index: {}, may-alias: {0,5}]
  %s1 = inlined_call_operand.vmem [shape: f32[1,32], index: 1, kind: input, shape index: {}]
  %s2 = inlined_call_operand.vmem [shape: f32[1,32], index: 2, kind: input, shape index: {}]
  %s3 = inlined_call_operand.vmem [shape: f32[1,32], index: 3, kind: input, shape index: {}]
  %s4 = inlined_call_operand.vmem [shape: f32[1,32], index: 4, kind: input, shape index: {}]
  %s5 = inlined_call_operand.vmem [shape: f32[2,16,32], index: 5, kind: output, shape index: {}, may-alias: {0,5}]
  %s6 = sld [smem:[#allocation0]]
  $region53: #{tf_encoder_layer.7} parent=0
    _
  %s8 = ssub.s32 1, %s6
  %s9 = scalar_select 0, %s8, %s6
  loop: start=0, step=1, limit=4
  $region2: #{tf_encoder_layer.7} parent=0 // loop_pre_header
    _
  $region3: #{tf_encoder_layer.7} parent=0 // loop_header
    %s11 = sphi 0, %s15
    %p12 = scmp.ge.s32.totalorder %s11, 4
    %s18 = sphi 0, %s30
    %s19 = sphi 0, %s26
    %s20 = sphi 0, %s18
    %s21 = sphi 0, %s19
    %s22 = sphi 0, %s20
    %s23 = sphi 0, %s21
    %s35 = sphi 0, %s37
    %s38 = sphi 0, %s35
    %s39 = sphi 0, %s38
    %s55 = sphi 0, %s39
    %s59 = sphi 0, %s59
    %s61 = sphi 0, %s59
    %s62 = sphi 0, %s61
    %s76 = sphi 0, %s62
    %s80 = sphi 0, %s80
    %s82 = sphi 0, %s80
    %s83 = sphi 0, %s82
    %s97 = sphi 0, %s83
    %s101 = sphi 0, %s101
    %s103 = sphi 0, %s101
    %s104 = sphi 0, %s103
    %s118 = sphi 0, %s104
    %s122 = sphi 0, %s122
    %s124 = sphi 0, %s122
    %s125 = sphi 0, %s124
    %s139 = sphi 0, %s125
    %s147 = sphi 0, %s149
    %s150 = sphi 0, %s147
    %s151 = sphi 0, %s150
    %s167 = sphi 0, %s151
  $region4: #{tf_encoder_layer.7} parent=0 // loop_header_branch
    %14 = sbr.rel (%p12) target = $region8
  $region5: #{tf_encoder_layer.7} parent=0 // loop_body
    %s16 = ssub.s32 %s11, 1
    %s17 = ssub.s32 %s11, 2
    %s24 = sadd.s32 1, %s19
    %p25 = scmp.ge.s32.totalorder %s24, 1
    %s26 = scalar_select %p25, 0, %s24
    %s27 = sadd.s32 1, %s18
    %s28 = scalar_select %p25, %s27, %s18
    %p29 = scmp.ge.s32.totalorder %s28, 2
    %s30 = scalar_select %p29, 0, %s28
    %s31 = ssub.s32 %s18, %s30
    %s32 = ssub.s32 %s19, %s26
    %s33 = sor.u32 %s31, %s32
    %p34 = scmp.eq.s32.totalorder %s33, 0
    %s36 = sadd.s32 %s35, 1
    %s37 = scalar_select %p34, %s35, %s36
    %p40 = pneg %p34
    %p41 = scmp.eq.s32.totalorder %s11, 1
    %p42 = por %p40, %p41
    %p43 = scmp.ne.s32.totalorder %s35, %s38
    %p44 = scmp.eq.s32.totalorder %s11, 0
    %p45 = por %p43, %p44
    %p46 = scmp.ne.s32.totalorder %s35, %s38
    %p47 = scmp.eq.s32.totalorder %s16, 1
    %p48 = por %p46, %p47
    %p49 = scmp.ne.s32.totalorder %s38, %s39
    %p50 = scmp.eq.s32.totalorder %s16, 0
    %p51 = por %p49, %p50
    %p52 = scmp.ne.s32.totalorder %s38, %s39
    %p53 = scmp.eq.s32.totalorder %s17, 1
    %p54 = por %p52, %p53
    %p56 = scmp.ne.s32.totalorder %s39, %s55
    %p57 = scmp.eq.s32.totalorder %s17, 0
    %p58 = por %p56, %p57
    %s60 = sadd.s32 %s59, 1
    %p63 = scmp.eq.s32.totalorder %s11, 1
    %p64 = scmp.ne.s32.totalorder %s59, %s61
    %p65 = scmp.eq.s32.totalorder %s11, 0
    %p66 = por %p64, %p65
    %p67 = scmp.ne.s32.totalorder %s59, %s61
    %p68 = scmp.eq.s32.totalorder %s16, 1
    %p69 = por %p67, %p68
    %p70 = scmp.ne.s32.totalorder %s61, %s62
    %p71 = scmp.eq.s32.totalorder %s16, 0
    %p72 = por %p70, %p71
    %p73 = scmp.ne.s32.totalorder %s61, %s62
    %p74 = scmp.eq.s32.totalorder %s17, 1
    %p75 = por %p73, %p74
    %p77 = scmp.ne.s32.totalorder %s62, %s76
    %p78 = scmp.eq.s32.totalorder %s17, 0
    %p79 = por %p77, %p78
    %s81 = sadd.s32 %s80, 1
    %p84 = scmp.eq.s32.totalorder %s11, 1
    %p85 = scmp.ne.s32.totalorder %s80, %s82
    %p86 = scmp.eq.s32.totalorder %s11, 0
    %p87 = por %p85, %p86
    %p88 = scmp.ne.s32.totalorder %s80, %s82
    %p89 = scmp.eq.s32.totalorder %s16, 1
    %p90 = por %p88, %p89
    %p91 = scmp.ne.s32.totalorder %s82, %s83
    %p92 = scmp.eq.s32.totalorder %s16, 0
    %p93 = por %p91, %p92
    %p94 = scmp.ne.s32.totalorder %s82, %s83
    %p95 = scmp.eq.s32.totalorder %s17, 1
    %p96 = por %p94, %p95
    %p98 = scmp.ne.s32.totalorder %s83, %s97
    %p99 = scmp.eq.s32.totalorder %s17, 0
    %p100 = por %p98, %p99
    %s102 = sadd.s32 %s101, 1
    %p105 = scmp.eq.s32.totalorder %s11, 1
    %p106 = scmp.ne.s32.totalorder %s101, %s103
    %p107 = scmp.eq.s32.totalorder %s11, 0
    %p108 = por %p106, %p107
    %p109 = scmp.ne.s32.totalorder %s101, %s103
    %p110 = scmp.eq.s32.totalorder %s16, 1
    %p111 = por %p109, %p110
    %p112 = scmp.ne.s32.totalorder %s103, %s104
    %p113 = scmp.eq.s32.totalorder %s16, 0
    %p114 = por %p112, %p113
    %p115 = scmp.ne.s32.totalorder %s103, %s104
    %p116 = scmp.eq.s32.totalorder %s17, 1
    %p117 = por %p115, %p116
    %p119 = scmp.ne.s32.totalorder %s104, %s118
    %p120 = scmp.eq.s32.totalorder %s17, 0
    %p121 = por %p119, %p120
    %s123 = sadd.s32 %s122, 1
    %p126 = scmp.eq.s32.totalorder %s11, 1
    %p127 = scmp.ne.s32.totalorder %s122, %s124
    %p128 = scmp.eq.s32.totalorder %s11, 0
    %p129 = por %p127, %p128
    %p130 = scmp.ne.s32.totalorder %s122, %s124
    %p131 = scmp.eq.s32.totalorder %s16, 1
    %p132 = por %p130, %p131
    %p133 = scmp.ne.s32.totalorder %s124, %s125
    %p134 = scmp.eq.s32.totalorder %s16, 0
    %p135 = por %p133, %p134
    %p136 = scmp.ne.s32.totalorder %s124, %s125
    %p137 = scmp.eq.s32.totalorder %s17, 1
    %p138 = por %p136, %p137
    %p140 = scmp.ne.s32.totalorder %s125, %s139
    %p141 = scmp.eq.s32.totalorder %s17, 0
    %p142 = por %p140, %p141
    %s143 = ssub.s32 %s18, %s30
    %s144 = ssub.s32 %s19, %s26
    %s145 = sor.u32 %s143, %s144
    %p146 = scmp.eq.s32.totalorder %s145, 0
    %s148 = sadd.s32 %s147, 1
    %s149 = scalar_select %p146, %s147, %s148
    %p152 = pneg %p146
    %p153 = scmp.eq.s32.totalorder %s11, 1
    %p154 = por %p152, %p153
    %p155 = scmp.ne.s32.totalorder %s147, %s150
    %p156 = scmp.eq.s32.totalorder %s11, 0
    %p157 = por %p155, %p156
    %p158 = scmp.ne.s32.totalorder %s147, %s150
    %p159 = scmp.eq.s32.totalorder %s16, 1
    %p160 = por %p158, %p159
    %p161 = scmp.ne.s32.totalorder %s150, %s151
    %p162 = scmp.eq.s32.totalorder %s16, 0
    %p163 = por %p161, %p162
    %p164 = scmp.ne.s32.totalorder %s150, %s151
    %p165 = scmp.eq.s32.totalorder %s17, 1
    %p166 = por %p164, %p165
    %p168 = scmp.ne.s32.totalorder %s151, %s167
    %p169 = scmp.eq.s32.totalorder %s17, 0
    %p170 = por %p168, %p169
    %p171 = scmp.le.s32.totalorder 1, %s11
    %p172 = scmp.lt.s32.totalorder %s11, 3
    %p173 = pnand %p171, %p172
    %p174 = pneg %p173
    // Predicated region
    $region9: #{tf_encoder_layer.7} parent=5 // pred_check
      _
    $region10: #{tf_encoder_layer.7} parent=5 // pred_check_branch
      %176 = sbr.rel (%p173) target = $region12
    $region11: #{tf_encoder_layer.7} parent=5 // pred_region
      %s177 = ssub.s32 %s11, 1
      // Predicated region
      $region13: #{tf_encoder_layer.7} parent=11 // pred_check
        %p178 = pneg %p72
      $region14: #{tf_encoder_layer.7} parent=11 // pred_check_branch
        %180 = sbr.rel (%p178) target = $region16
      $region15: #{tf_encoder_layer.7} parent=11 // pred_region
        _
      $region16: #{tf_encoder_layer.7} parent=11 // pred_fallthru
        _
      // Predicated region
      $region17: #{tf_encoder_layer.7} parent=11 // pred_check
        %p181 = pneg %p93
      $region18: #{tf_encoder_layer.7} parent=11 // pred_check_branch
        %183 = sbr.rel (%p181) target = $region20
      $region19: #{tf_encoder_layer.7} parent=11 // pred_region
        _
      $region20: #{tf_encoder_layer.7} parent=11 // pred_fallthru
        _
      // Predicated region
      $region21: #{tf_encoder_layer.7} parent=11 // pred_check
        %p184 = pneg %p114
      $region22: #{tf_encoder_layer.7} parent=11 // pred_check_branch
        %186 = sbr.rel (%p184) target = $region24
      $region23: #{tf_encoder_layer.7} parent=11 // pred_region
        _
      $region24: #{tf_encoder_layer.7} parent=11 // pred_fallthru
        _
      // Predicated region
      $region25: #{tf_encoder_layer.7} parent=11 // pred_check
        %p187 = pneg %p135
      $region26: #{tf_encoder_layer.7} parent=11 // pred_check_branch
        %189 = sbr.rel (%p187) target = $region28
      $region27: #{tf_encoder_layer.7} parent=11 // pred_region
        _
      $region28: #{tf_encoder_layer.7} parent=11 // pred_fallthru
        _
    $region12: #{tf_encoder_layer.7} parent=5 // pred_fallthru
      _
    %p190 = scmp.lt.s32.totalorder %s11, 2
    // Predicated region
    $region29: #{tf_encoder_layer.7} parent=5 // pred_check
      %p191 = pneg %p190
    $region30: #{tf_encoder_layer.7} parent=5 // pred_check_branch
      %193 = sbr.rel (%p191) target = $region32
    $region31: #{tf_encoder_layer.7} parent=5 // pred_region
      // Predicated region
      $region33: #{tf_encoder_layer.7} parent=31 // pred_check
        %p194 = pneg %p45
      $region34: #{tf_encoder_layer.7} parent=31 // pred_check_branch
        %196 = sbr.rel (%p194) target = $region36
      $region35: #{tf_encoder_layer.7} parent=31 // pred_region
        %s197 = smul.u32 2, %s19
        %p198 = scmp.lt.s32.totalorder %s18, 1
        %s199 = scalar_select %p198, %s18, 1
        %p200 = scmp.lt.s32.totalorder %s197, 1
        %s201 = scalar_select %p200, %s197, 1
        %s202 = smul.addr %s199, 2
        %s203 = sadd.s32 %s201, %s202
        %s204 = smul.addr %s203, 8
        %s205 = scalar_lea.vmem %s0, %s204
        %s206 = smul.u32 2, %s19
      $region36: #{tf_encoder_layer.7} parent=31 // pred_fallthru
        _
    $region32: #{tf_encoder_layer.7} parent=5 // pred_fallthru
      _
    %p207 = scmp.le.s32.totalorder 1, %s11
    %p208 = scmp.lt.s32.totalorder %s11, 3
    %p209 = pnand %p207, %p208
    %p210 = pneg %p209
    // Predicated region
    $region37: #{tf_encoder_layer.7} parent=5 // pred_check
      _
    $region38: #{tf_encoder_layer.7} parent=5 // pred_check_branch
      %212 = sbr.rel (%p209) target = $region40
    $region39: #{tf_encoder_layer.7} parent=5 // pred_region
      %s213 = ssub.s32 %s11, 1
      %s214 = smul.u32 2, %s21
      %p215 = scmp.lt.s32.totalorder %s20, 1
      %s216 = scalar_select %p215, %s20, 1
      %p217 = scmp.lt.s32.totalorder %s214, 1
      %s218 = scalar_select %p217, %s214, 1
      %s219 = smul.addr %s216, 2
      %s220 = sadd.s32 %s218, %s219
      %s221 = smul.addr %s220, 8
      %s222 = scalar_lea.vmem %s0, %s221
      %p223 = pneg %p51
      %p224 = pneg %p48
      %p225 = pneg %p72
      %p226 = pneg %p69
      %p227 = pneg %p93
      %p228 = pneg %p90
      %p229 = pneg %p114
      %p230 = pneg %p111
      %p231 = pneg %p135
      %p232 = pneg %p132
      %p233 = pneg %p163
      %p234 = pneg %p160
      %s235 = smul.u32 2, %s21
      %p236 = scmp.lt.s32.totalorder %s20, 1
      %s237 = scalar_select %p236, %s20, 1
      %p238 = scmp.lt.s32.totalorder %s235, 1
      %s239 = scalar_select %p238, %s235, 1
      %s240 = smul.addr %s237, 2
      %s241 = sadd.s32 %s239, %s240
      %s242 = smul.addr %s241, 8
      %s243 = scalar_lea.vmem %s5, %s242
      %s244 = smul.u32 2, %s21
      %p245 = scmp.lt.s32.totalorder %s20, 1
      %s246 = scalar_select %p245, %s20, 1
      %p247 = scmp.lt.s32.totalorder %s244, 1
      %s248 = scalar_select %p247, %s244, 1
      %s249 = smul.addr %s246, 2
      %s250 = sadd.s32 %s248, %s249
      %s251 = smul.addr %s250, 8
      %s252 = scalar_lea.vmem %s0, %s251
      %s253 = smul.u32 2, %s21
      %s254 = smul.u32 2, %s21
      %p255 = scmp.lt.s32.totalorder %s20, 1
      %s256 = scalar_select %p255, %s20, 1
      %p257 = scmp.lt.s32.totalorder %s254, 1
      %s258 = scalar_select %p257, %s254, 1
      %s259 = smul.addr %s256, 2
      %s260 = sadd.s32 %s258, %s259
      %s261 = smul.addr %s260, 8
      %s262 = scalar_lea.vmem %s5, %s261
      %s263 = smul.u32 2, %s21
      %v264 = vld [vmem:[%s252] sm:$0xff]
      %v265 = vld [vmem:[%s252 + $0x8] sm:$0xff]
      %v266 = vld [vmem:[%s1] sm:$0x1]
      %v267 = vmul.f32 %v266, 0.03125
      %v268 = vld [vmem:[%s2] sm:$0x1]
      %v269 = vmul.f32 %v268, 0.03125
      %v270 = vmul.f32 %v267, %v267
      %v271 = vsub.f32 %v269, %v270
      %v272 = vmax.f32 %v271, 0.0
      %v273 = vld [vmem:[%s3] sm:$0x1]
      %v275 = vlaneseq
      %v276 = vshrl.u32 %v275, 7
      %v277 = vsub.s32 0, %v276
      %v278 = vrot.slane %v267, %v277
      %v280 = vsub.f32 %v264, %v278
      %v281 = vsub.f32 %v265, %v278
      %v283 = vlaneseq
      %v284 = vshrl.u32 %v283, 7
      %v285 = vsub.s32 0, %v284
      %v286 = vrot.slane %v273, %v285
      %v288 = vmul.f32 %v286, %v280
      %v289 = vmul.f32 %v286, %v281
      %v290 = vadd.f32 %v272, 1e-05
      %v291 = vrsqrt.pop %v290
      %v292 = vmul.f32 %v290, %v291
      %vm293 = vcmp.eq.f32.partialorder %v290, inf
      %v294 = vsel %vm293, %v290, %v292
      %vm295 = vcmp.eq.f32.partialorder %v290, 0.0
      %v296 = vand.u32 %v290, 2147483648
      %v297 = vsel %vm295, %v296, %v294
      %v299 = vlaneseq
      %v300 = vshrl.u32 %v299, 7
      %v301 = vsub.s32 0, %v300
      %v302 = vrot.slane %v297, %v301
      %v304 = vrcp.pop %v302
      %v305 = vmul.f32 %v288, %v304
      %v306 = vmul.f32 %v289, %v304
      %v307 = vld [vmem:[%s4] sm:$0x1]
      %v309 = vlaneseq
      %v310 = vshrl.u32 %v309, 7
      %v311 = vsub.s32 0, %v310
      %v312 = vrot.slane %v307, %v311
      %v314 = vadd.f32 %v305, %v312
      %v315 = vadd.f32 %v306, %v312
      %vm316 = vcmask 261120
      %317 = vst.msk [vmem:[%s262] sm:$0xff] %vm316, %v314
      %318 = vst.msk [vmem:[%s262 + $0x8] sm:$0xff] %vm316, %v315
      %s319 = smul.u32 2, %s21
      %p320 = scmp.lt.s32.totalorder %s20, 1
      %s321 = scalar_select %p320, %s20, 1
      %p322 = scmp.lt.s32.totalorder %s319, 1
      %s323 = scalar_select %p322, %s319, 1
      %s324 = smul.addr %s321, 2
      %s325 = sadd.s32 %s323, %s324
      %s326 = smul.addr %s325, 8
      %s327 = scalar_lea.vmem %s5, %s326
      // Predicated region
      $region41: #{tf_encoder_layer.7} parent=39 // pred_check
        %p328 = pneg %p160
      $region42: #{tf_encoder_layer.7} parent=39 // pred_check_branch
        %330 = sbr.rel (%p328) target = $region44
      $region43: #{tf_encoder_layer.7} parent=39 // pred_region
        %s331 = smul.u32 2, %s21
      $region44: #{tf_encoder_layer.7} parent=39 // pred_fallthru
        _
    $region40: #{tf_encoder_layer.7} parent=5 // pred_fallthru
      _
    %p332 = scmp.le.s32.totalorder 2, %s11
    // Predicated region
    $region45: #{tf_encoder_layer.7} parent=5 // pred_check
      %p333 = pneg %p332
    $region46: #{tf_encoder_layer.7} parent=5 // pred_check_branch
      %335 = sbr.rel (%p333) target = $region48
    $region47: #{tf_encoder_layer.7} parent=5 // pred_region
      %s336 = ssub.s32 %s11, 2
      // Predicated region
      $region49: #{tf_encoder_layer.7} parent=47 // pred_check
        %p337 = pneg %p166
      $region50: #{tf_encoder_layer.7} parent=47 // pred_check_branch
        %339 = sbr.rel (%p337) target = $region52
      $region51: #{tf_encoder_layer.7} parent=47 // pred_region
        %s340 = smul.u32 2, %s23
        %p341 = scmp.lt.s32.totalorder %s22, 1
        %s342 = scalar_select %p341, %s22, 1
        %p343 = scmp.lt.s32.totalorder %s340, 1
        %s344 = scalar_select %p343, %s340, 1
        %s345 = smul.addr %s342, 2
        %s346 = sadd.s32 %s344, %s345
        %s347 = smul.addr %s346, 8
        %s348 = scalar_lea.vmem %s5, %s347
      $region52: #{tf_encoder_layer.7} parent=47 // pred_fallthru
        _
    $region48: #{tf_encoder_layer.7} parent=5 // pred_fallthru
      _
  $region6: #{tf_encoder_layer.7} parent=0 // loop_footer
    %s15 = sadd.s32 1, %s11
  $region7: #{tf_encoder_layer.7} parent=0 // loop_footer_branch
    %10 = sbr.rel target = $region3
  $region8: #{tf_encoder_layer.7} parent=0 // loop_exit
    _

// kernel: tf_encoder_layer.6
$region0: #{tf_encoder_layer.6}
  #allocation0 [shape = 'u32[]', space=smem, size = 0x4, offset = 0x4, fixed_abs, tag = 'smem constant byte address 0x4 - core index']
  #allocation1 [shape = 'u32[144,128]{1,0:T(1,128)}', space=vmem, size = 0x12000, scoped, tag = 'internal scratch']
  %s0 = inlined_call_operand.vmem [shape: f32[2,16,32], index: 0, kind: input, shape index: {}]
  %s1 = inlined_call_operand.vmem [shape: f32[1,32], index: 1, kind: input, shape index: {}]
  %s2 = inlined_call_operand.vmem [shape: f32[1,32], index: 2, kind: input, shape index: {}]
  %s3 = inlined_call_operand.vmem [shape: f32[1,32], index: 3, kind: input, shape index: {}]
  %s4 = inlined_call_operand.vmem [shape: f32[1,32], index: 4, kind: input, shape index: {}]
  %s5 = inlined_call_operand.vmem [shape: bf16[32,64], index: 5, kind: input, shape index: {}]
  %s6 = inlined_call_operand.vmem [shape: f32[1,64], index: 6, kind: input, shape index: {}]
  %s7 = inlined_call_operand.vmem [shape: bf16[64,32], index: 7, kind: input, shape index: {}]
  %s8 = inlined_call_operand.vmem [shape: f32[1,32], index: 8, kind: input, shape index: {}]
  %s9 = inlined_call_operand.vmem [shape: f32[2,16,32], index: 9, kind: output, shape index: {0}]
  %s10 = inlined_call_operand.vmem [shape: f32[2,1,32], index: 10, kind: output, shape index: {1}]
  %s11 = inlined_call_operand.vmem [shape: f32[2,1,32], index: 11, kind: output, shape index: {2}]
  %12 = xla_tuple %s9, %s10, %s11
  %s13 = sld [smem:[#allocation0]]
  $region85: #{tf_encoder_layer.6} parent=0
    _
  %s15 = ssub.s32 1, %s13
  %s16 = scalar_select 0, %s15, %s13
  loop: start=0, step=1, limit=4
  $region2: #{tf_encoder_layer.6} parent=0 // loop_pre_header
    _
  $region3: #{tf_encoder_layer.6} parent=0 // loop_header
    %s18 = sphi 0, %s22
    %p19 = scmp.ge.s32.totalorder %s18, 4
    %s25 = sphi 0, %s37
    %s26 = sphi 0, %s33
    %s27 = sphi 0, %s25
    %s28 = sphi 0, %s26
    %s29 = sphi 0, %s27
    %s30 = sphi 0, %s28
    %s42 = sphi 0, %s44
    %s45 = sphi 0, %s42
    %s46 = sphi 0, %s45
    %s62 = sphi 0, %s46
    %s66 = sphi 0, %s66
    %s68 = sphi 0, %s66
    %s69 = sphi 0, %s68
    %s83 = sphi 0, %s69
    %s87 = sphi 0, %s87
    %s89 = sphi 0, %s87
    %s90 = sphi 0, %s89
    %s104 = sphi 0, %s90
    %s108 = sphi 0, %s108
    %s110 = sphi 0, %s108
    %s111 = sphi 0, %s110
    %s125 = sphi 0, %s111
    %s129 = sphi 0, %s129
    %s131 = sphi 0, %s129
    %s132 = sphi 0, %s131
    %s146 = sphi 0, %s132
    %s150 = sphi 0, %s150
    %s152 = sphi 0, %s150
    %s153 = sphi 0, %s152
    %s167 = sphi 0, %s153
    %s171 = sphi 0, %s171
    %s173 = sphi 0, %s171
    %s174 = sphi 0, %s173
    %s188 = sphi 0, %s174
    %s192 = sphi 0, %s192
    %s194 = sphi 0, %s192
    %s195 = sphi 0, %s194
    %s209 = sphi 0, %s195
    %s213 = sphi 0, %s213
    %s215 = sphi 0, %s213
    %s216 = sphi 0, %s215
    %s230 = sphi 0, %s216
    %s238 = sphi 0, %s240
    %s241 = sphi 0, %s238
    %s242 = sphi 0, %s241
    %s258 = sphi 0, %s242
    %s266 = sphi 0, %s268
    %s269 = sphi 0, %s266
    %s270 = sphi 0, %s269
    %s286 = sphi 0, %s270
    %s294 = sphi 0, %s296
    %s297 = sphi 0, %s294
    %s298 = sphi 0, %s297
    %s314 = sphi 0, %s298
  $region4: #{tf_encoder_layer.6} parent=0 // loop_header_branch
    %21 = sbr.rel (%p19) target = $region8
  $region5: #{tf_encoder_layer.6} parent=0 // loop_body
    %s23 = ssub.s32 %s18, 1
    %s24 = ssub.s32 %s18, 2
    %s31 = sadd.s32 1, %s26
    %p32 = scmp.ge.s32.totalorder %s31, 1
    %s33 = scalar_select %p32, 0, %s31
    %s34 = sadd.s32 1, %s25
    %s35 = scalar_select %p32, %s34, %s25
    %p36 = scmp.ge.s32.totalorder %s35, 2
    %s37 = scalar_select %p36, 0, %s35
    %s38 = ssub.s32 %s25, %s37
    %s39 = ssub.s32 %s26, %s33
    %s40 = sor.u32 %s38, %s39
    %p41 = scmp.eq.s32.totalorder %s40, 0
    %s43 = sadd.s32 %s42, 1
    %s44 = scalar_select %p41, %s42, %s43
    %p47 = pneg %p41
    %p48 = scmp.eq.s32.totalorder %s18, 1
    %p49 = por %p47, %p48
    %p50 = scmp.ne.s32.totalorder %s42, %s45
    %p51 = scmp.eq.s32.totalorder %s18, 0
    %p52 = por %p50, %p51
    %p53 = scmp.ne.s32.totalorder %s42, %s45
    %p54 = scmp.eq.s32.totalorder %s23, 1
    %p55 = por %p53, %p54
    %p56 = scmp.ne.s32.totalorder %s45, %s46
    %p57 = scmp.eq.s32.totalorder %s23, 0
    %p58 = por %p56, %p57
    %p59 = scmp.ne.s32.totalorder %s45, %s46
    %p60 = scmp.eq.s32.totalorder %s24, 1
    %p61 = por %p59, %p60
    %p63 = scmp.ne.s32.totalorder %s46, %s62
    %p64 = scmp.eq.s32.totalorder %s24, 0
    %p65 = por %p63, %p64
    %s67 = sadd.s32 %s66, 1
    %p70 = scmp.eq.s32.totalorder %s18, 1
    %p71 = scmp.ne.s32.totalorder %s66, %s68
    %p72 = scmp.eq.s32.totalorder %s18, 0
    %p73 = por %p71, %p72
    %p74 = scmp.ne.s32.totalorder %s66, %s68
    %p75 = scmp.eq.s32.totalorder %s23, 1
    %p76 = por %p74, %p75
    %p77 = scmp.ne.s32.totalorder %s68, %s69
    %p78 = scmp.eq.s32.totalorder %s23, 0
    %p79 = por %p77, %p78
    %p80 = scmp.ne.s32.totalorder %s68, %s69
    %p81 = scmp.eq.s32.totalorder %s24, 1
    %p82 = por %p80, %p81
    %p84 = scmp.ne.s32.totalorder %s69, %s83
    %p85 = scmp.eq.s32.totalorder %s24, 0
    %p86 = por %p84, %p85
    %s88 = sadd.s32 %s87, 1
    %p91 = scmp.eq.s32.totalorder %s18, 1
    %p92 = scmp.ne.s32.totalorder %s87, %s89
    %p93 = scmp.eq.s32.totalorder %s18, 0
    %p94 = por %p92, %p93
    %p95 = scmp.ne.s32.totalorder %s87, %s89
    %p96 = scmp.eq.s32.totalorder %s23, 1
    %p97 = por %p95, %p96
    %p98 = scmp.ne.s32.totalorder %s89, %s90
    %p99 = scmp.eq.s32.totalorder %s23, 0
    %p100 = por %p98, %p99
    %p101 = scmp.ne.s32.totalorder %s89, %s90
    %p102 = scmp.eq.s32.totalorder %s24, 1
    %p103 = por %p101, %p102
    %p105 = scmp.ne.s32.totalorder %s90, %s104
    %p106 = scmp.eq.s32.totalorder %s24, 0
    %p107 = por %p105, %p106
    %s109 = sadd.s32 %s108, 1
    %p112 = scmp.eq.s32.totalorder %s18, 1
    %p113 = scmp.ne.s32.totalorder %s108, %s110
    %p114 = scmp.eq.s32.totalorder %s18, 0
    %p115 = por %p113, %p114
    %p116 = scmp.ne.s32.totalorder %s108, %s110
    %p117 = scmp.eq.s32.totalorder %s23, 1
    %p118 = por %p116, %p117
    %p119 = scmp.ne.s32.totalorder %s110, %s111
    %p120 = scmp.eq.s32.totalorder %s23, 0
    %p121 = por %p119, %p120
    %p122 = scmp.ne.s32.totalorder %s110, %s111
    %p123 = scmp.eq.s32.totalorder %s24, 1
    %p124 = por %p122, %p123
    %p126 = scmp.ne.s32.totalorder %s111, %s125
    %p127 = scmp.eq.s32.totalorder %s24, 0
    %p128 = por %p126, %p127
    %s130 = sadd.s32 %s129, 1
    %p133 = scmp.eq.s32.totalorder %s18, 1
    %p134 = scmp.ne.s32.totalorder %s129, %s131
    %p135 = scmp.eq.s32.totalorder %s18, 0
    %p136 = por %p134, %p135
    %p137 = scmp.ne.s32.totalorder %s129, %s131
    %p138 = scmp.eq.s32.totalorder %s23, 1
    %p139 = por %p137, %p138
    %p140 = scmp.ne.s32.totalorder %s131, %s132
    %p141 = scmp.eq.s32.totalorder %s23, 0
    %p142 = por %p140, %p141
    %p143 = scmp.ne.s32.totalorder %s131, %s132
    %p144 = scmp.eq.s32.totalorder %s24, 1
    %p145 = por %p143, %p144
    %p147 = scmp.ne.s32.totalorder %s132, %s146
    %p148 = scmp.eq.s32.totalorder %s24, 0
    %p149 = por %p147, %p148
    %s151 = sadd.s32 %s150, 1
    %p154 = scmp.eq.s32.totalorder %s18, 1
    %p155 = scmp.ne.s32.totalorder %s150, %s152
    %p156 = scmp.eq.s32.totalorder %s18, 0
    %p157 = por %p155, %p156
    %p158 = scmp.ne.s32.totalorder %s150, %s152
    %p159 = scmp.eq.s32.totalorder %s23, 1
    %p160 = por %p158, %p159
    %p161 = scmp.ne.s32.totalorder %s152, %s153
    %p162 = scmp.eq.s32.totalorder %s23, 0
    %p163 = por %p161, %p162
    %p164 = scmp.ne.s32.totalorder %s152, %s153
    %p165 = scmp.eq.s32.totalorder %s24, 1
    %p166 = por %p164, %p165
    %p168 = scmp.ne.s32.totalorder %s153, %s167
    %p169 = scmp.eq.s32.totalorder %s24, 0
    %p170 = por %p168, %p169
    %s172 = sadd.s32 %s171, 1
    %p175 = scmp.eq.s32.totalorder %s18, 1
    %p176 = scmp.ne.s32.totalorder %s171, %s173
    %p177 = scmp.eq.s32.totalorder %s18, 0
    %p178 = por %p176, %p177
    %p179 = scmp.ne.s32.totalorder %s171, %s173
    %p180 = scmp.eq.s32.totalorder %s23, 1
    %p181 = por %p179, %p180
    %p182 = scmp.ne.s32.totalorder %s173, %s174
    %p183 = scmp.eq.s32.totalorder %s23, 0
    %p184 = por %p182, %p183
    %p185 = scmp.ne.s32.totalorder %s173, %s174
    %p186 = scmp.eq.s32.totalorder %s24, 1
    %p187 = por %p185, %p186
    %p189 = scmp.ne.s32.totalorder %s174, %s188
    %p190 = scmp.eq.s32.totalorder %s24, 0
    %p191 = por %p189, %p190
    %s193 = sadd.s32 %s192, 1
    %p196 = scmp.eq.s32.totalorder %s18, 1
    %p197 = scmp.ne.s32.totalorder %s192, %s194
    %p198 = scmp.eq.s32.totalorder %s18, 0
    %p199 = por %p197, %p198
    %p200 = scmp.ne.s32.totalorder %s192, %s194
    %p201 = scmp.eq.s32.totalorder %s23, 1
    %p202 = por %p200, %p201
    %p203 = scmp.ne.s32.totalorder %s194, %s195
    %p204 = scmp.eq.s32.totalorder %s23, 0
    %p205 = por %p203, %p204
    %p206 = scmp.ne.s32.totalorder %s194, %s195
    %p207 = scmp.eq.s32.totalorder %s24, 1
    %p208 = por %p206, %p207
    %p210 = scmp.ne.s32.totalorder %s195, %s209
    %p211 = scmp.eq.s32.totalorder %s24, 0
    %p212 = por %p210, %p211
    %s214 = sadd.s32 %s213, 1
    %p217 = scmp.eq.s32.totalorder %s18, 1
    %p218 = scmp.ne.s32.totalorder %s213, %s215
    %p219 = scmp.eq.s32.totalorder %s18, 0
    %p220 = por %p218, %p219
    %p221 = scmp.ne.s32.totalorder %s213, %s215
    %p222 = scmp.eq.s32.totalorder %s23, 1
    %p223 = por %p221, %p222
    %p224 = scmp.ne.s32.totalorder %s215, %s216
    %p225 = scmp.eq.s32.totalorder %s23, 0
    %p226 = por %p224, %p225
    %p227 = scmp.ne.s32.totalorder %s215, %s216
    %p228 = scmp.eq.s32.totalorder %s24, 1
    %p229 = por %p227, %p228
    %p231 = scmp.ne.s32.totalorder %s216, %s230
    %p232 = scmp.eq.s32.totalorder %s24, 0
    %p233 = por %p231, %p232
    %s234 = ssub.s32 %s25, %s37
    %s235 = ssub.s32 %s26, %s33
    %s236 = sor.u32 %s234, %s235
    %p237 = scmp.eq.s32.totalorder %s236, 0
    %s239 = sadd.s32 %s238, 1
    %s240 = scalar_select %p237, %s238, %s239
    %p243 = pneg %p237
    %p244 = scmp.eq.s32.totalorder %s18, 1
    %p245 = por %p243, %p244
    %p246 = scmp.ne.s32.totalorder %s238, %s241
    %p247 = scmp.eq.s32.totalorder %s18, 0
    %p248 = por %p246, %p247
    %p249 = scmp.ne.s32.totalorder %s238, %s241
    %p250 = scmp.eq.s32.totalorder %s23, 1
    %p251 = por %p249, %p250
    %p252 = scmp.ne.s32.totalorder %s241, %s242
    %p253 = scmp.eq.s32.totalorder %s23, 0
    %p254 = por %p252, %p253
    %p255 = scmp.ne.s32.totalorder %s241, %s242
    %p256 = scmp.eq.s32.totalorder %s24, 1
    %p257 = por %p255, %p256
    %p259 = scmp.ne.s32.totalorder %s242, %s258
    %p260 = scmp.eq.s32.totalorder %s24, 0
    %p261 = por %p259, %p260
    %s262 = sadd.s32 %s25, %s26
    %s263 = sadd.s32 %s37, %s33
    %s264 = ssub.s32 %s262, %s263
    %p265 = scmp.eq.s32.totalorder %s264, 0
    %s267 = sadd.s32 %s266, 1
    %s268 = scalar_select %p265, %s266, %s267
    %p271 = pneg %p265
    %p272 = scmp.eq.s32.totalorder %s18, 1
    %p273 = por %p271, %p272
    %p274 = scmp.ne.s32.totalorder %s266, %s269
    %p275 = scmp.eq.s32.totalorder %s18, 0
    %p276 = por %p274, %p275
    %p277 = scmp.ne.s32.totalorder %s266, %s269
    %p278 = scmp.eq.s32.totalorder %s23, 1
    %p279 = por %p277, %p278
    %p280 = scmp.ne.s32.totalorder %s269, %s270
    %p281 = scmp.eq.s32.totalorder %s23, 0
    %p282 = por %p280, %p281
    %p283 = scmp.ne.s32.totalorder %s269, %s270
    %p284 = scmp.eq.s32.totalorder %s24, 1
    %p285 = por %p283, %p284
    %p287 = scmp.ne.s32.totalorder %s270, %s286
    %p288 = scmp.eq.s32.totalorder %s24, 0
    %p289 = por %p287, %p288
    %s290 = sadd.s32 %s25, %s26
    %s291 = sadd.s32 %s37, %s33
    %s292 = ssub.s32 %s290, %s291
    %p293 = scmp.eq.s32.totalorder %s292, 0
    %s295 = sadd.s32 %s294, 1
    %s296 = scalar_select %p293, %s294, %s295
    %p299 = pneg %p293
    %p300 = scmp.eq.s32.totalorder %s18, 1
    %p301 = por %p299, %p300
    %p302 = scmp.ne.s32.totalorder %s294, %s297
    %p303 = scmp.eq.s32.totalorder %s18, 0
    %p304 = por %p302, %p303
    %p305 = scmp.ne.s32.totalorder %s294, %s297
    %p306 = scmp.eq.s32.totalorder %s23, 1
    %p307 = por %p305, %p306
    %p308 = scmp.ne.s32.totalorder %s297, %s298
    %p309 = scmp.eq.s32.totalorder %s23, 0
    %p310 = por %p308, %p309
    %p311 = scmp.ne.s32.totalorder %s297, %s298
    %p312 = scmp.eq.s32.totalorder %s24, 1
    %p313 = por %p311, %p312
    %p315 = scmp.ne.s32.totalorder %s298, %s314
    %p316 = scmp.eq.s32.totalorder %s24, 0
    %p317 = por %p315, %p316
    %p318 = scmp.le.s32.totalorder 1, %s18
    %p319 = scmp.lt.s32.totalorder %s18, 3
    %p320 = pnand %p318, %p319
    %p321 = pneg %p320
    // Predicated region
    $region9: #{tf_encoder_layer.6} parent=5 // pred_check
      _
    $region10: #{tf_encoder_layer.6} parent=5 // pred_check_branch
      %323 = sbr.rel (%p320) target = $region12
    $region11: #{tf_encoder_layer.6} parent=5 // pred_region
      %s324 = ssub.s32 %s18, 1
      // Predicated region
      $region13: #{tf_encoder_layer.6} parent=11 // pred_check
        %p325 = pneg %p79
      $region14: #{tf_encoder_layer.6} parent=11 // pred_check_branch
        %327 = sbr.rel (%p325) target = $region16
      $region15: #{tf_encoder_layer.6} parent=11 // pred_region
        _
      $region16: #{tf_encoder_layer.6} parent=11 // pred_fallthru
        _
      // Predicated region
      $region17: #{tf_encoder_layer.6} parent=11 // pred_check
        %p328 = pneg %p100
      $region18: #{tf_encoder_layer.6} parent=11 // pred_check_branch
        %330 = sbr.rel (%p328) target = $region20
      $region19: #{tf_encoder_layer.6} parent=11 // pred_region
        _
      $region20: #{tf_encoder_layer.6} parent=11 // pred_fallthru
        _
      // Predicated region
      $region21: #{tf_encoder_layer.6} parent=11 // pred_check
        %p331 = pneg %p121
      $region22: #{tf_encoder_layer.6} parent=11 // pred_check_branch
        %333 = sbr.rel (%p331) target = $region24
      $region23: #{tf_encoder_layer.6} parent=11 // pred_region
        _
      $region24: #{tf_encoder_layer.6} parent=11 // pred_fallthru
        _
      // Predicated region
      $region25: #{tf_encoder_layer.6} parent=11 // pred_check
        %p334 = pneg %p142
      $region26: #{tf_encoder_layer.6} parent=11 // pred_check_branch
        %336 = sbr.rel (%p334) target = $region28
      $region27: #{tf_encoder_layer.6} parent=11 // pred_region
        _
      $region28: #{tf_encoder_layer.6} parent=11 // pred_fallthru
        _
      // Predicated region
      $region29: #{tf_encoder_layer.6} parent=11 // pred_check
        %p337 = pneg %p163
      $region30: #{tf_encoder_layer.6} parent=11 // pred_check_branch
        %339 = sbr.rel (%p337) target = $region32
      $region31: #{tf_encoder_layer.6} parent=11 // pred_region
        _
      $region32: #{tf_encoder_layer.6} parent=11 // pred_fallthru
        _
      // Predicated region
      $region33: #{tf_encoder_layer.6} parent=11 // pred_check
        %p340 = pneg %p184
      $region34: #{tf_encoder_layer.6} parent=11 // pred_check_branch
        %342 = sbr.rel (%p340) target = $region36
      $region35: #{tf_encoder_layer.6} parent=11 // pred_region
        _
      $region36: #{tf_encoder_layer.6} parent=11 // pred_fallthru
        _
      // Predicated region
      $region37: #{tf_encoder_layer.6} parent=11 // pred_check
        %p343 = pneg %p205
      $region38: #{tf_encoder_layer.6} parent=11 // pred_check_branch
        %345 = sbr.rel (%p343) target = $region40
      $region39: #{tf_encoder_layer.6} parent=11 // pred_region
        _
      $region40: #{tf_encoder_layer.6} parent=11 // pred_fallthru
        _
      // Predicated region
      $region41: #{tf_encoder_layer.6} parent=11 // pred_check
        %p346 = pneg %p226
      $region42: #{tf_encoder_layer.6} parent=11 // pred_check_branch
        %348 = sbr.rel (%p346) target = $region44
      $region43: #{tf_encoder_layer.6} parent=11 // pred_region
        _
      $region44: #{tf_encoder_layer.6} parent=11 // pred_fallthru
        _
    $region12: #{tf_encoder_layer.6} parent=5 // pred_fallthru
      _
    %p349 = scmp.lt.s32.totalorder %s18, 2
    // Predicated region
    $region45: #{tf_encoder_layer.6} parent=5 // pred_check
      %p350 = pneg %p349
    $region46: #{tf_encoder_layer.6} parent=5 // pred_check_branch
      %352 = sbr.rel (%p350) target = $region48
    $region47: #{tf_encoder_layer.6} parent=5 // pred_region
      // Predicated region
      $region49: #{tf_encoder_layer.6} parent=47 // pred_check
        %p353 = pneg %p52
      $region50: #{tf_encoder_layer.6} parent=47 // pred_check_branch
        %355 = sbr.rel (%p353) target = $region52
      $region51: #{tf_encoder_layer.6} parent=47 // pred_region
        %s356 = smul.u32 2, %s26
        %p357 = scmp.lt.s32.totalorder %s25, 1
        %s358 = scalar_select %p357, %s25, 1
        %p359 = scmp.lt.s32.totalorder %s356, 1
        %s360 = scalar_select %p359, %s356, 1
        %s361 = smul.addr %s358, 2
        %s362 = sadd.s32 %s360, %s361
        %s363 = smul.addr %s362, 8
        %s364 = scalar_lea.vmem %s0, %s363
        %s365 = smul.u32 2, %s26
      $region52: #{tf_encoder_layer.6} parent=47 // pred_fallthru
        _
    $region48: #{tf_encoder_layer.6} parent=5 // pred_fallthru
      _
    %p366 = scmp.le.s32.totalorder 1, %s18
    %p367 = scmp.lt.s32.totalorder %s18, 3
    %p368 = pnand %p366, %p367
    %p369 = pneg %p368
    // Predicated region
    $region53: #{tf_encoder_layer.6} parent=5 // pred_check
      _
    $region54: #{tf_encoder_layer.6} parent=5 // pred_check_branch
      %371 = sbr.rel (%p368) target = $region56
    $region55: #{tf_encoder_layer.6} parent=5 // pred_region
      %s372 = ssub.s32 %s18, 1
      %s373 = smul.u32 2, %s28
      %p374 = scmp.lt.s32.totalorder %s27, 1
      %s375 = scalar_select %p374, %s27, 1
      %p376 = scmp.lt.s32.totalorder %s373, 1
      %s377 = scalar_select %p376, %s373, 1
      %s378 = smul.addr %s375, 2
      %s379 = sadd.s32 %s377, %s378
      %s380 = smul.addr %s379, 8
      %s381 = scalar_lea.vmem %s0, %s380
      %p382 = pneg %p58
      %p383 = pneg %p55
      %p384 = pneg %p79
      %p385 = pneg %p76
      %p386 = pneg %p100
      %p387 = pneg %p97
      %p388 = pneg %p121
      %p389 = pneg %p118
      %p390 = pneg %p142
      %p391 = pneg %p139
      %p392 = pneg %p163
      %p393 = pneg %p160
      %p394 = pneg %p184
      %p395 = pneg %p181
      %p396 = pneg %p205
      %p397 = pneg %p202
      %p398 = pneg %p226
      %p399 = pneg %p223
      %p400 = pneg %p254
      %p401 = pneg %p251
      %s402 = smul.u32 2, %s28
      %p403 = scmp.lt.s32.totalorder %s27, 1
      %s404 = scalar_select %p403, %s27, 1
      %p405 = scmp.lt.s32.totalorder %s402, 1
      %s406 = scalar_select %p405, %s402, 1
      %s407 = smul.addr %s404, 2
      %s408 = sadd.s32 %s406, %s407
      %s409 = smul.addr %s408, 8
      %s410 = scalar_lea.vmem %s9, %s409
      %p411 = pneg %p282
      %p412 = pneg %p279
      %s413 = sadd.s32 %s27, %s28
      %p414 = scmp.lt.s32.totalorder %s413, 1
      %s415 = scalar_select %p414, %s413, 1
      %s416 = scalar_lea.vmem %s10, %s415
      %p417 = pneg %p310
      %p418 = pneg %p307
      %s419 = sadd.s32 %s27, %s28
      %p420 = scmp.lt.s32.totalorder %s419, 1
      %s421 = scalar_select %p420, %s419, 1
      %s422 = scalar_lea.vmem %s11, %s421
      %s423 = smul.u32 2, %s28
      %p424 = scmp.lt.s32.totalorder %s27, 1
      %s425 = scalar_select %p424, %s27, 1
      %p426 = scmp.lt.s32.totalorder %s423, 1
      %s427 = scalar_select %p426, %s423, 1
      %s428 = smul.addr %s425, 2
      %s429 = sadd.s32 %s427, %s428
      %s430 = smul.addr %s429, 8
      %s431 = scalar_lea.vmem %s0, %s430
      %s432 = smul.u32 2, %s28
      %s433 = smul.u32 2, %s28
      %p434 = scmp.lt.s32.totalorder %s27, 1
      %s435 = scalar_select %p434, %s27, 1
      %p436 = scmp.lt.s32.totalorder %s433, 1
      %s437 = scalar_select %p436, %s433, 1
      %s438 = smul.addr %s435, 2
      %s439 = sadd.s32 %s437, %s438
      %s440 = smul.addr %s439, 8
      %s441 = scalar_lea.vmem %s9, %s440
      %s442 = smul.u32 2, %s28
      %s443 = sadd.s32 %s27, %s28
      %p444 = scmp.lt.s32.totalorder %s443, 1
      %s445 = scalar_select %p444, %s443, 1
      %s446 = scalar_lea.vmem %s10, %s445
      %s447 = sadd.s32 %s27, %s28
      %s448 = sadd.s32 %s27, %s28
      %p449 = scmp.lt.s32.totalorder %s448, 1
      %s450 = scalar_select %p449, %s448, 1
      %s451 = scalar_lea.vmem %s11, %s450
      %s452 = sadd.s32 %s27, %s28
      %v454 = vld [vmem:[%s431] sm:$0xff]
      %v455 = vld [vmem:[%s431 + $0x8] sm:$0xff]
      %v456 = vld [vmem:[%s1] sm:$0x1]
      %v457 = vmul.f32 %v456, 0.03125
      %v458 = vld [vmem:[%s2] sm:$0x1]
      %v459 = vmul.f32 %v458, 0.03125
      %v460 = vmul.f32 %v457, %v457
      %v461 = vsub.f32 %v459, %v460
      %v462 = vmax.f32 %v461, 0.0
      %v463 = vld [vmem:[%s3] sm:$0x1]
      %v465 = vlaneseq
      %v466 = vshrl.u32 %v465, 7
      %v467 = vsub.s32 0, %v466
      %v468 = vrot.slane %v457, %v467
      %v470 = vsub.f32 %v454, %v468
      %v471 = vsub.f32 %v455, %v468
      %v473 = vlaneseq
      %v474 = vshrl.u32 %v473, 7
      %v475 = vsub.s32 0, %v474
      %v476 = vrot.slane %v463, %v475
      %v478 = vmul.f32 %v476, %v470
      %v479 = vmul.f32 %v476, %v471
      %v480 = vadd.f32 %v462, 1e-05
      %v481 = vrsqrt.pop %v480
      %v482 = vmul.f32 %v480, %v481
      %vm483 = vcmp.eq.f32.partialorder %v480, inf
      %v484 = vsel %vm483, %v480, %v482
      %vm485 = vcmp.eq.f32.partialorder %v480, 0.0
      %v486 = vand.u32 %v480, 2147483648
      %v487 = vsel %vm485, %v486, %v484
      %v489 = vlaneseq
      %v490 = vshrl.u32 %v489, 7
      %v491 = vsub.s32 0, %v490
      %v492 = vrot.slane %v487, %v491
      %v494 = vrcp.pop %v492
      %v495 = vmul.f32 %v478, %v494
      %v496 = vmul.f32 %v479, %v494
      %v497 = vld [vmem:[%s4] sm:$0x1]
      %v499 = vlaneseq
      %v500 = vshrl.u32 %v499, 7
      %v501 = vsub.s32 0, %v500
      %v502 = vrot.slane %v497, %v501
      %v504 = vadd.f32 %v495, %v502
      %v505 = vadd.f32 %v496, %v502
      %v506 = vpack.c.bf16 %v505, %v504
      %v507 = vld [vmem:[%s5] sm:$0xf]
      %v508 = vld [vmem:[%s5 + $0x4] sm:$0xf]
      %v509 = vld [vmem:[%s5 + $0x8] sm:$0xf]
      %v510 = vld [vmem:[%s5 + $0xc] sm:$0xf]
      %v511 = vld [vmem:[%s6] sm:$0x1]
      %v513 = vlaneseq
      %v514 = vshrl.u32 %v513, 7
      %v515 = vsub.s32 0, %v514
      %v516 = vrot.slane %v511, %v515
      %v522 = vunpack.c.l.b16 %v507
      %v523 = vunpack.c.l.b16 %v508
      %v524 = vunpack.c.l.b16 %v509
      %v525 = vunpack.c.l.b16 %v510
      %v526 = vpack.c.b16 %v523, %v522
      %v527 = vpack.c.b16 %v525, %v524
      %vm530 = vcmask 261120
      %v532 = vsel %vm530, %v506, 0
      %534 = vmatprep.subr.bf16.mxu0 0
      %535 = vmatpush1.bf16.msra.mxu0 0
      %536 = vmatprep.subr.bf16.mxu0 0
      %537 = vmatpush1.bf16.msra.mxu0 0
      %538 = vmatprep.subr.bf16.mxu0 0
      %539 = vmatpush1.bf16.msra.mxu0 0
      %540 = vmatprep.subr.bf16.mxu0 0
      %541 = vmatpush1.bf16.msra.mxu0 0
      %542 = vmatprep.subr.bf16.mxu0 0
      %543 = vmatpush1.bf16.msra.mxu0 0
      %544 = vmatprep.subr.bf16.mxu0 0
      %545 = vmatpush1.bf16.msra.mxu0 0
      %546 = vmatprep.subr.bf16.mxu0 0
      %547 = vmatpush1.bf16.msra.mxu0 %v527
      %548 = vmatprep.subr.bf16.mxu0 0
      %549 = vmatpush1.bf16.msra.mxu0 %v526
      %550 = vmatprep.subr.bf16.mxu0 0
      %551 = vmatpush2.bf16.msra.mxu0 0
      %552 = vmatprep.subr.bf16.mxu0 0
      %553 = vmatpush2.bf16.msra.mxu0 0
      %554 = vmatprep.subr.bf16.mxu0 0
      %555 = vmatpush2.bf16.msra.mxu0 0
      %556 = vmatprep.subr.bf16.mxu0 0
      %557 = vmatpush2.bf16.msra.mxu0 0
      %558 = vmatprep.subr.bf16.mxu0 0
      %559 = vmatpush2.bf16.msra.mxu0 0
      %560 = vmatprep.subr.bf16.mxu0 0
      %561 = vmatpush2.bf16.msra.mxu0 0
      %562 = vmatprep.subr.bf16.mxu0 0
      %563 = vmatpush2.bf16.msra.mxu0 0
      %564 = vmatprep.subr.bf16.mxu0 0
      %565 = vmatpush2.bf16.msra.mxu0 0
      %566 = vmatprep.mubr.bf16.mxu0 0
      %567 = vmatmul.mubr.bf16.gmra.mxu0 %v532
      %v568 = vpop.f32.mrf.mxu0
      %v569 = vadd.f32 %v516, %v568
      %v570 = vpop.f32.mrf.mxu0
      %v571 = vpop.f32.mrf.mxu0
      %v572 = vadd.f32 %v516, %v571
      %v573 = vpop.f32.mrf.mxu0
      %574 = vdwg.mxu0
      %v575 = vmax.f32 %v569, 0.0
      %v576 = vmax.f32 %v572, 0.0
      %v577 = vpack.c.bf16 %v576, %v575
      %v578 = vld [vmem:[%s7] sm:$0xf]
      %v579 = vld [vmem:[%s7 + $0x4] sm:$0xf]
      %v580 = vld [vmem:[%s7 + $0x8] sm:$0xf]
      %v581 = vld [vmem:[%s7 + $0xc] sm:$0xf]
      %v582 = vld [vmem:[%s7 + $0x10] sm:$0xf]
      %v583 = vld [vmem:[%s7 + $0x14] sm:$0xf]
      %v584 = vld [vmem:[%s7 + $0x18] sm:$0xf]
      %v585 = vld [vmem:[%s7 + $0x1c] sm:$0xf]
      %v586 = vld [vmem:[%s8] sm:$0x1]
      %v588 = vlaneseq
      %v589 = vshrl.u32 %v588, 7
      %v590 = vsub.s32 0, %v589
      %v591 = vrot.slane %v586, %v590
      %v601 = vunpack.c.l.b16 %v578
      %v602 = vunpack.c.l.b16 %v579
      %v603 = vunpack.c.l.b16 %v580
      %v604 = vunpack.c.l.b16 %v581
      %v605 = vunpack.c.l.b16 %v582
      %v606 = vunpack.c.l.b16 %v583
      %v607 = vunpack.c.l.b16 %v584
      %v608 = vunpack.c.l.b16 %v585
      %v609 = vpack.c.b16 %v602, %v601
      %v610 = vpack.c.b16 %v604, %v603
      %v611 = vpack.c.b16 %v606, %v605
      %v612 = vpack.c.b16 %v608, %v607
      %vm617 = vcmask 523264
      %v619 = vsel %vm617, %v577, 0
      %621 = vmatprep.subr.bf16.mxu0 0
      %622 = vmatpush1.bf16.msra.mxu0 0
      %623 = vmatprep.subr.bf16.mxu0 0
      %624 = vmatpush1.bf16.msra.mxu0 0
      %625 = vmatprep.subr.bf16.mxu0 0
      %626 = vmatpush1.bf16.msra.mxu0 0
      %627 = vmatprep.subr.bf16.mxu0 0
      %628 = vmatpush1.bf16.msra.mxu0 0
      %629 = vmatprep.subr.bf16.mxu0 0
      %630 = vmatpush1.bf16.msra.mxu0 %v612
      %631 = vmatprep.subr.bf16.mxu0 0
      %632 = vmatpush1.bf16.msra.mxu0 %v611
      %633 = vmatprep.subr.bf16.mxu0 0
      %634 = vmatpush1.bf16.msra.mxu0 %v610
      %635 = vmatprep.subr.bf16.mxu0 0
      %636 = vmatpush1.bf16.msra.mxu0 %v609
      %637 = vmatprep.subr.bf16.mxu0 0
      %638 = vmatpush2.bf16.msra.mxu0 0
      %639 = vmatprep.subr.bf16.mxu0 0
      %640 = vmatpush2.bf16.msra.mxu0 0
      %641 = vmatprep.subr.bf16.mxu0 0
      %642 = vmatpush2.bf16.msra.mxu0 0
      %643 = vmatprep.subr.bf16.mxu0 0
      %644 = vmatpush2.bf16.msra.mxu0 0
      %645 = vmatprep.subr.bf16.mxu0 0
      %646 = vmatpush2.bf16.msra.mxu0 0
      %647 = vmatprep.subr.bf16.mxu0 0
      %648 = vmatpush2.bf16.msra.mxu0 0
      %649 = vmatprep.subr.bf16.mxu0 0
      %650 = vmatpush2.bf16.msra.mxu0 0
      %651 = vmatprep.subr.bf16.mxu0 0
      %652 = vmatpush2.bf16.msra.mxu0 0
      %653 = vmatprep.mubr.bf16.mxu0 0
      %654 = vmatmul.mubr.bf16.gmra.mxu0 %v619
      %v655 = vpop.f32.mrf.mxu0
      %v656 = vadd.f32 %v591, %v655
      %v657 = vpop.f32.mrf.mxu0
      %v658 = vpop.f32.mrf.mxu0
      %v659 = vadd.f32 %v591, %v658
      %v660 = vpop.f32.mrf.mxu0
      %661 = vdwg.mxu0
      %v662 = vadd.f32 %v504, %v656
      %v663 = vadd.f32 %v505, %v659
      %664 = vst.msk [vmem:[%s441] sm:$0xff] %vm530, %v662
      %665 = vst.msk [vmem:[%s441 + $0x8] sm:$0xff] %vm530, %v663
      %v666 = vsel %vm530, %v662, 0.0
      %v667 = vsel %vm530, %v663, 0.0
      %v668 = vadd.f32 %v666, %v667
      %v669 = vrot.slane %v668, 4
      %v670 = vadd.f32 %v668, %v669
      %v671 = vrot.slane %v670, 2
      %v672 = vadd.f32 %v670, %v671
      %v673 = vrot.slane %v672, 1
      %v674 = vadd.f32 %v672, %v673
      %vm675 = vcmask 253952
      %676 = vst.msk [vmem:[%s446] sm:$0x1] %vm675, %v674
      %v677 = vmul.f32 %v662, %v662
      %v678 = vmul.f32 %v663, %v663
      %v679 = vsel %vm530, %v677, 0.0
      %v680 = vsel %vm530, %v678, 0.0
      %v681 = vadd.f32 %v679, %v680
      %v682 = vrot.slane %v681, 4
      %v683 = vadd.f32 %v681, %v682
      %v684 = vrot.slane %v683, 2
      %v685 = vadd.f32 %v683, %v684
      %v686 = vrot.slane %v685, 1
      %v687 = vadd.f32 %v685, %v686
      %688 = vst.msk [vmem:[%s451] sm:$0x1] %vm675, %v687
      %s689 = smul.u32 2, %s28
      %p690 = scmp.lt.s32.totalorder %s27, 1
      %s691 = scalar_select %p690, %s27, 1
      %p692 = scmp.lt.s32.totalorder %s689, 1
      %s693 = scalar_select %p692, %s689, 1
      %s694 = smul.addr %s691, 2
      %s695 = sadd.s32 %s693, %s694
      %s696 = smul.addr %s695, 8
      %s697 = scalar_lea.vmem %s9, %s696
      %s698 = sadd.s32 %s27, %s28
      %p699 = scmp.lt.s32.totalorder %s698, 1
      %s700 = scalar_select %p699, %s698, 1
      %s701 = scalar_lea.vmem %s10, %s700
      %s702 = sadd.s32 %s27, %s28
      %p703 = scmp.lt.s32.totalorder %s702, 1
      %s704 = scalar_select %p703, %s702, 1
      %s705 = scalar_lea.vmem %s11, %s704
      // Predicated region
      $region57: #{tf_encoder_layer.6} parent=55 // pred_check
        %p706 = pneg %p251
      $region58: #{tf_encoder_layer.6} parent=55 // pred_check_branch
        %708 = sbr.rel (%p706) target = $region60
      $region59: #{tf_encoder_layer.6} parent=55 // pred_region
        %s709 = smul.u32 2, %s28
      $region60: #{tf_encoder_layer.6} parent=55 // pred_fallthru
        _
      // Predicated region
      $region61: #{tf_encoder_layer.6} parent=55 // pred_check
        %p710 = pneg %p279
      $region62: #{tf_encoder_layer.6} parent=55 // pred_check_branch
        %712 = sbr.rel (%p710) target = $region64
      $region63: #{tf_encoder_layer.6} parent=55 // pred_region
        %s713 = sadd.s32 %s27, %s28
      $region64: #{tf_encoder_layer.6} parent=55 // pred_fallthru
        _
      // Predicated region
      $region65: #{tf_encoder_layer.6} parent=55 // pred_check
        %p714 = pneg %p307
      $region66: #{tf_encoder_layer.6} parent=55 // pred_check_branch
        %716 = sbr.rel (%p714) target = $region68
      $region67: #{tf_encoder_layer.6} parent=55 // pred_region
        %s717 = sadd.s32 %s27, %s28
      $region68: #{tf_encoder_layer.6} parent=55 // pred_fallthru
        _
    $region56: #{tf_encoder_layer.6} parent=5 // pred_fallthru
      _
    %p718 = scmp.le.s32.totalorder 2, %s18
    // Predicated region
    $region69: #{tf_encoder_layer.6} parent=5 // pred_check
      %p719 = pneg %p718
    $region70: #{tf_encoder_layer.6} parent=5 // pred_check_branch
      %721 = sbr.rel (%p719) target = $region72
    $region71: #{tf_encoder_layer.6} parent=5 // pred_region
      %s722 = ssub.s32 %s18, 2
      // Predicated region
      $region73: #{tf_encoder_layer.6} parent=71 // pred_check
        %p723 = pneg %p257
      $region74: #{tf_encoder_layer.6} parent=71 // pred_check_branch
        %725 = sbr.rel (%p723) target = $region76
      $region75: #{tf_encoder_layer.6} parent=71 // pred_region
        %s726 = smul.u32 2, %s30
        %p727 = scmp.lt.s32.totalorder %s29, 1
        %s728 = scalar_select %p727, %s29, 1
        %p729 = scmp.lt.s32.totalorder %s726, 1
        %s730 = scalar_select %p729, %s726, 1
        %s731 = smul.addr %s728, 2
        %s732 = sadd.s32 %s730, %s731
        %s733 = smul.addr %s732, 8
        %s734 = scalar_lea.vmem %s9, %s733
      $region76: #{tf_encoder_layer.6} parent=71 // pred_fallthru
        _
      // Predicated region
      $region77: #{tf_encoder_layer.6} parent=71 // pred_check
        %p735 = pneg %p285
      $region78: #{tf_encoder_layer.6} parent=71 // pred_check_branch
        %737 = sbr.rel (%p735) target = $region80
      $region79: #{tf_encoder_layer.6} parent=71 // pred_region
        %s738 = sadd.s32 %s29, %s30
        %p739 = scmp.lt.s32.totalorder %s738, 1
        %s740 = scalar_select %p739, %s738, 1
        %s741 = scalar_lea.vmem %s10, %s740
      $region80: #{tf_encoder_layer.6} parent=71 // pred_fallthru
        _
      // Predicated region
      $region81: #{tf_encoder_layer.6} parent=71 // pred_check
        %p742 = pneg %p313
      $region82: #{tf_encoder_layer.6} parent=71 // pred_check_branch
        %744 = sbr.rel (%p742) target = $region84
      $region83: #{tf_encoder_layer.6} parent=71 // pred_region
        %s745 = sadd.s32 %s29, %s30
        %p746 = scmp.lt.s32.totalorder %s745, 1
        %s747 = scalar_select %p746, %s745, 1
        %s748 = scalar_lea.vmem %s11, %s747
      $region84: #{tf_encoder_layer.6} parent=71 // pred_fallthru
        _
    $region72: #{tf_encoder_layer.6} parent=5 // pred_fallthru
      _
  $region6: #{tf_encoder_layer.6} parent=0 // loop_footer
    %s22 = sadd.s32 1, %s18
  $region7: #{tf_encoder_layer.6} parent=0 // loop_footer_branch
    %17 = sbr.rel target = $region3
  $region8: #{tf_encoder_layer.6} parent=0 // loop_exit
    _

// kernel: tf_encoder_layer.5
$region0: #{tf_encoder_layer.5}
  #allocation0 [shape = 'u32[]', space=smem, size = 0x4, offset = 0x4, fixed_abs, tag = 'smem constant byte address 0x4 - core index']
  #allocation1 [shape = 'u32[144,128]{1,0:T(1,128)}', space=vmem, size = 0x12000, scoped, tag = 'internal scratch']
  #allocation2 [shape = 'f32[1,16,32]{2,1,0:T(8,128)}', space=vmem, size = 0x2000, scoped, tag = 'scratch operand']
  %s0 = inlined_call_operand.vmem [shape: bf16[2,16,32], index: 0, kind: input, shape index: {}]
  %s1 = inlined_call_operand.vmem [shape: bf16[2,16,32], index: 1, kind: input, shape index: {}]
  %s2 = inlined_call_operand.vmem [shape: bf16[2,16,32], index: 2, kind: input, shape index: {}]
  %s3 = inlined_call_operand.vmem [shape: f32[2,16,32], index: 3, kind: input, shape index: {}]
  %s4 = inlined_call_operand.vmem [shape: bf16[32,32], index: 4, kind: input, shape index: {}]
  %s5 = inlined_call_operand.vmem [shape: f32[1,32], index: 5, kind: input, shape index: {}]
  %s6 = inlined_call_operand.vmem [shape: f32[2,16,32], index: 6, kind: output, shape index: {0}]
  %s7 = inlined_call_operand.vmem [shape: f32[2,1,32], index: 7, kind: output, shape index: {1}]
  %s8 = inlined_call_operand.vmem [shape: f32[2,1,32], index: 8, kind: output, shape index: {2}]
  %9 = xla_tuple %s6, %s7, %s8
  %s10 = sld [smem:[#allocation0]]
  $region73: #{tf_encoder_layer.5} parent=0
    _
  %s12 = ssub.s32 1, %s10
  %s13 = scalar_select 0, %s12, %s10
  loop: start=0, step=1, limit=4
  $region2: #{tf_encoder_layer.5} parent=0 // loop_pre_header
    _
  $region3: #{tf_encoder_layer.5} parent=0 // loop_header
    %s15 = sphi 0, %s19
    %p16 = scmp.ge.s32.totalorder %s15, 4
    %s22 = sphi 0, %s34
    %s23 = sphi 0, %s30
    %s24 = sphi 0, %s22
    %s25 = sphi 0, %s23
    %s26 = sphi 0, %s24
    %s27 = sphi 0, %s25
    %s39 = sphi 0, %s41
    %s42 = sphi 0, %s39
    %s43 = sphi 0, %s42
    %s59 = sphi 0, %s43
    %s65 = sphi 0, %s67
    %s68 = sphi 0, %s65
    %s69 = sphi 0, %s68
    %s85 = sphi 0, %s69
    %s91 = sphi 0, %s93
    %s94 = sphi 0, %s91
    %s95 = sphi 0, %s94
    %s111 = sphi 0, %s95
    %s119 = sphi 0, %s121
    %s122 = sphi 0, %s119
    %s123 = sphi 0, %s122
    %s139 = sphi 0, %s123
    %s143 = sphi 0, %s143
    %s145 = sphi 0, %s143
    %s146 = sphi 0, %s145
    %s160 = sphi 0, %s146
    %s164 = sphi 0, %s164
    %s166 = sphi 0, %s164
    %s167 = sphi 0, %s166
    %s181 = sphi 0, %s167
    %s189 = sphi 0, %s191
    %s192 = sphi 0, %s189
    %s193 = sphi 0, %s192
    %s209 = sphi 0, %s193
    %s217 = sphi 0, %s219
    %s220 = sphi 0, %s217
    %s221 = sphi 0, %s220
    %s237 = sphi 0, %s221
    %s245 = sphi 0, %s247
    %s248 = sphi 0, %s245
    %s249 = sphi 0, %s248
    %s265 = sphi 0, %s249
  $region4: #{tf_encoder_layer.5} parent=0 // loop_header_branch
    %18 = sbr.rel (%p16) target = $region8
  $region5: #{tf_encoder_layer.5} parent=0 // loop_body
    %s20 = ssub.s32 %s15, 1
    %s21 = ssub.s32 %s15, 2
    %s28 = sadd.s32 1, %s23
    %p29 = scmp.ge.s32.totalorder %s28, 1
    %s30 = scalar_select %p29, 0, %s28
    %s31 = sadd.s32 1, %s22
    %s32 = scalar_select %p29, %s31, %s22
    %p33 = scmp.ge.s32.totalorder %s32, 2
    %s34 = scalar_select %p33, 0, %s32
    %s35 = ssub.s32 %s22, %s34
    %s36 = ssub.s32 %s23, %s30
    %s37 = sor.u32 %s35, %s36
    %p38 = scmp.eq.s32.totalorder %s37, 0
    %s40 = sadd.s32 %s39, 1
    %s41 = scalar_select %p38, %s39, %s40
    %p44 = pneg %p38
    %p45 = scmp.eq.s32.totalorder %s15, 1
    %p46 = por %p44, %p45
    %p47 = scmp.ne.s32.totalorder %s39, %s42
    %p48 = scmp.eq.s32.totalorder %s15, 0
    %p49 = por %p47, %p48
    %p50 = scmp.ne.s32.totalorder %s39, %s42
    %p51 = scmp.eq.s32.totalorder %s20, 1
    %p52 = por %p50, %p51
    %p53 = scmp.ne.s32.totalorder %s42, %s43
    %p54 = scmp.eq.s32.totalorder %s20, 0
    %p55 = por %p53, %p54
    %p56 = scmp.ne.s32.totalorder %s42, %s43
    %p57 = scmp.eq.s32.totalorder %s21, 1
    %p58 = por %p56, %p57
    %p60 = scmp.ne.s32.totalorder %s43, %s59
    %p61 = scmp.eq.s32.totalorder %s21, 0
    %p62 = por %p60, %p61
    %s63 = ssub.s32 %s22, %s34
    %p64 = scmp.eq.s32.totalorder %s63, 0
    %s66 = sadd.s32 %s65, 1
    %s67 = scalar_select %p64, %s65, %s66
    %p70 = pneg %p64
    %p71 = scmp.eq.s32.totalorder %s15, 1
    %p72 = por %p70, %p71
    %p73 = scmp.ne.s32.totalorder %s65, %s68
    %p74 = scmp.eq.s32.totalorder %s15, 0
    %p75 = por %p73, %p74
    %p76 = scmp.ne.s32.totalorder %s65, %s68
    %p77 = scmp.eq.s32.totalorder %s20, 1
    %p78 = por %p76, %p77
    %p79 = scmp.ne.s32.totalorder %s68, %s69
    %p80 = scmp.eq.s32.totalorder %s20, 0
    %p81 = por %p79, %p80
    %p82 = scmp.ne.s32.totalorder %s68, %s69
    %p83 = scmp.eq.s32.totalorder %s21, 1
    %p84 = por %p82, %p83
    %p86 = scmp.ne.s32.totalorder %s69, %s85
    %p87 = scmp.eq.s32.totalorder %s21, 0
    %p88 = por %p86, %p87
    %s89 = ssub.s32 %s22, %s34
    %p90 = scmp.eq.s32.totalorder %s89, 0
    %s92 = sadd.s32 %s91, 1
    %s93 = scalar_select %p90, %s91, %s92
    %p96 = pneg %p90
    %p97 = scmp.eq.s32.totalorder %s15, 1
    %p98 = por %p96, %p97
    %p99 = scmp.ne.s32.totalorder %s91, %s94
    %p100 = scmp.eq.s32.totalorder %s15, 0
    %p101 = por %p99, %p100
    %p102 = scmp.ne.s32.totalorder %s91, %s94
    %p103 = scmp.eq.s32.totalorder %s20, 1
    %p104 = por %p102, %p103
    %p105 = scmp.ne.s32.totalorder %s94, %s95
    %p106 = scmp.eq.s32.totalorder %s20, 0
    %p107 = por %p105, %p106
    %p108 = scmp.ne.s32.totalorder %s94, %s95
    %p109 = scmp.eq.s32.totalorder %s21, 1
    %p110 = por %p108, %p109
    %p112 = scmp.ne.s32.totalorder %s95, %s111
    %p113 = scmp.eq.s32.totalorder %s21, 0
    %p114 = por %p112, %p113
    %s115 = ssub.s32 %s22, %s34
    %s116 = ssub.s32 %s23, %s30
    %s117 = sor.u32 %s115, %s116
    %p118 = scmp.eq.s32.totalorder %s117, 0
    %s120 = sadd.s32 %s119, 1
    %s121 = scalar_select %p118, %s119, %s120
    %p124 = pneg %p118
    %p125 = scmp.eq.s32.totalorder %s15, 1
    %p126 = por %p124, %p125
    %p127 = scmp.ne.s32.totalorder %s119, %s122
    %p128 = scmp.eq.s32.totalorder %s15, 0
    %p129 = por %p127, %p128
    %p130 = scmp.ne.s32.totalorder %s119, %s122
    %p131 = scmp.eq.s32.totalorder %s20, 1
    %p132 = por %p130, %p131
    %p133 = scmp.ne.s32.totalorder %s122, %s123
    %p134 = scmp.eq.s32.totalorder %s20, 0
    %p135 = por %p133, %p134
    %p136 = scmp.ne.s32.totalorder %s122, %s123
    %p137 = scmp.eq.s32.totalorder %s21, 1
    %p138 = por %p136, %p137
    %p140 = scmp.ne.s32.totalorder %s123, %s139
    %p141 = scmp.eq.s32.totalorder %s21, 0
    %p142 = por %p140, %p141
    %s144 = sadd.s32 %s143, 1
    %p147 = scmp.eq.s32.totalorder %s15, 1
    %p148 = scmp.ne.s32.totalorder %s143, %s145
    %p149 = scmp.eq.s32.totalorder %s15, 0
    %p150 = por %p148, %p149
    %p151 = scmp.ne.s32.totalorder %s143, %s145
    %p152 = scmp.eq.s32.totalorder %s20, 1
    %p153 = por %p151, %p152
    %p154 = scmp.ne.s32.totalorder %s145, %s146
    %p155 = scmp.eq.s32.totalorder %s20, 0
    %p156 = por %p154, %p155
    %p157 = scmp.ne.s32.totalorder %s145, %s146
    %p158 = scmp.eq.s32.totalorder %s21, 1
    %p159 = por %p157, %p158
    %p161 = scmp.ne.s32.totalorder %s146, %s160
    %p162 = scmp.eq.s32.totalorder %s21, 0
    %p163 = por %p161, %p162
    %s165 = sadd.s32 %s164, 1
    %p168 = scmp.eq.s32.totalorder %s15, 1
    %p169 = scmp.ne.s32.totalorder %s164, %s166
    %p170 = scmp.eq.s32.totalorder %s15, 0
    %p171 = por %p169, %p170
    %p172 = scmp.ne.s32.totalorder %s164, %s166
    %p173 = scmp.eq.s32.totalorder %s20, 1
    %p174 = por %p172, %p173
    %p175 = scmp.ne.s32.totalorder %s166, %s167
    %p176 = scmp.eq.s32.totalorder %s20, 0
    %p177 = por %p175, %p176
    %p178 = scmp.ne.s32.totalorder %s166, %s167
    %p179 = scmp.eq.s32.totalorder %s21, 1
    %p180 = por %p178, %p179
    %p182 = scmp.ne.s32.totalorder %s167, %s181
    %p183 = scmp.eq.s32.totalorder %s21, 0
    %p184 = por %p182, %p183
    %s185 = ssub.s32 %s22, %s34
    %s186 = ssub.s32 %s23, %s30
    %s187 = sor.u32 %s185, %s186
    %p188 = scmp.eq.s32.totalorder %s187, 0
    %s190 = sadd.s32 %s189, 1
    %s191 = scalar_select %p188, %s189, %s190
    %p194 = pneg %p188
    %p195 = scmp.eq.s32.totalorder %s15, 1
    %p196 = por %p194, %p195
    %p197 = scmp.ne.s32.totalorder %s189, %s192
    %p198 = scmp.eq.s32.totalorder %s15, 0
    %p199 = por %p197, %p198
    %p200 = scmp.ne.s32.totalorder %s189, %s192
    %p201 = scmp.eq.s32.totalorder %s20, 1
    %p202 = por %p200, %p201
    %p203 = scmp.ne.s32.totalorder %s192, %s193
    %p204 = scmp.eq.s32.totalorder %s20, 0
    %p205 = por %p203, %p204
    %p206 = scmp.ne.s32.totalorder %s192, %s193
    %p207 = scmp.eq.s32.totalorder %s21, 1
    %p208 = por %p206, %p207
    %p210 = scmp.ne.s32.totalorder %s193, %s209
    %p211 = scmp.eq.s32.totalorder %s21, 0
    %p212 = por %p210, %p211
    %s213 = sadd.s32 %s22, %s23
    %s214 = sadd.s32 %s34, %s30
    %s215 = ssub.s32 %s213, %s214
    %p216 = scmp.eq.s32.totalorder %s215, 0
    %s218 = sadd.s32 %s217, 1
    %s219 = scalar_select %p216, %s217, %s218
    %p222 = pneg %p216
    %p223 = scmp.eq.s32.totalorder %s15, 1
    %p224 = por %p222, %p223
    %p225 = scmp.ne.s32.totalorder %s217, %s220
    %p226 = scmp.eq.s32.totalorder %s15, 0
    %p227 = por %p225, %p226
    %p228 = scmp.ne.s32.totalorder %s217, %s220
    %p229 = scmp.eq.s32.totalorder %s20, 1
    %p230 = por %p228, %p229
    %p231 = scmp.ne.s32.totalorder %s220, %s221
    %p232 = scmp.eq.s32.totalorder %s20, 0
    %p233 = por %p231, %p232
    %p234 = scmp.ne.s32.totalorder %s220, %s221
    %p235 = scmp.eq.s32.totalorder %s21, 1
    %p236 = por %p234, %p235
    %p238 = scmp.ne.s32.totalorder %s221, %s237
    %p239 = scmp.eq.s32.totalorder %s21, 0
    %p240 = por %p238, %p239
    %s241 = sadd.s32 %s22, %s23
    %s242 = sadd.s32 %s34, %s30
    %s243 = ssub.s32 %s241, %s242
    %p244 = scmp.eq.s32.totalorder %s243, 0
    %s246 = sadd.s32 %s245, 1
    %s247 = scalar_select %p244, %s245, %s246
    %p250 = pneg %p244
    %p251 = scmp.eq.s32.totalorder %s15, 1
    %p252 = por %p250, %p251
    %p253 = scmp.ne.s32.totalorder %s245, %s248
    %p254 = scmp.eq.s32.totalorder %s15, 0
    %p255 = por %p253, %p254
    %p256 = scmp.ne.s32.totalorder %s245, %s248
    %p257 = scmp.eq.s32.totalorder %s20, 1
    %p258 = por %p256, %p257
    %p259 = scmp.ne.s32.totalorder %s248, %s249
    %p260 = scmp.eq.s32.totalorder %s20, 0
    %p261 = por %p259, %p260
    %p262 = scmp.ne.s32.totalorder %s248, %s249
    %p263 = scmp.eq.s32.totalorder %s21, 1
    %p264 = por %p262, %p263
    %p266 = scmp.ne.s32.totalorder %s249, %s265
    %p267 = scmp.eq.s32.totalorder %s21, 0
    %p268 = por %p266, %p267
    %p269 = scmp.le.s32.totalorder 1, %s15
    %p270 = scmp.lt.s32.totalorder %s15, 3
    %p271 = pnand %p269, %p270
    %p272 = pneg %p271
    // Predicated region
    $region9: #{tf_encoder_layer.5} parent=5 // pred_check
      _
    $region10: #{tf_encoder_layer.5} parent=5 // pred_check_branch
      %274 = sbr.rel (%p271) target = $region12
    $region11: #{tf_encoder_layer.5} parent=5 // pred_region
      %s275 = ssub.s32 %s15, 1
      // Predicated region
      $region13: #{tf_encoder_layer.5} parent=11 // pred_check
        %p276 = pneg %p156
      $region14: #{tf_encoder_layer.5} parent=11 // pred_check_branch
        %278 = sbr.rel (%p276) target = $region16
      $region15: #{tf_encoder_layer.5} parent=11 // pred_region
        _
      $region16: #{tf_encoder_layer.5} parent=11 // pred_fallthru
        _
      // Predicated region
      $region17: #{tf_encoder_layer.5} parent=11 // pred_check
        %p279 = pneg %p177
      $region18: #{tf_encoder_layer.5} parent=11 // pred_check_branch
        %281 = sbr.rel (%p279) target = $region20
      $region19: #{tf_encoder_layer.5} parent=11 // pred_region
        _
      $region20: #{tf_encoder_layer.5} parent=11 // pred_fallthru
        _
    $region12: #{tf_encoder_layer.5} parent=5 // pred_fallthru
      _
    %p282 = scmp.lt.s32.totalorder %s15, 2
    // Predicated region
    $region21: #{tf_encoder_layer.5} parent=5 // pred_check
      %p283 = pneg %p282
    $region22: #{tf_encoder_layer.5} parent=5 // pred_check_branch
      %285 = sbr.rel (%p283) target = $region24
    $region23: #{tf_encoder_layer.5} parent=5 // pred_region
      // Predicated region
      $region25: #{tf_encoder_layer.5} parent=23 // pred_check
        %p286 = pneg %p49
      $region26: #{tf_encoder_layer.5} parent=23 // pred_check_branch
        %288 = sbr.rel (%p286) target = $region28
      $region27: #{tf_encoder_layer.5} parent=23 // pred_region
        %s289 = smul.u32 2, %s23
        %p290 = scmp.lt.s32.totalorder %s22, 1
        %s291 = scalar_select %p290, %s22, 1
        %p292 = scmp.lt.s32.totalorder %s289, 1
        %s293 = scalar_select %p292, %s289, 1
        %s294 = smul.addr %s291, 2
        %s295 = sadd.s32 %s293, %s294
        %s296 = smul.addr %s295, 4
        %s297 = scalar_lea.vmem %s0, %s296
        %s298 = smul.u32 2, %s23
      $region28: #{tf_encoder_layer.5} parent=23 // pred_fallthru
        _
      // Predicated region
      $region29: #{tf_encoder_layer.5} parent=23 // pred_check
        %p299 = pneg %p75
      $region30: #{tf_encoder_layer.5} parent=23 // pred_check_branch
        %301 = sbr.rel (%p299) target = $region32
      $region31: #{tf_encoder_layer.5} parent=23 // pred_region
        %p302 = scmp.lt.s32.totalorder %s22, 1
        %s303 = scalar_select %p302, %s22, 1
        %s304 = smul.addr %s303, 2
        %s305 = smul.addr %s304, 4
        %s306 = scalar_lea.vmem %s1, %s305
      $region32: #{tf_encoder_layer.5} parent=23 // pred_fallthru
        _
      // Predicated region
      $region33: #{tf_encoder_layer.5} parent=23 // pred_check
        %p307 = pneg %p101
      $region34: #{tf_encoder_layer.5} parent=23 // pred_check_branch
        %309 = sbr.rel (%p307) target = $region36
      $region35: #{tf_encoder_layer.5} parent=23 // pred_region
        %p310 = scmp.lt.s32.totalorder %s22, 1
        %s311 = scalar_select %p310, %s22, 1
        %s312 = smul.addr %s311, 2
        %s313 = smul.addr %s312, 4
        %s314 = scalar_lea.vmem %s2, %s313
      $region36: #{tf_encoder_layer.5} parent=23 // pred_fallthru
        _
      // Predicated region
      $region37: #{tf_encoder_layer.5} parent=23 // pred_check
        %p315 = pneg %p129
      $region38: #{tf_encoder_layer.5} parent=23 // pred_check_branch
        %317 = sbr.rel (%p315) target = $region40
      $region39: #{tf_encoder_layer.5} parent=23 // pred_region
        %s318 = smul.u32 2, %s23
        %p319 = scmp.lt.s32.totalorder %s22, 1
        %s320 = scalar_select %p319, %s22, 1
        %p321 = scmp.lt.s32.totalorder %s318, 1
        %s322 = scalar_select %p321, %s318, 1
        %s323 = smul.addr %s320, 2
        %s324 = sadd.s32 %s322, %s323
        %s325 = smul.addr %s324, 8
        %s326 = scalar_lea.vmem %s3, %s325
        %s327 = smul.u32 2, %s23
      $region40: #{tf_encoder_layer.5} parent=23 // pred_fallthru
        _
    $region24: #{tf_encoder_layer.5} parent=5 // pred_fallthru
      _
    %p328 = scmp.le.s32.totalorder 1, %s15
    %p329 = scmp.lt.s32.totalorder %s15, 3
    %p330 = pnand %p328, %p329
    %p331 = pneg %p330
    // Predicated region
    $region41: #{tf_encoder_layer.5} parent=5 // pred_check
      _
    $region42: #{tf_encoder_layer.5} parent=5 // pred_check_branch
      %333 = sbr.rel (%p330) target = $region44
    $region43: #{tf_encoder_layer.5} parent=5 // pred_region
      %s334 = ssub.s32 %s15, 1
      %s335 = smul.u32 2, %s25
      %p336 = scmp.lt.s32.totalorder %s24, 1
      %s337 = scalar_select %p336, %s24, 1
      %p338 = scmp.lt.s32.totalorder %s335, 1
      %s339 = scalar_select %p338, %s335, 1
      %s340 = smul.addr %s337, 2
      %s341 = sadd.s32 %s339, %s340
      %s342 = smul.addr %s341, 4
      %s343 = scalar_lea.vmem %s0, %s342
      %p344 = pneg %p55
      %p345 = pneg %p52
      %p346 = scmp.lt.s32.totalorder %s24, 1
      %s347 = scalar_select %p346, %s24, 1
      %s348 = smul.addr %s347, 2
      %s349 = smul.addr %s348, 4
      %s350 = scalar_lea.vmem %s1, %s349
      %p351 = pneg %p81
      %p352 = pneg %p78
      %p353 = scmp.lt.s32.totalorder %s24, 1
      %s354 = scalar_select %p353, %s24, 1
      %s355 = smul.addr %s354, 2
      %s356 = smul.addr %s355, 4
      %s357 = scalar_lea.vmem %s2, %s356
      %p358 = pneg %p107
      %p359 = pneg %p104
      %s360 = smul.u32 2, %s25
      %p361 = scmp.lt.s32.totalorder %s24, 1
      %s362 = scalar_select %p361, %s24, 1
      %p363 = scmp.lt.s32.totalorder %s360, 1
      %s364 = scalar_select %p363, %s360, 1
      %s365 = smul.addr %s362, 2
      %s366 = sadd.s32 %s364, %s365
      %s367 = smul.addr %s366, 8
      %s368 = scalar_lea.vmem %s3, %s367
      %p369 = pneg %p135
      %p370 = pneg %p132
      %p371 = pneg %p156
      %p372 = pneg %p153
      %p373 = pneg %p177
      %p374 = pneg %p174
      %p375 = pneg %p205
      %p376 = pneg %p202
      %s377 = smul.u32 2, %s25
      %p378 = scmp.lt.s32.totalorder %s24, 1
      %s379 = scalar_select %p378, %s24, 1
      %p380 = scmp.lt.s32.totalorder %s377, 1
      %s381 = scalar_select %p380, %s377, 1
      %s382 = smul.addr %s379, 2
      %s383 = sadd.s32 %s381, %s382
      %s384 = smul.addr %s383, 8
      %s385 = scalar_lea.vmem %s6, %s384
      %p386 = pneg %p233
      %p387 = pneg %p230
      %s388 = sadd.s32 %s24, %s25
      %p389 = scmp.lt.s32.totalorder %s388, 1
      %s390 = scalar_select %p389, %s388, 1
      %s391 = scalar_lea.vmem %s7, %s390
      %p392 = pneg %p261
      %p393 = pneg %p258
      %s394 = sadd.s32 %s24, %s25
      %p395 = scmp.lt.s32.totalorder %s394, 1
      %s396 = scalar_select %p395, %s394, 1
      %s397 = scalar_lea.vmem %s8, %s396
      %s398 = smul.u32 2, %s25
      %p399 = scmp.lt.s32.totalorder %s24, 1
      %s400 = scalar_select %p399, %s24, 1
      %p401 = scmp.lt.s32.totalorder %s398, 1
      %s402 = scalar_select %p401, %s398, 1
      %s403 = smul.addr %s400, 2
      %s404 = sadd.s32 %s402, %s403
      %s405 = smul.addr %s404, 4
      %s406 = scalar_lea.vmem %s0, %s405
      %s407 = smul.u32 2, %s25
      %p408 = scmp.lt.s32.totalorder %s24, 1
      %s409 = scalar_select %p408, %s24, 1
      %s410 = smul.addr %s409, 2
      %s411 = smul.addr %s410, 4
      %s412 = scalar_lea.vmem %s1, %s411
      %p413 = scmp.lt.s32.totalorder %s24, 1
      %s414 = scalar_select %p413, %s24, 1
      %s415 = smul.addr %s414, 2
      %s416 = smul.addr %s415, 4
      %s417 = scalar_lea.vmem %s2, %s416
      %s418 = smul.u32 2, %s25
      %p419 = scmp.lt.s32.totalorder %s24, 1
      %s420 = scalar_select %p419, %s24, 1
      %p421 = scmp.lt.s32.totalorder %s418, 1
      %s422 = scalar_select %p421, %s418, 1
      %s423 = smul.addr %s420, 2
      %s424 = sadd.s32 %s422, %s423
      %s425 = smul.addr %s424, 8
      %s426 = scalar_lea.vmem %s3, %s425
      %s427 = smul.u32 2, %s25
      %s428 = smul.u32 2, %s25
      %p429 = scmp.lt.s32.totalorder %s24, 1
      %s430 = scalar_select %p429, %s24, 1
      %p431 = scmp.lt.s32.totalorder %s428, 1
      %s432 = scalar_select %p431, %s428, 1
      %s433 = smul.addr %s430, 2
      %s434 = sadd.s32 %s432, %s433
      %s435 = smul.addr %s434, 8
      %s436 = scalar_lea.vmem %s6, %s435
      %s437 = smul.u32 2, %s25
      %s438 = sadd.s32 %s24, %s25
      %p439 = scmp.lt.s32.totalorder %s438, 1
      %s440 = scalar_select %p439, %s438, 1
      %s441 = scalar_lea.vmem %s7, %s440
      %s442 = sadd.s32 %s24, %s25
      %s443 = sadd.s32 %s24, %s25
      %p444 = scmp.lt.s32.totalorder %s443, 1
      %s445 = scalar_select %p444, %s443, 1
      %s446 = scalar_lea.vmem %s8, %s445
      %s447 = sadd.s32 %s24, %s25
      %v449 = vld [vmem:[%s406] sm:$0xf]
      %v450 = vld [vmem:[%s406 + $0x4] sm:$0xf]
      %v451 = vld [vmem:[%s412] sm:$0xf]
      %v452 = vld [vmem:[%s412 + $0x4] sm:$0xf]
      %v453 = vld [vmem:[%s417] sm:$0xf]
      %v454 = vld [vmem:[%s417 + $0x4] sm:$0xf]
      %v457 = vunpack.c.l.b16 %v449
      %v458 = vunpack.c.l.b16 %v450
      %v459 = vpack.c.b16 %v458, %v457
      %v462 = vunpack.c.l.b16 %v451
      %v463 = vunpack.c.l.b16 %v452
      %v464 = vpack.c.b16 %v463, %v462
      %vm465 = vcmask 64512
      %v467 = vsel %vm465, %v459, 0
      %v470 = vsel %vm465, %v464, 0
      %472 = vmatprep.subr.bf16.mxu0 0
      %473 = vmatpush1.bf16.xpose.msra.mxu0 0
      %474 = vmatprep.subr.bf16.mxu0 0
      %475 = vmatpush1.bf16.xpose.msra.mxu0 0
      %476 = vmatprep.subr.bf16.mxu0 0
      %477 = vmatpush1.bf16.xpose.msra.mxu0 0
      %478 = vmatprep.subr.bf16.mxu0 0
      %479 = vmatpush1.bf16.xpose.msra.mxu0 0
      %480 = vmatprep.subr.bf16.mxu0 0
      %481 = vmatpush1.bf16.xpose.msra.mxu0 0
      %482 = vmatprep.subr.bf16.mxu0 0
      %483 = vmatpush1.bf16.xpose.msra.mxu0 0
      %484 = vmatprep.subr.bf16.mxu0 0
      %485 = vmatpush1.bf16.xpose.msra.mxu0 0
      %486 = vmatprep.subr.bf16.mxu0 0
      %487 = vmatpush1.bf16.xpose.msra.mxu0 %v470
      %488 = vmatprep.subr.bf16.mxu0 0
      %489 = vmatpush2.bf16.xpose.msra.mxu0 0
      %490 = vmatprep.subr.bf16.mxu0 0
      %491 = vmatpush2.bf16.xpose.msra.mxu0 0
      %492 = vmatprep.subr.bf16.mxu0 0
      %493 = vmatpush2.bf16.xpose.msra.mxu0 0
      %494 = vmatprep.subr.bf16.mxu0 0
      %495 = vmatpush2.bf16.xpose.msra.mxu0 0
      %496 = vmatprep.subr.bf16.mxu0 0
      %497 = vmatpush2.bf16.xpose.msra.mxu0 0
      %498 = vmatprep.subr.bf16.mxu0 0
      %499 = vmatpush2.bf16.xpose.msra.mxu0 0
      %500 = vmatprep.subr.bf16.mxu0 0
      %501 = vmatpush2.bf16.xpose.msra.mxu0 0
      %502 = vmatprep.subr.bf16.mxu0 0
      %503 = vmatpush2.bf16.xpose.msra.mxu0 0
      %504 = vmatprep.mubr.bf16.mxu0 0
      %505 = vmatmul.mubr.bf16.gmra.mxu0 %v467
      %v506 = vpop.f32.mrf.mxu0
      %v507 = vadd.f32 0.0, %v506
      %v508 = vpop.f32.mrf.mxu0
      %v509 = vpop.f32.mrf.mxu0
      %v510 = vadd.f32 0.0, %v509
      %v511 = vpop.f32.mrf.mxu0
      %512 = vdwg.mxu0
      %vm513 = vcmask 130048
      %v514 = vsel %vm513, %v507, -inf
      %515 = vmax.xlane.f32.xlu0 %v514
      %v516 = vpop.xlane.xlu0 %515
      %v517 = vsel %vm513, %v510, -inf
      %518 = vmax.xlane.f32.xlu0 %v517
      %v519 = vpop.xlane.xlu0 %518
      %v520 = vsub.f32 %v507, %v516
      %v521 = vsub.f32 %v510, %v519
      %v522 = vmul.f32 %v520, 1.442695
      %v523 = vpow.pop %v522
      %v524 = vmul.f32 %v521, 1.442695
      %v525 = vpow.pop %v524
      %v526 = vsel %vm513, %v523, 0.0
      %527 = vadd.xlane.f32.xlu0 %v526
      %v528 = vpop.xlane.xlu0 %527
      %v529 = vsel %vm513, %v525, 0.0
      %530 = vadd.xlane.f32.xlu0 %v529
      %v531 = vpop.xlane.xlu0 %530
      %v532 = vrcp.pop %v528
      %v533 = vmul.f32 %v523, %v532
      %v534 = vrcp.pop %v531
      %v535 = vmul.f32 %v525, %v534
      %v536 = vpack.c.bf16 %v535, %v533
      %v539 = vunpack.c.l.b16 %v453
      %v540 = vunpack.c.l.b16 %v454
      %v541 = vpack.c.b16 %v540, %v539
      %v544 = vsel %vm513, %v536, 0
      %546 = vmatprep.subr.bf16.mxu0 0
      %547 = vmatpush1.bf16.msra.mxu0 0
      %548 = vmatprep.subr.bf16.mxu0 0
      %549 = vmatpush1.bf16.msra.mxu0 0
      %550 = vmatprep.subr.bf16.mxu0 0
      %551 = vmatpush1.bf16.msra.mxu0 0
      %552 = vmatprep.subr.bf16.mxu0 0
      %553 = vmatpush1.bf16.msra.mxu0 0
      %554 = vmatprep.subr.bf16.mxu0 0
      %555 = vmatpush1.bf16.msra.mxu0 0
      %556 = vmatprep.subr.bf16.mxu0 0
      %557 = vmatpush1.bf16.msra.mxu0 0
      %558 = vmatprep.subr.bf16.mxu0 0
      %559 = vmatpush1.bf16.msra.mxu0 0
      %560 = vmatprep.subr.bf16.mxu0 0
      %561 = vmatpush1.bf16.msra.mxu0 %v541
      %562 = vmatprep.subr.bf16.mxu0 0
      %563 = vmatpush2.bf16.msra.mxu0 0
      %564 = vmatprep.subr.bf16.mxu0 0
      %565 = vmatpush2.bf16.msra.mxu0 0
      %566 = vmatprep.subr.bf16.mxu0 0
      %567 = vmatpush2.bf16.msra.mxu0 0
      %568 = vmatprep.subr.bf16.mxu0 0
      %569 = vmatpush2.bf16.msra.mxu0 0
      %570 = vmatprep.subr.bf16.mxu0 0
      %571 = vmatpush2.bf16.msra.mxu0 0
      %572 = vmatprep.subr.bf16.mxu0 0
      %573 = vmatpush2.bf16.msra.mxu0 0
      %574 = vmatprep.subr.bf16.mxu0 0
      %575 = vmatpush2.bf16.msra.mxu0 0
      %576 = vmatprep.subr.bf16.mxu0 0
      %577 = vmatpush2.bf16.msra.mxu0 0
      %578 = vmatprep.mubr.bf16.mxu0 0
      %579 = vmatmul.mubr.bf16.gmra.mxu0 %v544
      %v580 = vpop.f32.mrf.mxu0
      %v581 = vadd.f32 0.0, %v580
      %v582 = vpop.f32.mrf.mxu0
      %v583 = vpop.f32.mrf.mxu0
      %v584 = vadd.f32 0.0, %v583
      %v585 = vpop.f32.mrf.mxu0
      %586 = vdwg.mxu0
      %587 = vst.msk [vmem:[#allocation2] sm:$0xff] %vm465, %v581
      %588 = vst.msk [vmem:[#allocation2 + $0x8] sm:$0xff] %vm465, %v584
      %589 = vrot.lane.b32.xlu0 %v459, 120
      %v590 = vpop.permute.xlu0 %589
      %591 = vrot.lane.b32.xlu0 %v464, 120
      %v592 = vpop.permute.xlu0 %591
      %v594 = vsel %vm465, %v590, 0
      %v597 = vsel %vm465, %v592, 0
      %599 = vmatprep.subr.bf16.mxu0 0
      %600 = vmatpush1.bf16.xpose.msra.mxu0 0
      %601 = vmatprep.subr.bf16.mxu0 0
      %602 = vmatpush1.bf16.xpose.msra.mxu0 0
      %603 = vmatprep.subr.bf16.mxu0 0
      %604 = vmatpush1.bf16.xpose.msra.mxu0 0
      %605 = vmatprep.subr.bf16.mxu0 0
      %606 = vmatpush1.bf16.xpose.msra.mxu0 0
      %607 = vmatprep.subr.bf16.mxu0 0
      %608 = vmatpush1.bf16.xpose.msra.mxu0 0
      %609 = vmatprep.subr.bf16.mxu0 0
      %610 = vmatpush1.bf16.xpose.msra.mxu0 0
      %611 = vmatprep.subr.bf16.mxu0 0
      %612 = vmatpush1.bf16.xpose.msra.mxu0 0
      %613 = vmatprep.subr.bf16.mxu0 0
      %614 = vmatpush1.bf16.xpose.msra.mxu0 %v597
      %615 = vmatprep.subr.bf16.mxu0 0
      %616 = vmatpush2.bf16.xpose.msra.mxu0 0
      %617 = vmatprep.subr.bf16.mxu0 0
      %618 = vmatpush2.bf16.xpose.msra.mxu0 0
      %619 = vmatprep.subr.bf16.mxu0 0
      %620 = vmatpush2.bf16.xpose.msra.mxu0 0
      %621 = vmatprep.subr.bf16.mxu0 0
      %622 = vmatpush2.bf16.xpose.msra.mxu0 0
      %623 = vmatprep.subr.bf16.mxu0 0
      %624 = vmatpush2.bf16.xpose.msra.mxu0 0
      %625 = vmatprep.subr.bf16.mxu0 0
      %626 = vmatpush2.bf16.xpose.msra.mxu0 0
      %627 = vmatprep.subr.bf16.mxu0 0
      %628 = vmatpush2.bf16.xpose.msra.mxu0 0
      %629 = vmatprep.subr.bf16.mxu0 0
      %630 = vmatpush2.bf16.xpose.msra.mxu0 0
      %631 = vmatprep.mubr.bf16.mxu0 0
      %632 = vmatmul.mubr.bf16.gmra.mxu0 %v594
      %v633 = vpop.f32.mrf.mxu0
      %v634 = vadd.f32 0.0, %v633
      %v635 = vpop.f32.mrf.mxu0
      %v636 = vpop.f32.mrf.mxu0
      %v637 = vadd.f32 0.0, %v636
      %v638 = vpop.f32.mrf.mxu0
      %639 = vdwg.mxu0
      %v640 = vsel %vm513, %v634, -inf
      %641 = vmax.xlane.f32.xlu0 %v640
      %v642 = vpop.xlane.xlu0 %641
      %v643 = vsel %vm513, %v637, -inf
      %644 = vmax.xlane.f32.xlu0 %v643
      %v645 = vpop.xlane.xlu0 %644
      %v646 = vsub.f32 %v634, %v642
      %v647 = vsub.f32 %v637, %v645
      %v648 = vmul.f32 %v646, 1.442695
      %v649 = vpow.pop %v648
      %v650 = vmul.f32 %v647, 1.442695
      %v651 = vpow.pop %v650
      %v652 = vsel %vm513, %v649, 0.0
      %653 = vadd.xlane.f32.xlu0 %v652
      %v654 = vpop.xlane.xlu0 %653
      %v655 = vsel %vm513, %v651, 0.0
      %656 = vadd.xlane.f32.xlu0 %v655
      %v657 = vpop.xlane.xlu0 %656
      %v658 = vrcp.pop %v654
      %v659 = vmul.f32 %v649, %v658
      %v660 = vrcp.pop %v657
      %v661 = vmul.f32 %v651, %v660
      %v662 = vpack.c.bf16 %v661, %v659
      %663 = vrot.lane.b32.xlu0 %v541, 120
      %v664 = vpop.permute.xlu0 %663
      %v667 = vsel %vm513, %v662, 0
      %669 = vmatprep.subr.bf16.mxu0 0
      %670 = vmatpush1.bf16.msra.mxu0 0
      %671 = vmatprep.subr.bf16.mxu0 0
      %672 = vmatpush1.bf16.msra.mxu0 0
      %673 = vmatprep.subr.bf16.mxu0 0
      %674 = vmatpush1.bf16.msra.mxu0 0
      %675 = vmatprep.subr.bf16.mxu0 0
      %676 = vmatpush1.bf16.msra.mxu0 0
      %677 = vmatprep.subr.bf16.mxu0 0
      %678 = vmatpush1.bf16.msra.mxu0 0
      %679 = vmatprep.subr.bf16.mxu0 0
      %680 = vmatpush1.bf16.msra.mxu0 0
      %681 = vmatprep.subr.bf16.mxu0 0
      %682 = vmatpush1.bf16.msra.mxu0 0
      %683 = vmatprep.subr.bf16.mxu0 0
      %684 = vmatpush1.bf16.msra.mxu0 %v664
      %685 = vmatprep.subr.bf16.mxu0 0
      %686 = vmatpush2.bf16.msra.mxu0 0
      %687 = vmatprep.subr.bf16.mxu0 0
      %688 = vmatpush2.bf16.msra.mxu0 0
      %689 = vmatprep.subr.bf16.mxu0 0
      %690 = vmatpush2.bf16.msra.mxu0 0
      %691 = vmatprep.subr.bf16.mxu0 0
      %692 = vmatpush2.bf16.msra.mxu0 0
      %693 = vmatprep.subr.bf16.mxu0 0
      %694 = vmatpush2.bf16.msra.mxu0 0
      %695 = vmatprep.subr.bf16.mxu0 0
      %696 = vmatpush2.bf16.msra.mxu0 0
      %697 = vmatprep.subr.bf16.mxu0 0
      %698 = vmatpush2.bf16.msra.mxu0 0
      %699 = vmatprep.subr.bf16.mxu0 0
      %700 = vmatpush2.bf16.msra.mxu0 0
      %701 = vmatprep.mubr.bf16.mxu0 0
      %702 = vmatmul.mubr.bf16.gmra.mxu0 %v667
      %v703 = vpop.f32.mrf.mxu0
      %v704 = vadd.f32 0.0, %v703
      %v705 = vpop.f32.mrf.mxu0
      %v706 = vpop.f32.mrf.mxu0
      %v707 = vadd.f32 0.0, %v706
      %v708 = vpop.f32.mrf.mxu0
      %709 = vdwg.mxu0
      %712 = vrot.lane.b32.xlu0 %v704, 8
      %v713 = vpop.permute.xlu0 %712
      %714 = vrot.lane.b32.xlu0 %v707, 8
      %v715 = vpop.permute.xlu0 %714
      %vm718 = vcmask 130112
      %719 = vst.msk [vmem:[#allocation2] sm:$0xff] %vm718, %v713
      %720 = vst.msk [vmem:[#allocation2 + $0x8] sm:$0xff] %vm718, %v715
      %721 = vrot.lane.b32.xlu0 %v459, 112
      %v722 = vpop.permute.xlu0 %721
      %723 = vrot.lane.b32.xlu0 %v464, 112
      %v724 = vpop.permute.xlu0 %723
      %v726 = vsel %vm465, %v722, 0
      %v729 = vsel %vm465, %v724, 0
      %731 = vmatprep.subr.bf16.mxu0 0
      %732 = vmatpush1.bf16.xpose.msra.mxu0 0
      %733 = vmatprep.subr.bf16.mxu0 0
      %734 = vmatpush1.bf16.xpose.msra.mxu0 0
      %735 = vmatprep.subr.bf16.mxu0 0
      %736 = vmatpush1.bf16.xpose.msra.mxu0 0
      %737 = vmatprep.subr.bf16.mxu0 0
      %738 = vmatpush1.bf16.xpose.msra.mxu0 0
      %739 = vmatprep.subr.bf16.mxu0 0
      %740 = vmatpush1.bf16.xpose.msra.mxu0 0
      %741 = vmatprep.subr.bf16.mxu0 0
      %742 = vmatpush1.bf16.xpose.msra.mxu0 0
      %743 = vmatprep.subr.bf16.mxu0 0
      %744 = vmatpush1.bf16.xpose.msra.mxu0 0
      %745 = vmatprep.subr.bf16.mxu0 0
      %746 = vmatpush1.bf16.xpose.msra.mxu0 %v729
      %747 = vmatprep.subr.bf16.mxu0 0
      %748 = vmatpush2.bf16.xpose.msra.mxu0 0
      %749 = vmatprep.subr.bf16.mxu0 0
      %750 = vmatpush2.bf16.xpose.msra.mxu0 0
      %751 = vmatprep.subr.bf16.mxu0 0
      %752 = vmatpush2.bf16.xpose.msra.mxu0 0
      %753 = vmatprep.subr.bf16.mxu0 0
      %754 = vmatpush2.bf16.xpose.msra.mxu0 0
      %755 = vmatprep.subr.bf16.mxu0 0
      %756 = vmatpush2.bf16.xpose.msra.mxu0 0
      %757 = vmatprep.subr.bf16.mxu0 0
      %758 = vmatpush2.bf16.xpose.msra.mxu0 0
      %759 = vmatprep.subr.bf16.mxu0 0
      %760 = vmatpush2.bf16.xpose.msra.mxu0 0
      %761 = vmatprep.subr.bf16.mxu0 0
      %762 = vmatpush2.bf16.xpose.msra.mxu0 0
      %763 = vmatprep.mubr.bf16.mxu0 0
      %764 = vmatmul.mubr.bf16.gmra.mxu0 %v726
      %v765 = vpop.f32.mrf.mxu0
      %v766 = vadd.f32 0.0, %v765
      %v767 = vpop.f32.mrf.mxu0
      %v768 = vpop.f32.mrf.mxu0
      %v769 = vadd.f32 0.0, %v768
      %v770 = vpop.f32.mrf.mxu0
      %771 = vdwg.mxu0
      %v772 = vsel %vm513, %v766, -inf
      %773 = vmax.xlane.f32.xlu0 %v772
      %v774 = vpop.xlane.xlu0 %773
      %v775 = vsel %vm513, %v769, -inf
      %776 = vmax.xlane.f32.xlu0 %v775
      %v777 = vpop.xlane.xlu0 %776
      %v778 = vsub.f32 %v766, %v774
      %v779 = vsub.f32 %v769, %v777
      %v780 = vmul.f32 %v778, 1.442695
      %v781 = vpow.pop %v780
      %v782 = vmul.f32 %v779, 1.442695
      %v783 = vpow.pop %v782
      %v784 = vsel %vm513, %v781, 0.0
      %785 = vadd.xlane.f32.xlu0 %v784
      %v786 = vpop.xlane.xlu0 %785
      %v787 = vsel %vm513, %v783, 0.0
      %788 = vadd.xlane.f32.xlu0 %v787
      %v789 = vpop.xlane.xlu0 %788
      %v790 = vrcp.pop %v786
      %v791 = vmul.f32 %v781, %v790
      %v792 = vrcp.pop %v789
      %v793 = vmul.f32 %v783, %v792
      %v794 = vpack.c.bf16 %v793, %v791
      %795 = vrot.lane.b32.xlu0 %v541, 112
      %v796 = vpop.permute.xlu0 %795
      %v799 = vsel %vm513, %v794, 0
      %801 = vmatprep.subr.bf16.mxu0 0
      %802 = vmatpush1.bf16.msra.mxu0 0
      %803 = vmatprep.subr.bf16.mxu0 0
      %804 = vmatpush1.bf16.msra.mxu0 0
      %805 = vmatprep.subr.bf16.mxu0 0
      %806 = vmatpush1.bf16.msra.mxu0 0
      %807 = vmatprep.subr.bf16.mxu0 0
      %808 = vmatpush1.bf16.msra.mxu0 0
      %809 = vmatprep.subr.bf16.mxu0 0
      %810 = vmatpush1.bf16.msra.mxu0 0
      %811 = vmatprep.subr.bf16.mxu0 0
      %812 = vmatpush1.bf16.msra.mxu0 0
      %813 = vmatprep.subr.bf16.mxu0 0
      %814 = vmatpush1.bf16.msra.mxu0 0
      %815 = vmatprep.subr.bf16.mxu0 0
      %816 = vmatpush1.bf16.msra.mxu0 %v796
      %817 = vmatprep.subr.bf16.mxu0 0
      %818 = vmatpush2.bf16.msra.mxu0 0
      %819 = vmatprep.subr.bf16.mxu0 0
      %820 = vmatpush2.bf16.msra.mxu0 0
      %821 = vmatprep.subr.bf16.mxu0 0
      %822 = vmatpush2.bf16.msra.mxu0 0
      %823 = vmatprep.subr.bf16.mxu0 0
      %824 = vmatpush2.bf16.msra.mxu0 0
      %825 = vmatprep.subr.bf16.mxu0 0
      %826 = vmatpush2.bf16.msra.mxu0 0
      %827 = vmatprep.subr.bf16.mxu0 0
      %828 = vmatpush2.bf16.msra.mxu0 0
      %829 = vmatprep.subr.bf16.mxu0 0
      %830 = vmatpush2.bf16.msra.mxu0 0
      %831 = vmatprep.subr.bf16.mxu0 0
      %832 = vmatpush2.bf16.msra.mxu0 0
      %833 = vmatprep.mubr.bf16.mxu0 0
      %834 = vmatmul.mubr.bf16.gmra.mxu0 %v799
      %v835 = vpop.f32.mrf.mxu0
      %v836 = vadd.f32 0.0, %v835
      %v837 = vpop.f32.mrf.mxu0
      %v838 = vpop.f32.mrf.mxu0
      %v839 = vadd.f32 0.0, %v838
      %v840 = vpop.f32.mrf.mxu0
      %841 = vdwg.mxu0
      %844 = vrot.lane.b32.xlu0 %v836, 16
      %v845 = vpop.permute.xlu0 %844
      %846 = vrot.lane.b32.xlu0 %v839, 16
      %v847 = vpop.permute.xlu0 %846
      %vm850 = vcmask 195712
      %851 = vst.msk [vmem:[#allocation2] sm:$0xff] %vm850, %v845
      %852 = vst.msk [vmem:[#allocation2 + $0x8] sm:$0xff] %vm850, %v847
      %853 = vrot.lane.b32.xlu0 %v459, 104
      %v854 = vpop.permute.xlu0 %853
      %855 = vrot.lane.b32.xlu0 %v464, 104
      %v856 = vpop.permute.xlu0 %855
      %v858 = vsel %vm465, %v854, 0
      %v861 = vsel %vm465, %v856, 0
      %863 = vmatprep.subr.bf16.mxu0 0
      %864 = vmatpush1.bf16.xpose.msra.mxu0 0
      %865 = vmatprep.subr.bf16.mxu0 0
      %866 = vmatpush1.bf16.xpose.msra.mxu0 0
      %867 = vmatprep.subr.bf16.mxu0 0
      %868 = vmatpush1.bf16.xpose.msra.mxu0 0
      %869 = vmatprep.subr.bf16.mxu0 0
      %870 = vmatpush1.bf16.xpose.msra.mxu0 0
      %871 = vmatprep.subr.bf16.mxu0 0
      %872 = vmatpush1.bf16.xpose.msra.mxu0 0
      %873 = vmatprep.subr.bf16.mxu0 0
      %874 = vmatpush1.bf16.xpose.msra.mxu0 0
      %875 = vmatprep.subr.bf16.mxu0 0
      %876 = vmatpush1.bf16.xpose.msra.mxu0 0
      %877 = vmatprep.subr.bf16.mxu0 0
      %878 = vmatpush1.bf16.xpose.msra.mxu0 %v861
      %879 = vmatprep.subr.bf16.mxu0 0
      %880 = vmatpush2.bf16.xpose.msra.mxu0 0
      %881 = vmatprep.subr.bf16.mxu0 0
      %882 = vmatpush2.bf16.xpose.msra.mxu0 0
      %883 = vmatprep.subr.bf16.mxu0 0
      %884 = vmatpush2.bf16.xpose.msra.mxu0 0
      %885 = vmatprep.subr.bf16.mxu0 0
      %886 = vmatpush2.bf16.xpose.msra.mxu0 0
      %887 = vmatprep.subr.bf16.mxu0 0
      %888 = vmatpush2.bf16.xpose.msra.mxu0 0
      %889 = vmatprep.subr.bf16.mxu0 0
      %890 = vmatpush2.bf16.xpose.msra.mxu0 0
      %891 = vmatprep.subr.bf16.mxu0 0
      %892 = vmatpush2.bf16.xpose.msra.mxu0 0
      %893 = vmatprep.subr.bf16.mxu0 0
      %894 = vmatpush2.bf16.xpose.msra.mxu0 0
      %895 = vmatprep.mubr.bf16.mxu0 0
      %896 = vmatmul.mubr.bf16.gmra.mxu0 %v858
      %v897 = vpop.f32.mrf.mxu0
      %v898 = vadd.f32 0.0, %v897
      %v899 = vpop.f32.mrf.mxu0
      %v900 = vpop.f32.mrf.mxu0
      %v901 = vadd.f32 0.0, %v900
      %v902 = vpop.f32.mrf.mxu0
      %903 = vdwg.mxu0
      %v904 = vsel %vm513, %v898, -inf
      %905 = vmax.xlane.f32.xlu0 %v904
      %v906 = vpop.xlane.xlu0 %905
      %v907 = vsel %vm513, %v901, -inf
      %908 = vmax.xlane.f32.xlu0 %v907
      %v909 = vpop.xlane.xlu0 %908
      %v910 = vsub.f32 %v898, %v906
      %v911 = vsub.f32 %v901, %v909
      %v912 = vmul.f32 %v910, 1.442695
      %v913 = vpow.pop %v912
      %v914 = vmul.f32 %v911, 1.442695
      %v915 = vpow.pop %v914
      %v916 = vsel %vm513, %v913, 0.0
      %917 = vadd.xlane.f32.xlu0 %v916
      %v918 = vpop.xlane.xlu0 %917
      %v919 = vsel %vm513, %v915, 0.0
      %920 = vadd.xlane.f32.xlu0 %v919
      %v921 = vpop.xlane.xlu0 %920
      %v922 = vrcp.pop %v918
      %v923 = vmul.f32 %v913, %v922
      %v924 = vrcp.pop %v921
      %v925 = vmul.f32 %v915, %v924
      %v926 = vpack.c.bf16 %v925, %v923
      %927 = vrot.lane.b32.xlu0 %v541, 104
      %v928 = vpop.permute.xlu0 %927
      %v931 = vsel %vm513, %v926, 0
      %933 = vmatprep.subr.bf16.mxu0 0
      %934 = vmatpush1.bf16.msra.mxu0 0
      %935 = vmatprep.subr.bf16.mxu0 0
      %936 = vmatpush1.bf16.msra.mxu0 0
      %937 = vmatprep.subr.bf16.mxu0 0
      %938 = vmatpush1.bf16.msra.mxu0 0
      %939 = vmatprep.subr.bf16.mxu0 0
      %940 = vmatpush1.bf16.msra.mxu0 0
      %941 = vmatprep.subr.bf16.mxu0 0
      %942 = vmatpush1.bf16.msra.mxu0 0
      %943 = vmatprep.subr.bf16.mxu0 0
      %944 = vmatpush1.bf16.msra.mxu0 0
      %945 = vmatprep.subr.bf16.mxu0 0
      %946 = vmatpush1.bf16.msra.mxu0 0
      %947 = vmatprep.subr.bf16.mxu0 0
      %948 = vmatpush1.bf16.msra.mxu0 %v928
      %949 = vmatprep.subr.bf16.mxu0 0
      %950 = vmatpush2.bf16.msra.mxu0 0
      %951 = vmatprep.subr.bf16.mxu0 0
      %952 = vmatpush2.bf16.msra.mxu0 0
      %953 = vmatprep.subr.bf16.mxu0 0
      %954 = vmatpush2.bf16.msra.mxu0 0
      %955 = vmatprep.subr.bf16.mxu0 0
      %956 = vmatpush2.bf16.msra.mxu0 0
      %957 = vmatprep.subr.bf16.mxu0 0
      %958 = vmatpush2.bf16.msra.mxu0 0
      %959 = vmatprep.subr.bf16.mxu0 0
      %960 = vmatpush2.bf16.msra.mxu0 0
      %961 = vmatprep.subr.bf16.mxu0 0
      %962 = vmatpush2.bf16.msra.mxu0 0
      %963 = vmatprep.subr.bf16.mxu0 0
      %964 = vmatpush2.bf16.msra.mxu0 0
      %965 = vmatprep.mubr.bf16.mxu0 0
      %966 = vmatmul.mubr.bf16.gmra.mxu0 %v931
      %v967 = vpop.f32.mrf.mxu0
      %v968 = vadd.f32 0.0, %v967
      %v969 = vpop.f32.mrf.mxu0
      %v970 = vpop.f32.mrf.mxu0
      %v971 = vadd.f32 0.0, %v970
      %v972 = vpop.f32.mrf.mxu0
      %973 = vdwg.mxu0
      %976 = vrot.lane.b32.xlu0 %v968, 24
      %v977 = vpop.permute.xlu0 %976
      %978 = vrot.lane.b32.xlu0 %v971, 24
      %v979 = vpop.permute.xlu0 %978
      %vm982 = vcmask 261312
      %983 = vst.msk [vmem:[#allocation2] sm:$0xff] %vm982, %v977
      %984 = vst.msk [vmem:[#allocation2 + $0x8] sm:$0xff] %vm982, %v979
      %v985 = vld [vmem:[#allocation2] sm:$0xff]
      %v986 = vld [vmem:[#allocation2 + $0x8] sm:$0xff]
      %v987 = vpack.c.bf16 %v986, %v985
      %v988 = vld [vmem:[%s4] sm:$0xf]
      %v989 = vld [vmem:[%s4 + $0x4] sm:$0xf]
      %v990 = vld [vmem:[%s4 + $0x8] sm:$0xf]
      %v991 = vld [vmem:[%s4 + $0xc] sm:$0xf]
      %v992 = vld [vmem:[%s426] sm:$0xff]
      %v993 = vld [vmem:[%s426 + $0x8] sm:$0xff]
      %v994 = vld [vmem:[%s5] sm:$0x1]
      %v996 = vlaneseq
      %v997 = vshrl.u32 %v996, 7
      %v998 = vsub.s32 0, %v997
      %v999 = vrot.slane %v994, %v998
      %v1005 = vunpack.c.l.b16 %v988
      %v1006 = vunpack.c.l.b16 %v989
      %v1007 = vunpack.c.l.b16 %v990
      %v1008 = vunpack.c.l.b16 %v991
      %v1009 = vpack.c.b16 %v1006, %v1005
      %v1010 = vpack.c.b16 %v1008, %v1007
      %vm1013 = vcmask 261120
      %v1015 = vsel %vm1013, %v987, 0
      %1017 = vmatprep.subr.bf16.mxu0 0
      %1018 = vmatpush1.bf16.msra.mxu0 0
      %1019 = vmatprep.subr.bf16.mxu0 0
      %1020 = vmatpush1.bf16.msra.mxu0 0
      %1021 = vmatprep.subr.bf16.mxu0 0
      %1022 = vmatpush1.bf16.msra.mxu0 0
      %1023 = vmatprep.subr.bf16.mxu0 0
      %1024 = vmatpush1.bf16.msra.mxu0 0
      %1025 = vmatprep.subr.bf16.mxu0 0
      %1026 = vmatpush1.bf16.msra.mxu0 0
      %1027 = vmatprep.subr.bf16.mxu0 0
      %1028 = vmatpush1.bf16.msra.mxu0 0
      %1029 = vmatprep.subr.bf16.mxu0 0
      %1030 = vmatpush1.bf16.msra.mxu0 %v1010
      %1031 = vmatprep.subr.bf16.mxu0 0
      %1032 = vmatpush1.bf16.msra.mxu0 %v1009
      %1033 = vmatprep.subr.bf16.mxu0 0
      %1034 = vmatpush2.bf16.msra.mxu0 0
      %1035 = vmatprep.subr.bf16.mxu0 0
      %1036 = vmatpush2.bf16.msra.mxu0 0
      %1037 = vmatprep.subr.bf16.mxu0 0
      %1038 = vmatpush2.bf16.msra.mxu0 0
      %1039 = vmatprep.subr.bf16.mxu0 0
      %1040 = vmatpush2.bf16.msra.mxu0 0
      %1041 = vmatprep.subr.bf16.mxu0 0
      %1042 = vmatpush2.bf16.msra.mxu0 0
      %1043 = vmatprep.subr.bf16.mxu0 0
      %1044 = vmatpush2.bf16.msra.mxu0 0
      %1045 = vmatprep.subr.bf16.mxu0 0
      %1046 = vmatpush2.bf16.msra.mxu0 0
      %1047 = vmatprep.subr.bf16.mxu0 0
      %1048 = vmatpush2.bf16.msra.mxu0 0
      %1049 = vmatprep.mubr.bf16.mxu0 0
      %1050 = vmatmul.mubr.bf16.gmra.mxu0 %v1015
      %v1051 = vpop.f32.mrf.mxu0
      %v1052 = vadd.f32 %v999, %v1051
      %v1053 = vpop.f32.mrf.mxu0
      %v1054 = vpop.f32.mrf.mxu0
      %v1055 = vadd.f32 %v999, %v1054
      %v1056 = vpop.f32.mrf.mxu0
      %1057 = vdwg.mxu0
      %v1058 = vadd.f32 %v992, %v1052
      %v1059 = vadd.f32 %v993, %v1055
      %1060 = vst.msk [vmem:[%s436] sm:$0xff] %vm1013, %v1058
      %1061 = vst.msk [vmem:[%s436 + $0x8] sm:$0xff] %vm1013, %v1059
      %v1062 = vsel %vm1013, %v1058, 0.0
      %v1063 = vsel %vm1013, %v1059, 0.0
      %v1064 = vadd.f32 %v1062, %v1063
      %v1065 = vrot.slane %v1064, 4
      %v1066 = vadd.f32 %v1064, %v1065
      %v1067 = vrot.slane %v1066, 2
      %v1068 = vadd.f32 %v1066, %v1067
      %v1069 = vrot.slane %v1068, 1
      %v1070 = vadd.f32 %v1068, %v1069
      %vm1071 = vcmask 253952
      %1072 = vst.msk [vmem:[%s441] sm:$0x1] %vm1071, %v1070
      %v1073 = vmul.f32 %v1058, %v1058
      %v1074 = vmul.f32 %v1059, %v1059
      %v1075 = vsel %vm1013, %v1073, 0.0
      %v1076 = vsel %vm1013, %v1074, 0.0
      %v1077 = vadd.f32 %v1075, %v1076
      %v1078 = vrot.slane %v1077, 4
      %v1079 = vadd.f32 %v1077, %v1078
      %v1080 = vrot.slane %v1079, 2
      %v1081 = vadd.f32 %v1079, %v1080
      %v1082 = vrot.slane %v1081, 1
      %v1083 = vadd.f32 %v1081, %v1082
      %1084 = vst.msk [vmem:[%s446] sm:$0x1] %vm1071, %v1083
      %s1085 = smul.u32 2, %s25
      %p1086 = scmp.lt.s32.totalorder %s24, 1
      %s1087 = scalar_select %p1086, %s24, 1
      %p1088 = scmp.lt.s32.totalorder %s1085, 1
      %s1089 = scalar_select %p1088, %s1085, 1
      %s1090 = smul.addr %s1087, 2
      %s1091 = sadd.s32 %s1089, %s1090
      %s1092 = smul.addr %s1091, 8
      %s1093 = scalar_lea.vmem %s6, %s1092
      %s1094 = sadd.s32 %s24, %s25
      %p1095 = scmp.lt.s32.totalorder %s1094, 1
      %s1096 = scalar_select %p1095, %s1094, 1
      %s1097 = scalar_lea.vmem %s7, %s1096
      %s1098 = sadd.s32 %s24, %s25
      %p1099 = scmp.lt.s32.totalorder %s1098, 1
      %s1100 = scalar_select %p1099, %s1098, 1
      %s1101 = scalar_lea.vmem %s8, %s1100
      // Predicated region
      $region45: #{tf_encoder_layer.5} parent=43 // pred_check
        %p1102 = pneg %p202
      $region46: #{tf_encoder_layer.5} parent=43 // pred_check_branch
        %1104 = sbr.rel (%p1102) target = $region48
      $region47: #{tf_encoder_layer.5} parent=43 // pred_region
        %s1105 = smul.u32 2, %s25
      $region48: #{tf_encoder_layer.5} parent=43 // pred_fallthru
        _
      // Predicated region
      $region49: #{tf_encoder_layer.5} parent=43 // pred_check
        %p1106 = pneg %p230
      $region50: #{tf_encoder_layer.5} parent=43 // pred_check_branch
        %1108 = sbr.rel (%p1106) target = $region52
      $region51: #{tf_encoder_layer.5} parent=43 // pred_region
        %s1109 = sadd.s32 %s24, %s25
      $region52: #{tf_encoder_layer.5} parent=43 // pred_fallthru
        _
      // Predicated region
      $region53: #{tf_encoder_layer.5} parent=43 // pred_check
        %p1110 = pneg %p258
      $region54: #{tf_encoder_layer.5} parent=43 // pred_check_branch
        %1112 = sbr.rel (%p1110) target = $region56
      $region55: #{tf_encoder_layer.5} parent=43 // pred_region
        %s1113 = sadd.s32 %s24, %s25
      $region56: #{tf_encoder_layer.5} parent=43 // pred_fallthru
        _
    $region44: #{tf_encoder_layer.5} parent=5 // pred_fallthru
      _
    %p1114 = scmp.le.s32.totalorder 2, %s15
    // Predicated region
    $region57: #{tf_encoder_layer.5} parent=5 // pred_check
      %p1115 = pneg %p1114
    $region58: #{tf_encoder_layer.5} parent=5 // pred_check_branch
      %1117 = sbr.rel (%p1115) target = $region60
    $region59: #{tf_encoder_layer.5} parent=5 // pred_region
      %s1118 = ssub.s32 %s15, 2
      // Predicated region
      $region61: #{tf_encoder_layer.5} parent=59 // pred_check
        %p1119 = pneg %p208
      $region62: #{tf_encoder_layer.5} parent=59 // pred_check_branch
        %1121 = sbr.rel (%p1119) target = $region64
      $region63: #{tf_encoder_layer.5} parent=59 // pred_region
        %s1122 = smul.u32 2, %s27
        %p1123 = scmp.lt.s32.totalorder %s26, 1
        %s1124 = scalar_select %p1123, %s26, 1
        %p1125 = scmp.lt.s32.totalorder %s1122, 1
        %s1126 = scalar_select %p1125, %s1122, 1
        %s1127 = smul.addr %s1124, 2
        %s1128 = sadd.s32 %s1126, %s1127
        %s1129 = smul.addr %s1128, 8
        %s1130 = scalar_lea.vmem %s6, %s1129
      $region64: #{tf_encoder_layer.5} parent=59 // pred_fallthru
        _
      // Predicated region
      $region65: #{tf_encoder_layer.5} parent=59 // pred_check
        %p1131 = pneg %p236
      $region66: #{tf_encoder_layer.5} parent=59 // pred_check_branch
        %1133 = sbr.rel (%p1131) target = $region68
      $region67: #{tf_encoder_layer.5} parent=59 // pred_region
        %s1134 = sadd.s32 %s26, %s27
        %p1135 = scmp.lt.s32.totalorder %s1134, 1
        %s1136 = scalar_select %p1135, %s1134, 1
        %s1137 = scalar_lea.vmem %s7, %s1136
      $region68: #{tf_encoder_layer.5} parent=59 // pred_fallthru
        _
      // Predicated region
      $region69: #{tf_encoder_layer.5} parent=59 // pred_check
        %p1138 = pneg %p264
      $region70: #{tf_encoder_layer.5} parent=59 // pred_check_branch
        %1140 = sbr.rel (%p1138) target = $region72
      $region71: #{tf_encoder_layer.5} parent=59 // pred_region
        %s1141 = sadd.s32 %s26, %s27
        %p1142 = scmp.lt.s32.totalorder %s1141, 1
        %s1143 = scalar_select %p1142, %s1141, 1
        %s1144 = scalar_lea.vmem %s8, %s1143
      $region72: #{tf_encoder_layer.5} parent=59 // pred_fallthru
        _
    $region60: #{tf_encoder_layer.5} parent=5 // pred_fallthru
      _
  $region6: #{tf_encoder_layer.5} parent=0 // loop_footer
    %s19 = sadd.s32 1, %s15
  $region7: #{tf_encoder_layer.5} parent=0 // loop_footer_branch
    %14 = sbr.rel target = $region3
  $region8: #{tf_encoder_layer.5} parent=0 // loop_exit
    _

</llo_original>
